<compile_context>
chip_gen: v5e
topology: v5e:2x2
jax: 0.10.0
libtpu: 0.0.40
codegen_flags: <defaults>
</compile_context>

<pallas_src>
import numpy as np
import jax
import jax.numpy as jnp
from jax.experimental import pallas as pl
from jax.experimental.pallas import tpu as pltpu


PAD = 1          # conv padding
EPS = 1e-5       # InstanceNorm2d eps
_SUB = 16        # per-sample row blocks padded to a multiple of this (bf16 sublane tile)


def _round_up(v, m):
    return ((v + m - 1) // m) * m


# ----------------------------------------------------------------------------
# Static geometry / constant tables (trace-time numpy)
# ----------------------------------------------------------------------------
def _geom(h, w):
    """Phase-flat geometry of one conv layer (kernel 4, stride 2, pad 1) with input (h, w)."""
    r2, c2 = (h + 2 * PAD) // 2, (w + 2 * PAD) // 2     # phase-grid dims of the padded input
    oh, ow = h // 2, w // 2                             # conv output spatial
    n = r2 * c2
    return dict(h=h, w=w, r2=r2, c2=c2, n=n, np=_round_up(n, _SUB),
                oh=oh, ow=ow, s=oh * ow,
                L=(oh - 1) * c2 + ow,                   # last valid output row + 1
                tail=_round_up(c2 + 1, _SUB))           # extra slab rows touched by shifted views


def _valid_mask(g):
    """(np, 1) f32: 1 for rows that are real conv outputs, 0 for interleaved junk/pad rows."""
    j = np.arange(g["np"])
    m = ((j // g["c2"]) < g["oh"]) & ((j % g["c2"]) < g["ow"])
    return m.astype(np.float32)[:, None]


def _repack_matrix(g, src_rows, src_stride):
    """(4*np, src_rows) 0/1 matrix: previous layer's activations (valid row = oy*src_stride + ox)
    -> the 4 phase slabs of this layer's zero-padded input, stacked along rows (np rows each).
    Zero rows realize both the conv zero-padding ring and the per-block row padding."""
    M = np.zeros((4 * g["np"], src_rows), np.float32)
    for pr in range(2):
        for pc in range(2):
            pq = pr * 2 + pc
            for rr in range(g["r2"]):
                for cc in range(g["c2"]):
                    oy, ox = 2 * rr + pr - 1, 2 * cc + pc - 1
                    if 0 <= oy < g["h"] and 0 <= ox < g["w"]:
                        M[pq * g["np"] + rr * g["c2"] + cc, oy * src_stride + ox] = 1.0
    return M


# ----------------------------------------------------------------------------
# Fused kernel
# ----------------------------------------------------------------------------
def _make_kernel(bt, s0, geoms):
    inv_s0 = 1.0 / float(s0)

    def _inorm_prelu(acc3, gba_ref, vm, inv_s):
        """InstanceNorm2d(affine) + PReLU on (Bt, rows, C); statistics over valid rows only."""
        if vm is None:
            mean = jnp.sum(acc3, axis=1, keepdims=True) * inv_s
            d = acc3 - mean
        else:
            mean = jnp.sum(jnp.where(vm > 0.0, acc3, 0.0), axis=1, keepdims=True) * inv_s
            d = jnp.where(vm > 0.0, acc3 - mean, 0.0)
        var = jnp.sum(d * d, axis=1, keepdims=True) * inv_s
        xn = (acc3 - mean) * jax.lax.rsqrt(var + EPS)
        z = xn * gba_ref[0:1, :] + gba_ref[1:2, :]                   # affine
        return jnp.where(z >= 0.0, z, gba_ref[2:3, :] * z)           # per-channel PReLU

    def _conv_layer(y_prev, z_s, r_ref, w_ref, gba_ref, vm_ref, g, inv_s):
        """Conv2d(4x4, s2, p1, no bias) + InstanceNorm2d + PReLU for the whole Bt-sample tile."""
        npi, c2, tail = g["np"], g["c2"], g["tail"]
        rows = bt * npi
        cin = y_prev.shape[-1]

        # The tail rows of the slab scratch are never written by the repack; zero them so the
        # junk conv rows that read them stay finite (junk rows are masked out of all statistics
        # and are never selected by the next repack).
        z_s[4 * rows:4 * rows + tail, :] = jnp.zeros((tail, cin), jnp.bfloat16)

        # Repack: ONE stacked 0/1-selection matmul per sample scatters the previous activations
        # (including the zero padding ring) into the 4 phase slabs (stacked along rows).
        y_bf = y_prev.astype(jnp.bfloat16)                           # cast once per layer
        for b in range(bt):
            blk = jnp.dot(r_ref[...], y_bf[b],
                          preferred_element_type=jnp.float32).astype(jnp.bfloat16)  # (4*np, cin)
            if bt == 1:
                z_s[0:4 * npi, :] = blk
            else:
                for pq in range(4):
                    dst = (pq * bt + b) * npi
                    z_s[dst:dst + npi, :] = blk[pq * npi:(pq + 1) * npi, :]

        # Conv: build the full im2col LHS (K = 16*cin) from 16 contiguous shifted slab views and
        # run ONE MXU matmul with the whole sample tile folded into M.
        views = []
        for pq in range(4):
            base = pq * rows
            for off in (0, 1, c2, c2 + 1):
                views.append(z_s[base + off:base + off + rows, :])
        lhs = jnp.concatenate(views, axis=1)                         # (Bt*np, 16*cin) bf16
        acc = jnp.dot(lhs, w_ref[...], preferred_element_type=jnp.float32)

        acc3 = acc.reshape(bt, npi, acc.shape[-1])                   # per-sample blocks (np | 16)
        return _inorm_prelu(acc3, gba_ref, vm_ref[...], inv_s)

    g1, g2, g3 = geoms

    def kernel(x0_ref, w0_ref, gba0_ref,
               r1_ref, w1_ref, gba1_ref, vm1_ref,
               r2_ref, w2_ref, gba2_ref, vm2_ref,
               r3_ref, w3_ref, gba3_ref, vm3_ref,
               hw1_ref, hb1a_ref, hw2_ref, hbs_ref,
               out_ref,
               z1_s, z2_s, z3_s):
        # ---- layer 0: wrapper-built im2col -> a single matmul over the whole sample tile ----
        acc0 = jnp.dot(x0_ref[...], w0_ref[...], preferred_element_type=jnp.float32)
        y0 = _inorm_prelu(acc0.reshape(bt, s0, acc0.shape[-1]), gba0_ref, None, inv_s0)

        # ---- layers 1..3: activations never leave VMEM ----
        y1 = _conv_layer(y0, z1_s, r1_ref, w1_ref, gba1_ref, vm1_ref, g1, 1.0 / g1["s"])
        y2 = _conv_layer(y1, z2_s, r2_ref, w2_ref, gba2_ref, vm2_ref, g2, 1.0 / g2["s"])
        y3 = _conv_layer(y2, z3_s, r3_ref, w3_ref, gba3_ref, vm3_ref, g3, 1.0 / g3["s"])

        # ---- AdaptiveMaxPool2d(1): max over valid spatial rows only ----
        vm3 = vm3_ref[...]
        pooled = jnp.max(jnp.where(vm3 > 0.0, y3, -1e30), axis=1)    # (Bt, 8*ndf)

        # ---- head: Linear -> Dropout(eval id) -> PReLU -> Linear -> LearnableSigmoid ----
        # TODO(synk): nn.Dropout(0.3) is inference-mode identity here (no RNG mask).
        h = jnp.dot(pooled.astype(jnp.bfloat16), hw1_ref[...],
                    preferred_element_type=jnp.float32) + hb1a_ref[0:1, :]
        h = jnp.where(h >= 0.0, h, hb1a_ref[1:2, :] * h)             # PReLU
        o = jnp.sum(h * hw2_ref[...], axis=1, keepdims=True) + hbs_ref[:, 0:1]   # (Bt, 1)
        out_ref[:, 0, :] = 1.0 / (1.0 + jnp.exp(-(hbs_ref[:, 1:2] * o)))  # beta(=1)*sigmoid(slope*x)

    return kernel


# ----------------------------------------------------------------------------
# Wrapper: builds the fused pallas_call
# ----------------------------------------------------------------------------
def discriminator_forward(x, y, params, block_b=None):
    """x, y: (B, 1, H, W) float32 NCHW (H, W divisible by 16) -> (B, 1)."""
    B, _, H, W = x.shape
    assert H % 16 == 0 and W % 16 == 0, "spatial dims must be divisible by 16"

    # Samples per grid step.  Default keeps >= 2 grid steps (v7x has two TensorCores) while
    # batching as many samples as possible into each step's matmul M dimension.
    if block_b is None:
        cap = max(1, min(B // 2, 32)) if B > 1 else 1
        block_b = max(d for d in range(1, cap + 1) if B % d == 0)
    Bt = int(block_b)
    assert B % Bt == 0

    # ---- layer-0 im2col in the XLA wrapper: (B*S0, 16*Cin) lane-dense bf16 patches ----
    xy = jnp.concatenate([x, y], axis=1)                             # (B, 2, H, W)
    Cin = xy.shape[1]
    oh0, ow0 = H // 2, W // 2
    S0 = oh0 * ow0
    xn = jnp.transpose(xy, (0, 2, 3, 1))                             # NHWC
    xp = jnp.pad(xn, ((0, 0), (PAD, PAD), (PAD, PAD), (0, 0)))
    taps = [xp[:, kh:kh + 2 * oh0:2, kw:kw + 2 * ow0:2, :]
            for kh in range(4) for kw in range(4)]
    x0 = jnp.stack(taps, axis=3).reshape(B * S0, 16 * Cin).astype(jnp.bfloat16)

    # ---- per-layer static geometry & constant tables ----
    g1 = _geom(oh0, ow0)
    g2 = _geom(g1["oh"], g1["ow"])
    g3 = _geom(g2["oh"], g2["ow"])
    geoms = [g1, g2, g3]
    c_out = [params[f"conv{i}_w"].shape[0] for i in range(4)]        # [ndf, 2ndf, 4ndf, 8ndf]

    vms = [jnp.asarray(_valid_mask(g)) for g in geoms]
    r1 = jnp.asarray(_repack_matrix(g1, S0, ow0)).astype(jnp.bfloat16)
    r2 = jnp.asarray(_repack_matrix(g2, g1["np"], g1["c2"])).astype(jnp.bfloat16)
    r3 = jnp.asarray(_repack_matrix(g3, g2["np"], g2["c2"])).astype(jnp.bfloat16)

    # ---- weights in kernel-friendly layouts (spectral norm already baked into params) ----
    w0 = jnp.transpose(params["conv0_w"], (2, 3, 1, 0)).reshape(16 * Cin, c_out[0])
    w0 = w0.astype(jnp.bfloat16)                                     # tap order kh*4+kw, then cin

    def _conv_weight_16k(wconv):
        # (Cout, Cin, 4, 4) -> (16*Cin, Cout) with rows ordered (pq, d, cin); pq = (kh%2)*2+kw%2,
        # d = (kh//2)*2+kw//2 -- matches the in-kernel im2col view order.
        co, ci = wconv.shape[0], wconv.shape[1]
        wt = jnp.transpose(wconv, (2, 3, 1, 0)).reshape(2, 2, 2, 2, ci, co)   # (dr,pr,dc,pc,ci,co)
        wt = jnp.transpose(wt, (1, 3, 0, 2, 4, 5))                            # (pr,pc,dr,dc,ci,co)
        return wt.reshape(16 * ci, co).astype(jnp.bfloat16)

    def _gba(i):
        return jnp.stack([params[f"in{i}_gamma"], params[f"in{i}_beta"],
                          params[f"prelu{i}_alpha"]], axis=0).astype(jnp.float32)

    hw1 = jnp.transpose(params["lin1_w"]).astype(jnp.bfloat16)       # (8ndf, 4ndf)
    hb1a = jnp.stack([params["lin1_b"], params["prelu_h_alpha"]], axis=0).astype(jnp.float32)
    hw2 = params["lin2_w"].astype(jnp.float32)                       # (1, 4ndf)
    hbs = jnp.concatenate([params["lin2_b"], params["sig_slope"]]).reshape(1, 2).astype(jnp.float32)

    ins = [x0, w0, _gba(0),
           r1, _conv_weight_16k(params["conv1_w"]), _gba(1), vms[0],
           r2, _conv_weight_16k(params["conv2_w"]), _gba(2), vms[1],
           r3, _conv_weight_16k(params["conv3_w"]), _gba(3), vms[2],
           hw1, hb1a, hw2, hbs]

    def _full(a):
        return pl.BlockSpec(a.shape, lambda g, _n=a.ndim: (0,) * _n)

    in_specs = [pl.BlockSpec((Bt * S0, 16 * Cin), lambda g: (g, 0))] + [_full(a) for a in ins[1:]]

    # phase-flat slab scratch for layers 1..3 (channels = previous layer's output channels)
    scratch = [pltpu.VMEM((4 * Bt * geoms[i]["np"] + geoms[i]["tail"], c_out[i]), jnp.bfloat16)
               for i in range(3)]

    out = pl.pallas_call(
        _make_kernel(Bt, S0, geoms),
        out_shape=jax.ShapeDtypeStruct((B, 1, 1), jnp.float32),
        grid=(B // Bt,),
        in_specs=in_specs,
        out_specs=pl.BlockSpec((Bt, 1, 1), lambda g: (g, 0, 0)),
        scratch_shapes=scratch,
        compiler_params=pltpu.CompilerParams(
            dimension_semantics=("parallel",),
            vmem_limit_bytes=32 * 1024 * 1024),
    )(*ins)
    return out.reshape(B, 1)


# ----------------------------------------------------------------------------
# Parameters (spectral norm applied once, inference-style) and JAX reference
# ----------------------------------------------------------------------------
def _spectral_sigma(w2d, iters=50):
    # TODO(synk): PyTorch spectral_norm does one power-iteration step per forward with
    # persistent u/v; here the weight is normalized once at build time (frozen inference).
    u = jnp.ones((w2d.shape[0],), jnp.float32) / np.sqrt(w2d.shape[0])
    v = jnp.ones((w2d.shape[1],), jnp.float32) / np.sqrt(w2d.shape[1])
    for _ in range(iters):
        v = w2d.T @ u
        v = v / (jnp.linalg.norm(v) + 1e-12)
        u = w2d @ v
        u = u / (jnp.linalg.norm(u) + 1e-12)
    return u @ (w2d @ v)


def make_params(key, ndf=16, in_channel=2):
    chs = [in_channel, ndf, 2 * ndf, 4 * ndf, 8 * ndf]
    keys = jax.random.split(key, 32)
    k = 0
    params = {}
    for i in range(4):
        cin, cout = chs[i], chs[i + 1]
        wconv = 0.1 * jax.random.normal(keys[k], (cout, cin, 4, 4), jnp.float32); k += 1
        params[f"conv{i}_w"] = wconv / _spectral_sigma(wconv.reshape(cout, -1))
        params[f"in{i}_gamma"] = 1.0 + 0.1 * jax.random.normal(keys[k], (cout,), jnp.float32); k += 1
        params[f"in{i}_beta"] = 0.1 * jax.random.normal(keys[k], (cout,), jnp.float32); k += 1
        params[f"prelu{i}_alpha"] = jnp.full((cout,), 0.25, jnp.float32)
    w1 = 0.1 * jax.random.normal(keys[k], (4 * ndf, 8 * ndf), jnp.float32); k += 1
    params["lin1_w"] = w1 / _spectral_sigma(w1)
    params["lin1_b"] = 0.01 * jax.random.normal(keys[k], (4 * ndf,), jnp.float32); k += 1
    params["prelu_h_alpha"] = jnp.full((4 * ndf,), 0.25, jnp.float32)
    w2 = 0.1 * jax.random.normal(keys[k], (1, 4 * ndf), jnp.float32); k += 1
    params["lin2_w"] = w2 / _spectral_sigma(w2)
    params["lin2_b"] = 0.01 * jax.random.normal(keys[k], (1,), jnp.float32); k += 1
    params["sig_slope"] = jnp.ones((1,), jnp.float32)                # LearnableSigmoid(1)
    return params


def reference_forward(x, y, params):
    """Plain-JAX (f32) reference of the same forward pass."""
    h = jnp.concatenate([x, y], axis=1)
    for i in range(4):
        h = jax.lax.conv_general_dilated(
            h, params[f"conv{i}_w"], window_strides=(2, 2),
            padding=((PAD, PAD), (PAD, PAD)),
            dimension_numbers=("NCHW", "OIHW", "NCHW"))
        mean = jnp.mean(h, axis=(2, 3), keepdims=True)
        var = jnp.mean((h - mean) ** 2, axis=(2, 3), keepdims=True)
        h = (h - mean) * jax.lax.rsqrt(var + EPS)
        h = h * params[f"in{i}_gamma"][None, :, None, None] + params[f"in{i}_beta"][None, :, None, None]
        a = params[f"prelu{i}_alpha"][None, :, None, None]
        h = jnp.where(h >= 0.0, h, a * h)
    pooled = jnp.max(h, axis=(2, 3))                                 # AdaptiveMaxPool2d(1) + Flatten
    z = pooled @ params["lin1_w"].T + params["lin1_b"]
    z = jnp.where(z >= 0.0, z, params["prelu_h_alpha"] * z)
    o = z @ params["lin2_w"].T + params["lin2_b"]
    return 1.0 / (1.0 + jnp.exp(-(params["sig_slope"] * o)))         # (B, 1)


# ----------------------------------------------------------------------------
if __name__ == "__main__":
    key = jax.random.PRNGKey(0)
    kp, kx, ky = jax.random.split(key, 3)
    params = make_params(kp, ndf=16, in_channel=2)

    B, H, W = 2, 32, 32
    x = jax.random.normal(kx, (B, 1, H, W), jnp.float32)
    y = jax.random.normal(ky, (B, 1, H, W), jnp.float32)

    ref = reference_forward(x, y, params)

    fwd = jax.jit(discriminator_forward, static_argnames=("block_b",))

    # default tiling: Bt=1, grid=(2,) -> both v7x TensorCores busy
    out = jax.block_until_ready(fwd(x, y, params))
    assert out.shape == (B, 1), out.shape
    assert bool(jnp.all(jnp.isfinite(out)))
    assert bool(jnp.all((out > 0.0) & (out < 1.0)))                  # sigmoid range
    np.testing.assert_allclose(np.asarray(out), np.asarray(ref), atol=6e-2)

    # batched-tile path (Bt = B samples folded into M per grid step) must agree as well
    out2 = jax.block_until_ready(fwd(x, y, params, block_b=B))
    np.testing.assert_allclose(np.asarray(out2), np.asarray(ref), atol=6e-2)
    np.testing.assert_allclose(np.asarray(out2), np.asarray(out), atol=2e-3)

    print("KERNEL_OK")
</pallas_src>

<mosaic_0001>
module attributes {stable_mosaic.version = 11 : i64} {
  func.func @kernel(%arg0: i32, %arg1: memref<256x32xbf16, #tpu.memory_space<vmem>>, %arg2: memref<32x16xbf16, #tpu.memory_space<vmem>>, %arg3: memref<3x16xf32, #tpu.memory_space<vmem>>, %arg4: memref<384x256xbf16, #tpu.memory_space<vmem>>, %arg5: memref<256x32xbf16, #tpu.memory_space<vmem>>, %arg6: memref<3x32xf32, #tpu.memory_space<vmem>>, %arg7: memref<96x1xf32, #tpu.memory_space<vmem>>, %arg8: memref<128x96xbf16, #tpu.memory_space<vmem>>, %arg9: memref<512x64xbf16, #tpu.memory_space<vmem>>, %arg10: memref<3x64xf32, #tpu.memory_space<vmem>>, %arg11: memref<32x1xf32, #tpu.memory_space<vmem>>, %arg12: memref<64x32xbf16, #tpu.memory_space<vmem>>, %arg13: memref<1024x128xbf16, #tpu.memory_space<vmem>>, %arg14: memref<3x128xf32, #tpu.memory_space<vmem>>, %arg15: memref<16x1xf32, #tpu.memory_space<vmem>>, %arg16: memref<128x64xbf16, #tpu.memory_space<vmem>>, %arg17: memref<2x64xf32, #tpu.memory_space<vmem>>, %arg18: memref<1x64xf32, #tpu.memory_space<vmem>>, %arg19: memref<1x2xf32, #tpu.memory_space<vmem>>, %arg20: memref<1x1x1xf32, #tpu.memory_space<vmem>>, %arg21: memref<400x16xbf16, #tpu.memory_space<vmem>>, %arg22: memref<144x32xbf16, #tpu.memory_space<vmem>>, %arg23: memref<80x64xbf16, #tpu.memory_space<vmem>>) attributes {dimension_semantics = [#tpu.dimension_semantics<parallel>], iteration_bounds = array<i64: 2>, scalar_prefetch = 0 : i64, scratch_operands = 3 : i64, tpu.core_type = #tpu.core_type<tc>, window_params = [{transform_indices = @transform_0, window_bounds = array<i64: 256, 32>}, {pipeline_mode = #tpu.pipeline_mode<synchronous>, transform_indices = @transform_1, window_bounds = array<i64: 32, 16>}, {pipeline_mode = #tpu.pipeline_mode<synchronous>, transform_indices = @transform_2, window_bounds = array<i64: 3, 16>}, {pipeline_mode = #tpu.pipeline_mode<synchronous>, transform_indices = @transform_3, window_bounds = array<i64: 384, 256>}, {pipeline_mode = #tpu.pipeline_mode<synchronous>, transform_indices = @transform_4, window_bounds = array<i64: 256, 32>}, {pipeline_mode = #tpu.pipeline_mode<synchronous>, transform_indices = @transform_5, window_bounds = array<i64: 3, 32>}, {pipeline_mode = #tpu.pipeline_mode<synchronous>, transform_indices = @transform_6, window_bounds = array<i64: 96, 1>}, {pipeline_mode = #tpu.pipeline_mode<synchronous>, transform_indices = @transform_7, window_bounds = array<i64: 128, 96>}, {pipeline_mode = #tpu.pipeline_mode<synchronous>, transform_indices = @transform_8, window_bounds = array<i64: 512, 64>}, {pipeline_mode = #tpu.pipeline_mode<synchronous>, transform_indices = @transform_9, window_bounds = array<i64: 3, 64>}, {pipeline_mode = #tpu.pipeline_mode<synchronous>, transform_indices = @transform_10, window_bounds = array<i64: 32, 1>}, {pipeline_mode = #tpu.pipeline_mode<synchronous>, transform_indices = @transform_11, window_bounds = array<i64: 64, 32>}, {pipeline_mode = #tpu.pipeline_mode<synchronous>, transform_indices = @transform_12, window_bounds = array<i64: 1024, 128>}, {pipeline_mode = #tpu.pipeline_mode<synchronous>, transform_indices = @transform_13, window_bounds = array<i64: 3, 128>}, {pipeline_mode = #tpu.pipeline_mode<synchronous>, transform_indices = @transform_14, window_bounds = array<i64: 16, 1>}, {pipeline_mode = #tpu.pipeline_mode<synchronous>, transform_indices = @transform_15, window_bounds = array<i64: 128, 64>}, {pipeline_mode = #tpu.pipeline_mode<synchronous>, transform_indices = @transform_16, window_bounds = array<i64: 2, 64>}, {pipeline_mode = #tpu.pipeline_mode<synchronous>, transform_indices = @transform_17, window_bounds = array<i64: 1, 64>}, {pipeline_mode = #tpu.pipeline_mode<synchronous>, transform_indices = @transform_18, window_bounds = array<i64: 1, 2>}, {transform_indices = @transform_19, window_bounds = array<i64: 1, 1, 1>}]} {
    %c0 = arith.constant 0 : index
    %c0_0 = arith.constant 0 : index
    %0 = vector.load %arg1[%c0, %c0_0] : memref<256x32xbf16, #tpu.memory_space<vmem>>, vector<256x32xbf16>
    %c0_1 = arith.constant 0 : index
    %c0_2 = arith.constant 0 : index
    %1 = vector.load %arg2[%c0_1, %c0_2] : memref<32x16xbf16, #tpu.memory_space<vmem>>, vector<32x16xbf16>
    %cst = arith.constant dense<0.000000e+00> : vector<256x16xf32>
    %2 = tpu.matmul %0, %1, %cst {dimension_numbers = #tpu.dot_dimension_numbers<[1], [0], [0], [1], [0, 0, 1, 1], [], []>} : vector<256x32xbf16>, vector<32x16xbf16>, vector<256x16xf32> -> vector<256x16xf32>
    %3 = vector.shape_cast %2 : vector<256x16xf32> to vector<1x256x16xf32>
    %cst_3 = arith.constant dense<0.000000e+00> : vector<1x16xf32>
    %4 = vector.multi_reduction <add>, %3, %cst_3 [1] : vector<1x256x16xf32> to vector<1x16xf32>
    %5 = vector.shape_cast %4 : vector<1x16xf32> to vector<1x1x16xf32>
    %cst_4 = arith.constant 3.906250e-03 : f32
    %6 = vector.broadcast %cst_4 : f32 to vector<1x1x16xf32>
    %7 = arith.mulf %5, %6 : vector<1x1x16xf32>
    %8 = vector.broadcast %7 : vector<1x1x16xf32> to vector<1x256x16xf32>
    %9 = arith.subf %3, %8 : vector<1x256x16xf32>
    %10 = arith.mulf %9, %9 : vector<1x256x16xf32>
    %cst_5 = arith.constant dense<0.000000e+00> : vector<1x16xf32>
    %11 = vector.multi_reduction <add>, %10, %cst_5 [1] : vector<1x256x16xf32> to vector<1x16xf32>
    %12 = vector.shape_cast %11 : vector<1x16xf32> to vector<1x1x16xf32>
    %cst_6 = arith.constant 3.906250e-03 : f32
    %13 = vector.broadcast %cst_6 : f32 to vector<1x1x16xf32>
    %14 = arith.mulf %12, %13 : vector<1x1x16xf32>
    %15 = vector.broadcast %7 : vector<1x1x16xf32> to vector<1x256x16xf32>
    %16 = arith.subf %3, %15 : vector<1x256x16xf32>
    %cst_7 = arith.constant 9.99999974E-6 : f32
    %17 = vector.broadcast %cst_7 : f32 to vector<1x1x16xf32>
    %18 = arith.addf %14, %17 : vector<1x1x16xf32>
    %19 = math.rsqrt %18 : vector<1x1x16xf32>
    %20 = vector.broadcast %19 : vector<1x1x16xf32> to vector<1x256x16xf32>
    %21 = arith.mulf %16, %20 : vector<1x256x16xf32>
    %c0_8 = arith.constant 0 : index
    %c0_9 = arith.constant 0 : index
    %22 = vector.load %arg3[%c0_8, %c0_9] : memref<3x16xf32, #tpu.memory_space<vmem>>, vector<1x16xf32>
    %23 = vector.shape_cast %22 : vector<1x16xf32> to vector<1x1x16xf32>
    %24 = vector.broadcast %23 : vector<1x1x16xf32> to vector<1x256x16xf32>
    %25 = arith.mulf %21, %24 : vector<1x256x16xf32>
    %c1 = arith.constant 1 : index
    %c0_10 = arith.constant 0 : index
    %26 = vector.load %arg3[%c1, %c0_10] : memref<3x16xf32, #tpu.memory_space<vmem>>, vector<1x16xf32>
    %27 = vector.shape_cast %26 : vector<1x16xf32> to vector<1x1x16xf32>
    %28 = vector.broadcast %27 : vector<1x1x16xf32> to vector<1x256x16xf32>
    %29 = arith.addf %25, %28 : vector<1x256x16xf32>
    %cst_11 = arith.constant 0.000000e+00 : f32
    %30 = vector.broadcast %cst_11 : f32 to vector<1x256x16xf32>
    %31 = arith.cmpf oge, %29, %30 : vector<1x256x16xf32>
    %c2 = arith.constant 2 : index
    %c0_12 = arith.constant 0 : index
    %32 = vector.load %arg3[%c2, %c0_12] : memref<3x16xf32, #tpu.memory_space<vmem>>, vector<1x16xf32>
    %33 = vector.shape_cast %32 : vector<1x16xf32> to vector<1x1x16xf32>
    %34 = vector.broadcast %33 : vector<1x1x16xf32> to vector<1x256x16xf32>
    %35 = arith.mulf %34, %29 : vector<1x256x16xf32>
    %36 = arith.select %31, %29, %35 : vector<1x256x16xi1>, vector<1x256x16xf32>
    %cst_13 = arith.constant 0.000000e+00 : bf16
    %37 = vector.broadcast %cst_13 : bf16 to vector<16x16xbf16>
    %c384 = arith.constant 384 : index
    %c0_14 = arith.constant 0 : index
    %38 = vector.load %arg21[%c384, %c0_14] : memref<400x16xbf16, #tpu.memory_space<vmem>>, vector<16x16xbf16>
    tpu.vector_store %arg21[%c384, %c0_14], %37 {strides = array<i32>} : memref<400x16xbf16, #tpu.memory_space<vmem>>, vector<16x16xbf16>,
    %39 = arith.truncf %36 : vector<1x256x16xf32> to vector<1x256x16xbf16>
    %c0_15 = arith.constant 0 : index
    %c0_16 = arith.constant 0 : index
    %40 = vector.load %arg4[%c0_15, %c0_16] : memref<384x256xbf16, #tpu.memory_space<vmem>>, vector<384x256xbf16>
    %41 = vector.shape_cast %39 : vector<1x256x16xbf16> to vector<256x16xbf16>
    %cst_17 = arith.constant dense<0.000000e+00> : vector<384x16xf32>
    %42 = tpu.matmul %40, %41, %cst_17 {dimension_numbers = #tpu.dot_dimension_numbers<[1], [0], [0], [1], [0, 0, 1, 1], [], []>} : vector<384x256xbf16>, vector<256x16xbf16>, vector<384x16xf32> -> vector<384x16xf32>
    %43 = arith.truncf %42 : vector<384x16xf32> to vector<384x16xbf16>
    %c0_18 = arith.constant 0 : index
    %c0_19 = arith.constant 0 : index
    %44 = vector.load %arg21[%c0_18, %c0_19] : memref<400x16xbf16, #tpu.memory_space<vmem>>, vector<384x16xbf16>
    tpu.vector_store %arg21[%c0_18, %c0_19], %43 {strides = array<i32>} : memref<400x16xbf16, #tpu.memory_space<vmem>>, vector<384x16xbf16>,
    %c0_20 = arith.constant 0 : index
    %c0_21 = arith.constant 0 : index
    %45 = vector.load %arg21[%c0_20, %c0_21] : memref<400x16xbf16, #tpu.memory_space<vmem>>, vector<96x16xbf16>
    %c1_22 = arith.constant 1 : index
    %c0_23 = arith.constant 0 : index
    %46 = vector.load %arg21[%c1_22, %c0_23] : memref<400x16xbf16, #tpu.memory_space<vmem>>, vector<96x16xbf16>
    %c9 = arith.constant 9 : index
    %c0_24 = arith.constant 0 : index
    %47 = vector.load %arg21[%c9, %c0_24] : memref<400x16xbf16, #tpu.memory_space<vmem>>, vector<96x16xbf16>
    %c10 = arith.constant 10 : index
    %c0_25 = arith.constant 0 : index
    %48 = vector.load %arg21[%c10, %c0_25] : memref<400x16xbf16, #tpu.memory_space<vmem>>, vector<96x16xbf16>
    %c96 = arith.constant 96 : index
    %c0_26 = arith.constant 0 : index
    %49 = vector.load %arg21[%c96, %c0_26] : memref<400x16xbf16, #tpu.memory_space<vmem>>, vector<96x16xbf16>
    %c97 = arith.constant 97 : index
    %c0_27 = arith.constant 0 : index
    %50 = vector.load %arg21[%c97, %c0_27] : memref<400x16xbf16, #tpu.memory_space<vmem>>, vector<96x16xbf16>
    %c105 = arith.constant 105 : index
    %c0_28 = arith.constant 0 : index
    %51 = vector.load %arg21[%c105, %c0_28] : memref<400x16xbf16, #tpu.memory_space<vmem>>, vector<96x16xbf16>
    %c106 = arith.constant 106 : index
    %c0_29 = arith.constant 0 : index
    %52 = vector.load %arg21[%c106, %c0_29] : memref<400x16xbf16, #tpu.memory_space<vmem>>, vector<96x16xbf16>
    %c192 = arith.constant 192 : index
    %c0_30 = arith.constant 0 : index
    %53 = vector.load %arg21[%c192, %c0_30] : memref<400x16xbf16, #tpu.memory_space<vmem>>, vector<96x16xbf16>
    %c193 = arith.constant 193 : index
    %c0_31 = arith.constant 0 : index
    %54 = vector.load %arg21[%c193, %c0_31] : memref<400x16xbf16, #tpu.memory_space<vmem>>, vector<96x16xbf16>
    %c201 = arith.constant 201 : index
    %c0_32 = arith.constant 0 : index
    %55 = vector.load %arg21[%c201, %c0_32] : memref<400x16xbf16, #tpu.memory_space<vmem>>, vector<96x16xbf16>
    %c202 = arith.constant 202 : index
    %c0_33 = arith.constant 0 : index
    %56 = vector.load %arg21[%c202, %c0_33] : memref<400x16xbf16, #tpu.memory_space<vmem>>, vector<96x16xbf16>
    %c288 = arith.constant 288 : index
    %c0_34 = arith.constant 0 : index
    %57 = vector.load %arg21[%c288, %c0_34] : memref<400x16xbf16, #tpu.memory_space<vmem>>, vector<96x16xbf16>
    %c289 = arith.constant 289 : index
    %c0_35 = arith.constant 0 : index
    %58 = vector.load %arg21[%c289, %c0_35] : memref<400x16xbf16, #tpu.memory_space<vmem>>, vector<96x16xbf16>
    %c297 = arith.constant 297 : index
    %c0_36 = arith.constant 0 : index
    %59 = vector.load %arg21[%c297, %c0_36] : memref<400x16xbf16, #tpu.memory_space<vmem>>, vector<96x16xbf16>
    %c298 = arith.constant 298 : index
    %c0_37 = arith.constant 0 : index
    %60 = vector.load %arg21[%c298, %c0_37] : memref<400x16xbf16, #tpu.memory_space<vmem>>, vector<96x16xbf16>
    %61 = tpu.concatenate %45, %46, %47, %48, %49, %50, %51, %52, %53, %54, %55, %56, %57, %58, %59, %60 in 1 : vector<96x16xbf16>, vector<96x16xbf16>, vector<96x16xbf16>, vector<96x16xbf16>, vector<96x16xbf16>, vector<96x16xbf16>, vector<96x16xbf16>, vector<96x16xbf16>, vector<96x16xbf16>, vector<96x16xbf16>, vector<96x16xbf16>, vector<96x16xbf16>, vector<96x16xbf16>, vector<96x16xbf16>, vector<96x16xbf16>, vector<96x16xbf16> -> vector<96x256xbf16>
    %c0_38 = arith.constant 0 : index
    %c0_39 = arith.constant 0 : index
    %62 = vector.load %arg5[%c0_38, %c0_39] : memref<256x32xbf16, #tpu.memory_space<vmem>>, vector<256x32xbf16>
    %cst_40 = arith.constant dense<0.000000e+00> : vector<96x32xf32>
    %63 = tpu.matmul %61, %62, %cst_40 {dimension_numbers = #tpu.dot_dimension_numbers<[1], [0], [0], [1], [0, 0, 1, 1], [], []>} : vector<96x256xbf16>, vector<256x32xbf16>, vector<96x32xf32> -> vector<96x32xf32>
    %64 = vector.shape_cast %63 : vector<96x32xf32> to vector<1x96x32xf32>
    %c0_41 = arith.constant 0 : index
    %c0_42 = arith.constant 0 : index
    %65 = vector.load %arg7[%c0_41, %c0_42] : memref<96x1xf32, #tpu.memory_space<vmem>>, vector<96x1xf32>
    %cst_43 = arith.constant 0.000000e+00 : f32
    %66 = vector.broadcast %cst_43 : f32 to vector<96x1xf32>
    %67 = arith.cmpf ogt, %65, %66 : vector<96x1xf32>
    %cst_44 = arith.constant 0.000000e+00 : f32
    %68 = vector.shape_cast %67 : vector<96x1xi1> to vector<1x96x1xi1>
    %69 = vector.broadcast %68 : vector<1x96x1xi1> to vector<1x96x32xi1>
    %70 = vector.broadcast %cst_44 : f32 to vector<1x96x32xf32>
    %71 = arith.select %69, %64, %70 : vector<1x96x32xi1>, vector<1x96x32xf32>
    %cst_45 = arith.constant dense<0.000000e+00> : vector<1x32xf32>
    %72 = vector.multi_reduction <add>, %71, %cst_45 [1] : vector<1x96x32xf32> to vector<1x32xf32>
    %73 = vector.shape_cast %72 : vector<1x32xf32> to vector<1x1x32xf32>
    %cst_46 = arith.constant 1.562500e-02 : f32
    %74 = vector.broadcast %cst_46 : f32 to vector<1x1x32xf32>
    %75 = arith.mulf %73, %74 : vector<1x1x32xf32>
    %cst_47 = arith.constant 0.000000e+00 : f32
    %76 = vector.broadcast %cst_47 : f32 to vector<96x1xf32>
    %77 = arith.cmpf ogt, %65, %76 : vector<96x1xf32>
    %78 = vector.broadcast %75 : vector<1x1x32xf32> to vector<1x96x32xf32>
    %79 = arith.subf %64, %78 : vector<1x96x32xf32>
    %cst_48 = arith.constant 0.000000e+00 : f32
    %80 = vector.shape_cast %77 : vector<96x1xi1> to vector<1x96x1xi1>
    %81 = vector.broadcast %80 : vector<1x96x1xi1> to vector<1x96x32xi1>
    %82 = vector.broadcast %cst_48 : f32 to vector<1x96x32xf32>
    %83 = arith.select %81, %79, %82 : vector<1x96x32xi1>, vector<1x96x32xf32>
    %84 = arith.mulf %83, %83 : vector<1x96x32xf32>
    %cst_49 = arith.constant dense<0.000000e+00> : vector<1x32xf32>
    %85 = vector.multi_reduction <add>, %84, %cst_49 [1] : vector<1x96x32xf32> to vector<1x32xf32>
    %86 = vector.shape_cast %85 : vector<1x32xf32> to vector<1x1x32xf32>
    %cst_50 = arith.constant 1.562500e-02 : f32
    %87 = vector.broadcast %cst_50 : f32 to vector<1x1x32xf32>
    %88 = arith.mulf %86, %87 : vector<1x1x32xf32>
    %89 = vector.broadcast %75 : vector<1x1x32xf32> to vector<1x96x32xf32>
    %90 = arith.subf %64, %89 : vector<1x96x32xf32>
    %cst_51 = arith.constant 9.99999974E-6 : f32
    %91 = vector.broadcast %cst_51 : f32 to vector<1x1x32xf32>
    %92 = arith.addf %88, %91 : vector<1x1x32xf32>
    %93 = math.rsqrt %92 : vector<1x1x32xf32>
    %94 = vector.broadcast %93 : vector<1x1x32xf32> to vector<1x96x32xf32>
    %95 = arith.mulf %90, %94 : vector<1x96x32xf32>
    %c0_52 = arith.constant 0 : index
    %c0_53 = arith.constant 0 : index
    %96 = vector.load %arg6[%c0_52, %c0_53] : memref<3x32xf32, #tpu.memory_space<vmem>>, vector<1x32xf32>
    %97 = vector.shape_cast %96 : vector<1x32xf32> to vector<1x1x32xf32>
    %98 = vector.broadcast %97 : vector<1x1x32xf32> to vector<1x96x32xf32>
    %99 = arith.mulf %95, %98 : vector<1x96x32xf32>
    %c1_54 = arith.constant 1 : index
    %c0_55 = arith.constant 0 : index
    %100 = vector.load %arg6[%c1_54, %c0_55] : memref<3x32xf32, #tpu.memory_space<vmem>>, vector<1x32xf32>
    %101 = vector.shape_cast %100 : vector<1x32xf32> to vector<1x1x32xf32>
    %102 = vector.broadcast %101 : vector<1x1x32xf32> to vector<1x96x32xf32>
    %103 = arith.addf %99, %102 : vector<1x96x32xf32>
    %cst_56 = arith.constant 0.000000e+00 : f32
    %104 = vector.broadcast %cst_56 : f32 to vector<1x96x32xf32>
    %105 = arith.cmpf oge, %103, %104 : vector<1x96x32xf32>
    %c2_57 = arith.constant 2 : index
    %c0_58 = arith.constant 0 : index
    %106 = vector.load %arg6[%c2_57, %c0_58] : memref<3x32xf32, #tpu.memory_space<vmem>>, vector<1x32xf32>
    %107 = vector.shape_cast %106 : vector<1x32xf32> to vector<1x1x32xf32>
    %108 = vector.broadcast %107 : vector<1x1x32xf32> to vector<1x96x32xf32>
    %109 = arith.mulf %108, %103 : vector<1x96x32xf32>
    %110 = arith.select %105, %103, %109 : vector<1x96x32xi1>, vector<1x96x32xf32>
    %cst_59 = arith.constant 0.000000e+00 : bf16
    %111 = vector.broadcast %cst_59 : bf16 to vector<16x32xbf16>
    %c128 = arith.constant 128 : index
    %c0_60 = arith.constant 0 : index
    %112 = vector.load %arg22[%c128, %c0_60] : memref<144x32xbf16, #tpu.memory_space<vmem>>, vector<16x32xbf16>
    tpu.vector_store %arg22[%c128, %c0_60], %111 {strides = array<i32>} : memref<144x32xbf16, #tpu.memory_space<vmem>>, vector<16x32xbf16>,
    %113 = arith.truncf %110 : vector<1x96x32xf32> to vector<1x96x32xbf16>
    %c0_61 = arith.constant 0 : index
    %c0_62 = arith.constant 0 : index
    %114 = vector.load %arg8[%c0_61, %c0_62] : memref<128x96xbf16, #tpu.memory_space<vmem>>, vector<128x96xbf16>
    %115 = vector.shape_cast %113 : vector<1x96x32xbf16> to vector<96x32xbf16>
    %cst_63 = arith.constant dense<0.000000e+00> : vector<128x32xf32>
    %116 = tpu.matmul %114, %115, %cst_63 {dimension_numbers = #tpu.dot_dimension_numbers<[1], [0], [0], [1], [0, 0, 1, 1], [], []>} : vector<128x96xbf16>, vector<96x32xbf16>, vector<128x32xf32> -> vector<128x32xf32>
    %117 = arith.truncf %116 : vector<128x32xf32> to vector<128x32xbf16>
    %c0_64 = arith.constant 0 : index
    %c0_65 = arith.constant 0 : index
    %118 = vector.load %arg22[%c0_64, %c0_65] : memref<144x32xbf16, #tpu.memory_space<vmem>>, vector<128x32xbf16>
    tpu.vector_store %arg22[%c0_64, %c0_65], %117 {strides = array<i32>} : memref<144x32xbf16, #tpu.memory_space<vmem>>, vector<128x32xbf16>,
    %c0_66 = arith.constant 0 : index
    %c0_67 = arith.constant 0 : index
    %119 = vector.load %arg22[%c0_66, %c0_67] : memref<144x32xbf16, #tpu.memory_space<vmem>>, vector<32x32xbf16>
    %c1_68 = arith.constant 1 : index
    %c0_69 = arith.constant 0 : index
    %120 = vector.load %arg22[%c1_68, %c0_69] : memref<144x32xbf16, #tpu.memory_space<vmem>>, vector<32x32xbf16>
    %c5 = arith.constant 5 : index
    %c0_70 = arith.constant 0 : index
    %121 = vector.load %arg22[%c5, %c0_70] : memref<144x32xbf16, #tpu.memory_space<vmem>>, vector<32x32xbf16>
    %c6 = arith.constant 6 : index
    %c0_71 = arith.constant 0 : index
    %122 = vector.load %arg22[%c6, %c0_71] : memref<144x32xbf16, #tpu.memory_space<vmem>>, vector<32x32xbf16>
    %c32 = arith.constant 32 : index
    %c0_72 = arith.constant 0 : index
    %123 = vector.load %arg22[%c32, %c0_72] : memref<144x32xbf16, #tpu.memory_space<vmem>>, vector<32x32xbf16>
    %c33 = arith.constant 33 : index
    %c0_73 = arith.constant 0 : index
    %124 = vector.load %arg22[%c33, %c0_73] : memref<144x32xbf16, #tpu.memory_space<vmem>>, vector<32x32xbf16>
    %c37 = arith.constant 37 : index
    %c0_74 = arith.constant 0 : index
    %125 = vector.load %arg22[%c37, %c0_74] : memref<144x32xbf16, #tpu.memory_space<vmem>>, vector<32x32xbf16>
    %c38 = arith.constant 38 : index
    %c0_75 = arith.constant 0 : index
    %126 = vector.load %arg22[%c38, %c0_75] : memref<144x32xbf16, #tpu.memory_space<vmem>>, vector<32x32xbf16>
    %c64 = arith.constant 64 : index
    %c0_76 = arith.constant 0 : index
    %127 = vector.load %arg22[%c64, %c0_76] : memref<144x32xbf16, #tpu.memory_space<vmem>>, vector<32x32xbf16>
    %c65 = arith.constant 65 : index
    %c0_77 = arith.constant 0 : index
    %128 = vector.load %arg22[%c65, %c0_77] : memref<144x32xbf16, #tpu.memory_space<vmem>>, vector<32x32xbf16>
    %c69 = arith.constant 69 : index
    %c0_78 = arith.constant 0 : index
    %129 = vector.load %arg22[%c69, %c0_78] : memref<144x32xbf16, #tpu.memory_space<vmem>>, vector<32x32xbf16>
    %c70 = arith.constant 70 : index
    %c0_79 = arith.constant 0 : index
    %130 = vector.load %arg22[%c70, %c0_79] : memref<144x32xbf16, #tpu.memory_space<vmem>>, vector<32x32xbf16>
    %c96_80 = arith.constant 96 : index
    %c0_81 = arith.constant 0 : index
    %131 = vector.load %arg22[%c96_80, %c0_81] : memref<144x32xbf16, #tpu.memory_space<vmem>>, vector<32x32xbf16>
    %c97_82 = arith.constant 97 : index
    %c0_83 = arith.constant 0 : index
    %132 = vector.load %arg22[%c97_82, %c0_83] : memref<144x32xbf16, #tpu.memory_space<vmem>>, vector<32x32xbf16>
    %c101 = arith.constant 101 : index
    %c0_84 = arith.constant 0 : index
    %133 = vector.load %arg22[%c101, %c0_84] : memref<144x32xbf16, #tpu.memory_space<vmem>>, vector<32x32xbf16>
    %c102 = arith.constant 102 : index
    %c0_85 = arith.constant 0 : index
    %134 = vector.load %arg22[%c102, %c0_85] : memref<144x32xbf16, #tpu.memory_space<vmem>>, vector<32x32xbf16>
    %135 = tpu.concatenate %119, %120, %121, %122, %123, %124, %125, %126, %127, %128, %129, %130, %131, %132, %133, %134 in 1 : vector<32x32xbf16>, vector<32x32xbf16>, vector<32x32xbf16>, vector<32x32xbf16>, vector<32x32xbf16>, vector<32x32xbf16>, vector<32x32xbf16>, vector<32x32xbf16>, vector<32x32xbf16>, vector<32x32xbf16>, vector<32x32xbf16>, vector<32x32xbf16>, vector<32x32xbf16>, vector<32x32xbf16>, vector<32x32xbf16>, vector<32x32xbf16> -> vector<32x512xbf16>
    %c0_86 = arith.constant 0 : index
    %c0_87 = arith.constant 0 : index
    %136 = vector.load %arg9[%c0_86, %c0_87] : memref<512x64xbf16, #tpu.memory_space<vmem>>, vector<512x64xbf16>
    %cst_88 = arith.constant dense<0.000000e+00> : vector<32x64xf32>
    %137 = tpu.matmul %135, %136, %cst_88 {dimension_numbers = #tpu.dot_dimension_numbers<[1], [0], [0], [1], [0, 0, 1, 1], [], []>} : vector<32x512xbf16>, vector<512x64xbf16>, vector<32x64xf32> -> vector<32x64xf32>
    %138 = vector.shape_cast %137 : vector<32x64xf32> to vector<1x32x64xf32>
    %c0_89 = arith.constant 0 : index
    %c0_90 = arith.constant 0 : index
    %139 = vector.load %arg11[%c0_89, %c0_90] : memref<32x1xf32, #tpu.memory_space<vmem>>, vector<32x1xf32>
    %cst_91 = arith.constant 0.000000e+00 : f32
    %140 = vector.broadcast %cst_91 : f32 to vector<32x1xf32>
    %141 = arith.cmpf ogt, %139, %140 : vector<32x1xf32>
    %cst_92 = arith.constant 0.000000e+00 : f32
    %142 = vector.shape_cast %141 : vector<32x1xi1> to vector<1x32x1xi1>
    %143 = vector.broadcast %142 : vector<1x32x1xi1> to vector<1x32x64xi1>
    %144 = vector.broadcast %cst_92 : f32 to vector<1x32x64xf32>
    %145 = arith.select %143, %138, %144 : vector<1x32x64xi1>, vector<1x32x64xf32>
    %cst_93 = arith.constant dense<0.000000e+00> : vector<1x64xf32>
    %146 = vector.multi_reduction <add>, %145, %cst_93 [1] : vector<1x32x64xf32> to vector<1x64xf32>
    %147 = vector.shape_cast %146 : vector<1x64xf32> to vector<1x1x64xf32>
    %cst_94 = arith.constant 6.250000e-02 : f32
    %148 = vector.broadcast %cst_94 : f32 to vector<1x1x64xf32>
    %149 = arith.mulf %147, %148 : vector<1x1x64xf32>
    %cst_95 = arith.constant 0.000000e+00 : f32
    %150 = vector.broadcast %cst_95 : f32 to vector<32x1xf32>
    %151 = arith.cmpf ogt, %139, %150 : vector<32x1xf32>
    %152 = vector.broadcast %149 : vector<1x1x64xf32> to vector<1x32x64xf32>
    %153 = arith.subf %138, %152 : vector<1x32x64xf32>
    %cst_96 = arith.constant 0.000000e+00 : f32
    %154 = vector.shape_cast %151 : vector<32x1xi1> to vector<1x32x1xi1>
    %155 = vector.broadcast %154 : vector<1x32x1xi1> to vector<1x32x64xi1>
    %156 = vector.broadcast %cst_96 : f32 to vector<1x32x64xf32>
    %157 = arith.select %155, %153, %156 : vector<1x32x64xi1>, vector<1x32x64xf32>
    %158 = arith.mulf %157, %157 : vector<1x32x64xf32>
    %cst_97 = arith.constant dense<0.000000e+00> : vector<1x64xf32>
    %159 = vector.multi_reduction <add>, %158, %cst_97 [1] : vector<1x32x64xf32> to vector<1x64xf32>
    %160 = vector.shape_cast %159 : vector<1x64xf32> to vector<1x1x64xf32>
    %cst_98 = arith.constant 6.250000e-02 : f32
    %161 = vector.broadcast %cst_98 : f32 to vector<1x1x64xf32>
    %162 = arith.mulf %160, %161 : vector<1x1x64xf32>
    %163 = vector.broadcast %149 : vector<1x1x64xf32> to vector<1x32x64xf32>
    %164 = arith.subf %138, %163 : vector<1x32x64xf32>
    %cst_99 = arith.constant 9.99999974E-6 : f32
    %165 = vector.broadcast %cst_99 : f32 to vector<1x1x64xf32>
    %166 = arith.addf %162, %165 : vector<1x1x64xf32>
    %167 = math.rsqrt %166 : vector<1x1x64xf32>
    %168 = vector.broadcast %167 : vector<1x1x64xf32> to vector<1x32x64xf32>
    %169 = arith.mulf %164, %168 : vector<1x32x64xf32>
    %c0_100 = arith.constant 0 : index
    %c0_101 = arith.constant 0 : index
    %170 = vector.load %arg10[%c0_100, %c0_101] : memref<3x64xf32, #tpu.memory_space<vmem>>, vector<1x64xf32>
    %171 = vector.shape_cast %170 : vector<1x64xf32> to vector<1x1x64xf32>
    %172 = vector.broadcast %171 : vector<1x1x64xf32> to vector<1x32x64xf32>
    %173 = arith.mulf %169, %172 : vector<1x32x64xf32>
    %c1_102 = arith.constant 1 : index
    %c0_103 = arith.constant 0 : index
    %174 = vector.load %arg10[%c1_102, %c0_103] : memref<3x64xf32, #tpu.memory_space<vmem>>, vector<1x64xf32>
    %175 = vector.shape_cast %174 : vector<1x64xf32> to vector<1x1x64xf32>
    %176 = vector.broadcast %175 : vector<1x1x64xf32> to vector<1x32x64xf32>
    %177 = arith.addf %173, %176 : vector<1x32x64xf32>
    %cst_104 = arith.constant 0.000000e+00 : f32
    %178 = vector.broadcast %cst_104 : f32 to vector<1x32x64xf32>
    %179 = arith.cmpf oge, %177, %178 : vector<1x32x64xf32>
    %c2_105 = arith.constant 2 : index
    %c0_106 = arith.constant 0 : index
    %180 = vector.load %arg10[%c2_105, %c0_106] : memref<3x64xf32, #tpu.memory_space<vmem>>, vector<1x64xf32>
    %181 = vector.shape_cast %180 : vector<1x64xf32> to vector<1x1x64xf32>
    %182 = vector.broadcast %181 : vector<1x1x64xf32> to vector<1x32x64xf32>
    %183 = arith.mulf %182, %177 : vector<1x32x64xf32>
    %184 = arith.select %179, %177, %183 : vector<1x32x64xi1>, vector<1x32x64xf32>
    %cst_107 = arith.constant 0.000000e+00 : bf16
    %185 = vector.broadcast %cst_107 : bf16 to vector<16x64xbf16>
    %c64_108 = arith.constant 64 : index
    %c0_109 = arith.constant 0 : index
    %186 = vector.load %arg23[%c64_108, %c0_109] : memref<80x64xbf16, #tpu.memory_space<vmem>>, vector<16x64xbf16>
    tpu.vector_store %arg23[%c64_108, %c0_109], %185 {strides = array<i32>} : memref<80x64xbf16, #tpu.memory_space<vmem>>, vector<16x64xbf16>,
    %187 = arith.truncf %184 : vector<1x32x64xf32> to vector<1x32x64xbf16>
    %c0_110 = arith.constant 0 : index
    %c0_111 = arith.constant 0 : index
    %188 = vector.load %arg12[%c0_110, %c0_111] : memref<64x32xbf16, #tpu.memory_space<vmem>>, vector<64x32xbf16>
    %189 = vector.shape_cast %187 : vector<1x32x64xbf16> to vector<32x64xbf16>
    %cst_112 = arith.constant dense<0.000000e+00> : vector<64x64xf32>
    %190 = tpu.matmul %188, %189, %cst_112 {dimension_numbers = #tpu.dot_dimension_numbers<[1], [0], [0], [1], [0, 0, 1, 1], [], []>} : vector<64x32xbf16>, vector<32x64xbf16>, vector<64x64xf32> -> vector<64x64xf32>
    %191 = arith.truncf %190 : vector<64x64xf32> to vector<64x64xbf16>
    %c0_113 = arith.constant 0 : index
    %c0_114 = arith.constant 0 : index
    %192 = vector.load %arg23[%c0_113, %c0_114] : memref<80x64xbf16, #tpu.memory_space<vmem>>, vector<64x64xbf16>
    tpu.vector_store %arg23[%c0_113, %c0_114], %191 {strides = array<i32>} : memref<80x64xbf16, #tpu.memory_space<vmem>>, vector<64x64xbf16>,
    %c0_115 = arith.constant 0 : index
    %c0_116 = arith.constant 0 : index
    %193 = vector.load %arg23[%c0_115, %c0_116] : memref<80x64xbf16, #tpu.memory_space<vmem>>, vector<16x64xbf16>
    %c1_117 = arith.constant 1 : index
    %c0_118 = arith.constant 0 : index
    %194 = vector.load %arg23[%c1_117, %c0_118] : memref<80x64xbf16, #tpu.memory_space<vmem>>, vector<16x64xbf16>
    %c3 = arith.constant 3 : index
    %c0_119 = arith.constant 0 : index
    %195 = vector.load %arg23[%c3, %c0_119] : memref<80x64xbf16, #tpu.memory_space<vmem>>, vector<16x64xbf16>
    %c4 = arith.constant 4 : index
    %c0_120 = arith.constant 0 : index
    %196 = vector.load %arg23[%c4, %c0_120] : memref<80x64xbf16, #tpu.memory_space<vmem>>, vector<16x64xbf16>
    %c16 = arith.constant 16 : index
    %c0_121 = arith.constant 0 : index
    %197 = vector.load %arg23[%c16, %c0_121] : memref<80x64xbf16, #tpu.memory_space<vmem>>, vector<16x64xbf16>
    %c17 = arith.constant 17 : index
    %c0_122 = arith.constant 0 : index
    %198 = vector.load %arg23[%c17, %c0_122] : memref<80x64xbf16, #tpu.memory_space<vmem>>, vector<16x64xbf16>
    %c19 = arith.constant 19 : index
    %c0_123 = arith.constant 0 : index
    %199 = vector.load %arg23[%c19, %c0_123] : memref<80x64xbf16, #tpu.memory_space<vmem>>, vector<16x64xbf16>
    %c20 = arith.constant 20 : index
    %c0_124 = arith.constant 0 : index
    %200 = vector.load %arg23[%c20, %c0_124] : memref<80x64xbf16, #tpu.memory_space<vmem>>, vector<16x64xbf16>
    %c32_125 = arith.constant 32 : index
    %c0_126 = arith.constant 0 : index
    %201 = vector.load %arg23[%c32_125, %c0_126] : memref<80x64xbf16, #tpu.memory_space<vmem>>, vector<16x64xbf16>
    %c33_127 = arith.constant 33 : index
    %c0_128 = arith.constant 0 : index
    %202 = vector.load %arg23[%c33_127, %c0_128] : memref<80x64xbf16, #tpu.memory_space<vmem>>, vector<16x64xbf16>
    %c35 = arith.constant 35 : index
    %c0_129 = arith.constant 0 : index
    %203 = vector.load %arg23[%c35, %c0_129] : memref<80x64xbf16, #tpu.memory_space<vmem>>, vector<16x64xbf16>
    %c36 = arith.constant 36 : index
    %c0_130 = arith.constant 0 : index
    %204 = vector.load %arg23[%c36, %c0_130] : memref<80x64xbf16, #tpu.memory_space<vmem>>, vector<16x64xbf16>
    %c48 = arith.constant 48 : index
    %c0_131 = arith.constant 0 : index
    %205 = vector.load %arg23[%c48, %c0_131] : memref<80x64xbf16, #tpu.memory_space<vmem>>, vector<16x64xbf16>
    %c49 = arith.constant 49 : index
    %c0_132 = arith.constant 0 : index
    %206 = vector.load %arg23[%c49, %c0_132] : memref<80x64xbf16, #tpu.memory_space<vmem>>, vector<16x64xbf16>
    %c51 = arith.constant 51 : index
    %c0_133 = arith.constant 0 : index
    %207 = vector.load %arg23[%c51, %c0_133] : memref<80x64xbf16, #tpu.memory_space<vmem>>, vector<16x64xbf16>
    %c52 = arith.constant 52 : index
    %c0_134 = arith.constant 0 : index
    %208 = vector.load %arg23[%c52, %c0_134] : memref<80x64xbf16, #tpu.memory_space<vmem>>, vector<16x64xbf16>
    %209 = tpu.concatenate %193, %194, %195, %196, %197, %198, %199, %200, %201, %202, %203, %204, %205, %206, %207, %208 in 1 : vector<16x64xbf16>, vector<16x64xbf16>, vector<16x64xbf16>, vector<16x64xbf16>, vector<16x64xbf16>, vector<16x64xbf16>, vector<16x64xbf16>, vector<16x64xbf16>, vector<16x64xbf16>, vector<16x64xbf16>, vector<16x64xbf16>, vector<16x64xbf16>, vector<16x64xbf16>, vector<16x64xbf16>, vector<16x64xbf16>, vector<16x64xbf16> -> vector<16x1024xbf16>
    %c0_135 = arith.constant 0 : index
    %c0_136 = arith.constant 0 : index
    %210 = vector.load %arg13[%c0_135, %c0_136] : memref<1024x128xbf16, #tpu.memory_space<vmem>>, vector<1024x128xbf16>
    %cst_137 = arith.constant dense<0.000000e+00> : vector<16x128xf32>
    %211 = tpu.matmul %209, %210, %cst_137 {dimension_numbers = #tpu.dot_dimension_numbers<[1], [0], [0], [1], [0, 0, 1, 1], [], []>} : vector<16x1024xbf16>, vector<1024x128xbf16>, vector<16x128xf32> -> vector<16x128xf32>
    %212 = vector.shape_cast %211 : vector<16x128xf32> to vector<1x16x128xf32>
    %c0_138 = arith.constant 0 : index
    %c0_139 = arith.constant 0 : index
    %213 = vector.load %arg15[%c0_138, %c0_139] : memref<16x1xf32, #tpu.memory_space<vmem>>, vector<16x1xf32>
    %cst_140 = arith.constant 0.000000e+00 : f32
    %214 = vector.broadcast %cst_140 : f32 to vector<16x1xf32>
    %215 = arith.cmpf ogt, %213, %214 : vector<16x1xf32>
    %cst_141 = arith.constant 0.000000e+00 : f32
    %216 = vector.shape_cast %215 : vector<16x1xi1> to vector<1x16x1xi1>
    %217 = vector.broadcast %216 : vector<1x16x1xi1> to vector<1x16x128xi1>
    %218 = vector.broadcast %cst_141 : f32 to vector<1x16x128xf32>
    %219 = arith.select %217, %212, %218 : vector<1x16x128xi1>, vector<1x16x128xf32>
    %cst_142 = arith.constant dense<0.000000e+00> : vector<1x128xf32>
    %220 = vector.multi_reduction <add>, %219, %cst_142 [1] : vector<1x16x128xf32> to vector<1x128xf32>
    %221 = vector.shape_cast %220 : vector<1x128xf32> to vector<1x1x128xf32>
    %cst_143 = arith.constant 2.500000e-01 : f32
    %222 = vector.broadcast %cst_143 : f32 to vector<1x1x128xf32>
    %223 = arith.mulf %221, %222 : vector<1x1x128xf32>
    %cst_144 = arith.constant 0.000000e+00 : f32
    %224 = vector.broadcast %cst_144 : f32 to vector<16x1xf32>
    %225 = arith.cmpf ogt, %213, %224 : vector<16x1xf32>
    %226 = vector.broadcast %223 : vector<1x1x128xf32> to vector<1x16x128xf32>
    %227 = arith.subf %212, %226 : vector<1x16x128xf32>
    %cst_145 = arith.constant 0.000000e+00 : f32
    %228 = vector.shape_cast %225 : vector<16x1xi1> to vector<1x16x1xi1>
    %229 = vector.broadcast %228 : vector<1x16x1xi1> to vector<1x16x128xi1>
    %230 = vector.broadcast %cst_145 : f32 to vector<1x16x128xf32>
    %231 = arith.select %229, %227, %230 : vector<1x16x128xi1>, vector<1x16x128xf32>
    %232 = arith.mulf %231, %231 : vector<1x16x128xf32>
    %cst_146 = arith.constant dense<0.000000e+00> : vector<1x128xf32>
    %233 = vector.multi_reduction <add>, %232, %cst_146 [1] : vector<1x16x128xf32> to vector<1x128xf32>
    %234 = vector.shape_cast %233 : vector<1x128xf32> to vector<1x1x128xf32>
    %cst_147 = arith.constant 2.500000e-01 : f32
    %235 = vector.broadcast %cst_147 : f32 to vector<1x1x128xf32>
    %236 = arith.mulf %234, %235 : vector<1x1x128xf32>
    %237 = vector.broadcast %223 : vector<1x1x128xf32> to vector<1x16x128xf32>
    %238 = arith.subf %212, %237 : vector<1x16x128xf32>
    %cst_148 = arith.constant 9.99999974E-6 : f32
    %239 = vector.broadcast %cst_148 : f32 to vector<1x1x128xf32>
    %240 = arith.addf %236, %239 : vector<1x1x128xf32>
    %241 = math.rsqrt %240 : vector<1x1x128xf32>
    %242 = vector.broadcast %241 : vector<1x1x128xf32> to vector<1x16x128xf32>
    %243 = arith.mulf %238, %242 : vector<1x16x128xf32>
    %c0_149 = arith.constant 0 : index
    %c0_150 = arith.constant 0 : index
    %244 = vector.load %arg14[%c0_149, %c0_150] : memref<3x128xf32, #tpu.memory_space<vmem>>, vector<1x128xf32>
    %245 = vector.shape_cast %244 : vector<1x128xf32> to vector<1x1x128xf32>
    %246 = vector.broadcast %245 : vector<1x1x128xf32> to vector<1x16x128xf32>
    %247 = arith.mulf %243, %246 : vector<1x16x128xf32>
    %c1_151 = arith.constant 1 : index
    %c0_152 = arith.constant 0 : index
    %248 = vector.load %arg14[%c1_151, %c0_152] : memref<3x128xf32, #tpu.memory_space<vmem>>, vector<1x128xf32>
    %249 = vector.shape_cast %248 : vector<1x128xf32> to vector<1x1x128xf32>
    %250 = vector.broadcast %249 : vector<1x1x128xf32> to vector<1x16x128xf32>
    %251 = arith.addf %247, %250 : vector<1x16x128xf32>
    %cst_153 = arith.constant 0.000000e+00 : f32
    %252 = vector.broadcast %cst_153 : f32 to vector<1x16x128xf32>
    %253 = arith.cmpf oge, %251, %252 : vector<1x16x128xf32>
    %c2_154 = arith.constant 2 : index
    %c0_155 = arith.constant 0 : index
    %254 = vector.load %arg14[%c2_154, %c0_155] : memref<3x128xf32, #tpu.memory_space<vmem>>, vector<1x128xf32>
    %255 = vector.shape_cast %254 : vector<1x128xf32> to vector<1x1x128xf32>
    %256 = vector.broadcast %255 : vector<1x1x128xf32> to vector<1x16x128xf32>
    %257 = arith.mulf %256, %251 : vector<1x16x128xf32>
    %258 = arith.select %253, %251, %257 : vector<1x16x128xi1>, vector<1x16x128xf32>
    %c0_156 = arith.constant 0 : index
    %c0_157 = arith.constant 0 : index
    %259 = vector.load %arg15[%c0_156, %c0_157] : memref<16x1xf32, #tpu.memory_space<vmem>>, vector<16x1xf32>
    %cst_158 = arith.constant 0.000000e+00 : f32
    %260 = vector.broadcast %cst_158 : f32 to vector<16x1xf32>
    %261 = arith.cmpf ogt, %259, %260 : vector<16x1xf32>
    %cst_159 = arith.constant -1.000000e+30 : f32
    %262 = vector.shape_cast %261 : vector<16x1xi1> to vector<1x16x1xi1>
    %263 = vector.broadcast %262 : vector<1x16x1xi1> to vector<1x16x128xi1>
    %264 = vector.broadcast %cst_159 : f32 to vector<1x16x128xf32>
    %265 = arith.select %263, %258, %264 : vector<1x16x128xi1>, vector<1x16x128xf32>
    %cst_160 = arith.constant dense<0xFF800000> : vector<1x128xf32>
    %266 = vector.multi_reduction <maximumf>, %265, %cst_160 [1] : vector<1x16x128xf32> to vector<1x128xf32>
    %267 = arith.truncf %266 : vector<1x128xf32> to vector<1x128xbf16>
    %c0_161 = arith.constant 0 : index
    %c0_162 = arith.constant 0 : index
    %268 = vector.load %arg16[%c0_161, %c0_162] : memref<128x64xbf16, #tpu.memory_space<vmem>>, vector<128x64xbf16>
    %cst_163 = arith.constant dense<0.000000e+00> : vector<1x64xf32>
    %269 = tpu.matmul %267, %268, %cst_163 {dimension_numbers = #tpu.dot_dimension_numbers<[1], [0], [0], [1], [0, 0, 1, 1], [], []>} : vector<1x128xbf16>, vector<128x64xbf16>, vector<1x64xf32> -> vector<1x64xf32>
    %c0_164 = arith.constant 0 : index
    %c0_165 = arith.constant 0 : index
    %270 = vector.load %arg17[%c0_164, %c0_165] : memref<2x64xf32, #tpu.memory_space<vmem>>, vector<1x64xf32>
    %271 = arith.addf %269, %270 : vector<1x64xf32>
    %cst_166 = arith.constant 0.000000e+00 : f32
    %272 = vector.broadcast %cst_166 : f32 to vector<1x64xf32>
    %273 = arith.cmpf oge, %271, %272 : vector<1x64xf32>
    %c1_167 = arith.constant 1 : index
    %c0_168 = arith.constant 0 : index
    %274 = vector.load %arg17[%c1_167, %c0_168] : memref<2x64xf32, #tpu.memory_space<vmem>>, vector<1x64xf32>
    %275 = arith.mulf %274, %271 : vector<1x64xf32>
    %276 = arith.select %273, %271, %275 : vector<1x64xi1>, vector<1x64xf32>
    %c0_169 = arith.constant 0 : index
    %c0_170 = arith.constant 0 : index
    %277 = vector.load %arg18[%c0_169, %c0_170] : memref<1x64xf32, #tpu.memory_space<vmem>>, vector<1x64xf32>
    %278 = arith.mulf %276, %277 : vector<1x64xf32>
    %cst_171 = arith.constant dense<0.000000e+00> : vector<1xf32>
    %279 = vector.multi_reduction <add>, %278, %cst_171 [1] : vector<1x64xf32> to vector<1xf32>
    %280 = vector.shape_cast %279 : vector<1xf32> to vector<1x1xf32>
    %c0_172 = arith.constant 0 : index
    %c0_173 = arith.constant 0 : index
    %281 = vector.load %arg19[%c0_172, %c0_173] : memref<1x2xf32, #tpu.memory_space<vmem>>, vector<1x1xf32>
    %282 = arith.addf %280, %281 : vector<1x1xf32>
    %c0_174 = arith.constant 0 : index
    %c1_175 = arith.constant 1 : index
    %283 = vector.load %arg19[%c0_174, %c1_175] : memref<1x2xf32, #tpu.memory_space<vmem>>, vector<1x1xf32>
    %284 = arith.mulf %283, %282 : vector<1x1xf32>
    %cst_176 = arith.constant 0.000000e+00 : f32
    %285 = vector.broadcast %cst_176 : f32 to vector<1x1xf32>
    %286 = arith.subf %285, %284 : vector<1x1xf32>
    %287 = math.exp %286 : vector<1x1xf32>
    %cst_177 = arith.constant 1.000000e+00 : f32
    %288 = vector.broadcast %cst_177 : f32 to vector<1x1xf32>
    %289 = arith.addf %288, %287 : vector<1x1xf32>
    %cst_178 = arith.constant 1.000000e+00 : f32
    %290 = vector.broadcast %cst_178 : f32 to vector<1x1xf32>
    %291 = arith.divf %290, %289 : vector<1x1xf32>
    %c0_179 = arith.constant 0 : index
    %c0_180 = arith.constant 0 : index
    %c0_181 = arith.constant 0 : index
    %292 = vector.load %arg20[%c0_179, %c0_180, %c0_181] : memref<1x1x1xf32, #tpu.memory_space<vmem>>, vector<1x1x1xf32>
    %293 = vector.shape_cast %292 : vector<1x1x1xf32> to vector<1x1xf32>
    %294 = vector.shape_cast %291 : vector<1x1xf32> to vector<1x1x1xf32>
    tpu.vector_store %arg20[%c0_179, %c0_180, %c0_181], %294 {strides = array<i32>} : memref<1x1x1xf32, #tpu.memory_space<vmem>>, vector<1x1x1xf32>,
    return
  }
  func.func @transform_0(%arg0: i32) -> (i32, i32) {
    %c0_i32 = arith.constant 0 : i32
    %c0_i32_0 = arith.constant 0 : i32
    return %arg0, %c0_i32 : i32, i32
  }
  func.func @transform_1(%arg0: i32) -> (i32, i32) {
    %c0_i32 = arith.constant 0 : i32
    %c0_i32_0 = arith.constant 0 : i32
    %c0_i32_1 = arith.constant 0 : i32
    return %c0_i32, %c0_i32_0 : i32, i32
  }
  func.func @transform_2(%arg0: i32) -> (i32, i32) {
    %c0_i32 = arith.constant 0 : i32
    %c0_i32_0 = arith.constant 0 : i32
    %c0_i32_1 = arith.constant 0 : i32
    return %c0_i32, %c0_i32_0 : i32, i32
  }
  func.func @transform_3(%arg0: i32) -> (i32, i32) {
    %c0_i32 = arith.constant 0 : i32
    %c0_i32_0 = arith.constant 0 : i32
    %c0_i32_1 = arith.constant 0 : i32
    return %c0_i32, %c0_i32_0 : i32, i32
  }
  func.func @transform_4(%arg0: i32) -> (i32, i32) {
    %c0_i32 = arith.constant 0 : i32
    %c0_i32_0 = arith.constant 0 : i32
    %c0_i32_1 = arith.constant 0 : i32
    return %c0_i32, %c0_i32_0 : i32, i32
  }
  func.func @transform_5(%arg0: i32) -> (i32, i32) {
    %c0_i32 = arith.constant 0 : i32
    %c0_i32_0 = arith.constant 0 : i32
    %c0_i32_1 = arith.constant 0 : i32
    return %c0_i32, %c0_i32_0 : i32, i32
  }
  func.func @transform_6(%arg0: i32) -> (i32, i32) {
    %c0_i32 = arith.constant 0 : i32
    %c0_i32_0 = arith.constant 0 : i32
    %c0_i32_1 = arith.constant 0 : i32
    return %c0_i32, %c0_i32_0 : i32, i32
  }
  func.func @transform_7(%arg0: i32) -> (i32, i32) {
    %c0_i32 = arith.constant 0 : i32
    %c0_i32_0 = arith.constant 0 : i32
    %c0_i32_1 = arith.constant 0 : i32
    return %c0_i32, %c0_i32_0 : i32, i32
  }
  func.func @transform_8(%arg0: i32) -> (i32, i32) {
    %c0_i32 = arith.constant 0 : i32
    %c0_i32_0 = arith.constant 0 : i32
    %c0_i32_1 = arith.constant 0 : i32
    return %c0_i32, %c0_i32_0 : i32, i32
  }
  func.func @transform_9(%arg0: i32) -> (i32, i32) {
    %c0_i32 = arith.constant 0 : i32
    %c0_i32_0 = arith.constant 0 : i32
    %c0_i32_1 = arith.constant 0 : i32
    return %c0_i32, %c0_i32_0 : i32, i32
  }
  func.func @transform_10(%arg0: i32) -> (i32, i32) {
    %c0_i32 = arith.constant 0 : i32
    %c0_i32_0 = arith.constant 0 : i32
    %c0_i32_1 = arith.constant 0 : i32
    return %c0_i32, %c0_i32_0 : i32, i32
  }
  func.func @transform_11(%arg0: i32) -> (i32, i32) {
    %c0_i32 = arith.constant 0 : i32
    %c0_i32_0 = arith.constant 0 : i32
    %c0_i32_1 = arith.constant 0 : i32
    return %c0_i32, %c0_i32_0 : i32, i32
  }
  func.func @transform_12(%arg0: i32) -> (i32, i32) {
    %c0_i32 = arith.constant 0 : i32
    %c0_i32_0 = arith.constant 0 : i32
    %c0_i32_1 = arith.constant 0 : i32
    return %c0_i32, %c0_i32_0 : i32, i32
  }
  func.func @transform_13(%arg0: i32) -> (i32, i32) {
    %c0_i32 = arith.constant 0 : i32
    %c0_i32_0 = arith.constant 0 : i32
    %c0_i32_1 = arith.constant 0 : i32
    return %c0_i32, %c0_i32_0 : i32, i32
  }
  func.func @transform_14(%arg0: i32) -> (i32, i32) {
    %c0_i32 = arith.constant 0 : i32
    %c0_i32_0 = arith.constant 0 : i32
    %c0_i32_1 = arith.constant 0 : i32
    return %c0_i32, %c0_i32_0 : i32, i32
  }
  func.func @transform_15(%arg0: i32) -> (i32, i32) {
    %c0_i32 = arith.constant 0 : i32
    %c0_i32_0 = arith.constant 0 : i32
    %c0_i32_1 = arith.constant 0 : i32
    return %c0_i32, %c0_i32_0 : i32, i32
  }
  func.func @transform_16(%arg0: i32) -> (i32, i32) {
    %c0_i32 = arith.constant 0 : i32
    %c0_i32_0 = arith.constant 0 : i32
    %c0_i32_1 = arith.constant 0 : i32
    return %c0_i32, %c0_i32_0 : i32, i32
  }
  func.func @transform_17(%arg0: i32) -> (i32, i32) {
    %c0_i32 = arith.constant 0 : i32
    %c0_i32_0 = arith.constant 0 : i32
    %c0_i32_1 = arith.constant 0 : i32
    return %c0_i32, %c0_i32_0 : i32, i32
  }
  func.func @transform_18(%arg0: i32) -> (i32, i32) {
    %c0_i32 = arith.constant 0 : i32
    %c0_i32_0 = arith.constant 0 : i32
    %c0_i32_1 = arith.constant 0 : i32
    return %c0_i32, %c0_i32_0 : i32, i32
  }
  func.func @transform_19(%arg0: i32) -> (i32, i32, i32) {
    %c0_i32 = arith.constant 0 : i32
    %c0_i32_0 = arith.constant 0 : i32
    %c0_i32_1 = arith.constant 0 : i32
    return %arg0, %c0_i32, %c0_i32_0 : i32, i32, i32
  }
}

</mosaic_0001>

<llo_original>
// kernel: discriminator_forward.1
$region0: #{discriminator_forward.1}
  #allocation0 [shape = 'u32[]', space=smem, size = 0x4, offset = 0x4, fixed_abs, tag = 'smem constant byte address 0x4 - core index']
  #allocation1 [shape = 'u32[72,128]{1,0:T(1,128)}', space=vmem, size = 0x9000, scoped, tag = 'internal scratch']
  #allocation2 [shape = 'bf16[400,16]{1,0:T(8,128)(2,1)}', space=vmem, size = 0x19000, scoped, tag = 'scratch operand']
  #allocation3 [shape = 'bf16[144,32]{1,0:T(8,128)(2,1)}', space=vmem, size = 0x9000, scoped, tag = 'scratch operand']
  #allocation4 [shape = 'bf16[80,64]{1,0:T(8,128)(2,1)}', space=vmem, size = 0x5000, scoped, tag = 'scratch operand']
  %s0 = inlined_call_operand.vmem [shape: bf16[512,32], index: 0, kind: input, shape index: {}]
  %s1 = inlined_call_operand.vmem [shape: bf16[32,16], index: 1, kind: input, shape index: {}]
  %s2 = inlined_call_operand.vmem [shape: f32[3,16], index: 2, kind: input, shape index: {}]
  %s3 = inlined_call_operand.vmem [shape: bf16[384,256], index: 3, kind: input, shape index: {}]
  %s4 = inlined_call_operand.vmem [shape: bf16[256,32], index: 4, kind: input, shape index: {}]
  %s5 = inlined_call_operand.vmem [shape: f32[3,32], index: 5, kind: input, shape index: {}]
  %s6 = inlined_call_operand.vmem [shape: f32[96,1], index: 6, kind: input, shape index: {}]
  %s7 = inlined_call_operand.vmem [shape: bf16[128,96], index: 7, kind: input, shape index: {}]
  %s8 = inlined_call_operand.vmem [shape: bf16[512,64], index: 8, kind: input, shape index: {}]
  %s9 = inlined_call_operand.vmem [shape: f32[3,64], index: 9, kind: input, shape index: {}]
  %s10 = inlined_call_operand.vmem [shape: f32[32,1], index: 10, kind: input, shape index: {}]
  %s11 = inlined_call_operand.vmem [shape: bf16[64,32], index: 11, kind: input, shape index: {}]
  %s12 = inlined_call_operand.vmem [shape: bf16[1024,128], index: 12, kind: input, shape index: {}]
  %s13 = inlined_call_operand.vmem [shape: f32[3,128], index: 13, kind: input, shape index: {}]
  %s14 = inlined_call_operand.vmem [shape: f32[16,1], index: 14, kind: input, shape index: {}]
  %s15 = inlined_call_operand.vmem [shape: bf16[128,64], index: 15, kind: input, shape index: {}]
  %s16 = inlined_call_operand.vmem [shape: f32[2,64], index: 16, kind: input, shape index: {}]
  %s17 = inlined_call_operand.vmem [shape: f32[1,64], index: 17, kind: input, shape index: {}]
  %s18 = inlined_call_operand.vmem [shape: f32[1,2], index: 18, kind: input, shape index: {}]
  %s19 = inlined_call_operand.vmem [shape: f32[2,1,1], index: 19, kind: output, shape index: {}]
  %s20 = sld [smem:[#allocation0]]
  $region109: #{discriminator_forward.1} parent=0
    _
  %s22 = ssub.s32 1, %s20
  %s23 = scalar_select 0, %s22, %s20
  loop: start=0, step=1, limit=4
  $region2: #{discriminator_forward.1} parent=0 // loop_pre_header
    _
  $region3: #{discriminator_forward.1} parent=0 // loop_header
    %s25 = sphi 0, %s29
    %p26 = scmp.ge.s32.totalorder %s25, 4
    %s35 = sphi 0, %s37
    %s38 = sphi 0, %s35
    %s39 = sphi 0, %s38
    %s55 = sphi 0, %s39
    %s59 = sphi 0, %s59
    %s61 = sphi 0, %s59
    %s62 = sphi 0, %s61
    %s76 = sphi 0, %s62
    %s80 = sphi 0, %s80
    %s82 = sphi 0, %s80
    %s83 = sphi 0, %s82
    %s97 = sphi 0, %s83
    %s101 = sphi 0, %s101
    %s103 = sphi 0, %s101
    %s104 = sphi 0, %s103
    %s118 = sphi 0, %s104
    %s122 = sphi 0, %s122
    %s124 = sphi 0, %s122
    %s125 = sphi 0, %s124
    %s139 = sphi 0, %s125
    %s143 = sphi 0, %s143
    %s145 = sphi 0, %s143
    %s146 = sphi 0, %s145
    %s160 = sphi 0, %s146
    %s164 = sphi 0, %s164
    %s166 = sphi 0, %s164
    %s167 = sphi 0, %s166
    %s181 = sphi 0, %s167
    %s185 = sphi 0, %s185
    %s187 = sphi 0, %s185
    %s188 = sphi 0, %s187
    %s202 = sphi 0, %s188
    %s206 = sphi 0, %s206
    %s208 = sphi 0, %s206
    %s209 = sphi 0, %s208
    %s223 = sphi 0, %s209
    %s227 = sphi 0, %s227
    %s229 = sphi 0, %s227
    %s230 = sphi 0, %s229
    %s244 = sphi 0, %s230
    %s248 = sphi 0, %s248
    %s250 = sphi 0, %s248
    %s251 = sphi 0, %s250
    %s265 = sphi 0, %s251
    %s269 = sphi 0, %s269
    %s271 = sphi 0, %s269
    %s272 = sphi 0, %s271
    %s286 = sphi 0, %s272
    %s290 = sphi 0, %s290
    %s292 = sphi 0, %s290
    %s293 = sphi 0, %s292
    %s307 = sphi 0, %s293
    %s311 = sphi 0, %s311
    %s313 = sphi 0, %s311
    %s314 = sphi 0, %s313
    %s328 = sphi 0, %s314
    %s332 = sphi 0, %s332
    %s334 = sphi 0, %s332
    %s335 = sphi 0, %s334
    %s349 = sphi 0, %s335
    %s353 = sphi 0, %s353
    %s355 = sphi 0, %s353
    %s356 = sphi 0, %s355
    %s370 = sphi 0, %s356
    %s374 = sphi 0, %s374
    %s376 = sphi 0, %s374
    %s377 = sphi 0, %s376
    %s391 = sphi 0, %s377
    %s395 = sphi 0, %s395
    %s397 = sphi 0, %s395
    %s398 = sphi 0, %s397
    %s412 = sphi 0, %s398
    %s416 = sphi 0, %s416
    %s418 = sphi 0, %s416
    %s419 = sphi 0, %s418
    %s433 = sphi 0, %s419
    %s439 = sphi 0, %s441
    %s442 = sphi 0, %s439
    %s443 = sphi 0, %s442
    %s459 = sphi 0, %s443
  $region4: #{discriminator_forward.1} parent=0 // loop_header_branch
    %28 = sbr.rel (%p26) target = $region8
  $region5: #{discriminator_forward.1} parent=0 // loop_body
    %s30 = ssub.s32 %s25, 1
    %s31 = ssub.s32 %s25, 2
    %s32 = sadd.s32 %s25, 1
    %s33 = ssub.s32 %s25, %s32
    %p34 = scmp.eq.s32.totalorder %s33, 0
    %s36 = sadd.s32 %s35, 1
    %s37 = scalar_select %p34, %s35, %s36
    %p40 = pneg %p34
    %p41 = scmp.eq.s32.totalorder %s25, 1
    %p42 = por %p40, %p41
    %p43 = scmp.ne.s32.totalorder %s35, %s38
    %p44 = scmp.eq.s32.totalorder %s25, 0
    %p45 = por %p43, %p44
    %p46 = scmp.ne.s32.totalorder %s35, %s38
    %p47 = scmp.eq.s32.totalorder %s30, 1
    %p48 = por %p46, %p47
    %p49 = scmp.ne.s32.totalorder %s38, %s39
    %p50 = scmp.eq.s32.totalorder %s30, 0
    %p51 = por %p49, %p50
    %p52 = scmp.ne.s32.totalorder %s38, %s39
    %p53 = scmp.eq.s32.totalorder %s31, 1
    %p54 = por %p52, %p53
    %p56 = scmp.ne.s32.totalorder %s39, %s55
    %p57 = scmp.eq.s32.totalorder %s31, 0
    %p58 = por %p56, %p57
    %s60 = sadd.s32 %s59, 1
    %p63 = scmp.eq.s32.totalorder %s25, 1
    %p64 = scmp.ne.s32.totalorder %s59, %s61
    %p65 = scmp.eq.s32.totalorder %s25, 0
    %p66 = por %p64, %p65
    %p67 = scmp.ne.s32.totalorder %s59, %s61
    %p68 = scmp.eq.s32.totalorder %s30, 1
    %p69 = por %p67, %p68
    %p70 = scmp.ne.s32.totalorder %s61, %s62
    %p71 = scmp.eq.s32.totalorder %s30, 0
    %p72 = por %p70, %p71
    %p73 = scmp.ne.s32.totalorder %s61, %s62
    %p74 = scmp.eq.s32.totalorder %s31, 1
    %p75 = por %p73, %p74
    %p77 = scmp.ne.s32.totalorder %s62, %s76
    %p78 = scmp.eq.s32.totalorder %s31, 0
    %p79 = por %p77, %p78
    %s81 = sadd.s32 %s80, 1
    %p84 = scmp.eq.s32.totalorder %s25, 1
    %p85 = scmp.ne.s32.totalorder %s80, %s82
    %p86 = scmp.eq.s32.totalorder %s25, 0
    %p87 = por %p85, %p86
    %p88 = scmp.ne.s32.totalorder %s80, %s82
    %p89 = scmp.eq.s32.totalorder %s30, 1
    %p90 = por %p88, %p89
    %p91 = scmp.ne.s32.totalorder %s82, %s83
    %p92 = scmp.eq.s32.totalorder %s30, 0
    %p93 = por %p91, %p92
    %p94 = scmp.ne.s32.totalorder %s82, %s83
    %p95 = scmp.eq.s32.totalorder %s31, 1
    %p96 = por %p94, %p95
    %p98 = scmp.ne.s32.totalorder %s83, %s97
    %p99 = scmp.eq.s32.totalorder %s31, 0
    %p100 = por %p98, %p99
    %s102 = sadd.s32 %s101, 1
    %p105 = scmp.eq.s32.totalorder %s25, 1
    %p106 = scmp.ne.s32.totalorder %s101, %s103
    %p107 = scmp.eq.s32.totalorder %s25, 0
    %p108 = por %p106, %p107
    %p109 = scmp.ne.s32.totalorder %s101, %s103
    %p110 = scmp.eq.s32.totalorder %s30, 1
    %p111 = por %p109, %p110
    %p112 = scmp.ne.s32.totalorder %s103, %s104
    %p113 = scmp.eq.s32.totalorder %s30, 0
    %p114 = por %p112, %p113
    %p115 = scmp.ne.s32.totalorder %s103, %s104
    %p116 = scmp.eq.s32.totalorder %s31, 1
    %p117 = por %p115, %p116
    %p119 = scmp.ne.s32.totalorder %s104, %s118
    %p120 = scmp.eq.s32.totalorder %s31, 0
    %p121 = por %p119, %p120
    %s123 = sadd.s32 %s122, 1
    %p126 = scmp.eq.s32.totalorder %s25, 1
    %p127 = scmp.ne.s32.totalorder %s122, %s124
    %p128 = scmp.eq.s32.totalorder %s25, 0
    %p129 = por %p127, %p128
    %p130 = scmp.ne.s32.totalorder %s122, %s124
    %p131 = scmp.eq.s32.totalorder %s30, 1
    %p132 = por %p130, %p131
    %p133 = scmp.ne.s32.totalorder %s124, %s125
    %p134 = scmp.eq.s32.totalorder %s30, 0
    %p135 = por %p133, %p134
    %p136 = scmp.ne.s32.totalorder %s124, %s125
    %p137 = scmp.eq.s32.totalorder %s31, 1
    %p138 = por %p136, %p137
    %p140 = scmp.ne.s32.totalorder %s125, %s139
    %p141 = scmp.eq.s32.totalorder %s31, 0
    %p142 = por %p140, %p141
    %s144 = sadd.s32 %s143, 1
    %p147 = scmp.eq.s32.totalorder %s25, 1
    %p148 = scmp.ne.s32.totalorder %s143, %s145
    %p149 = scmp.eq.s32.totalorder %s25, 0
    %p150 = por %p148, %p149
    %p151 = scmp.ne.s32.totalorder %s143, %s145
    %p152 = scmp.eq.s32.totalorder %s30, 1
    %p153 = por %p151, %p152
    %p154 = scmp.ne.s32.totalorder %s145, %s146
    %p155 = scmp.eq.s32.totalorder %s30, 0
    %p156 = por %p154, %p155
    %p157 = scmp.ne.s32.totalorder %s145, %s146
    %p158 = scmp.eq.s32.totalorder %s31, 1
    %p159 = por %p157, %p158
    %p161 = scmp.ne.s32.totalorder %s146, %s160
    %p162 = scmp.eq.s32.totalorder %s31, 0
    %p163 = por %p161, %p162
    %s165 = sadd.s32 %s164, 1
    %p168 = scmp.eq.s32.totalorder %s25, 1
    %p169 = scmp.ne.s32.totalorder %s164, %s166
    %p170 = scmp.eq.s32.totalorder %s25, 0
    %p171 = por %p169, %p170
    %p172 = scmp.ne.s32.totalorder %s164, %s166
    %p173 = scmp.eq.s32.totalorder %s30, 1
    %p174 = por %p172, %p173
    %p175 = scmp.ne.s32.totalorder %s166, %s167
    %p176 = scmp.eq.s32.totalorder %s30, 0
    %p177 = por %p175, %p176
    %p178 = scmp.ne.s32.totalorder %s166, %s167
    %p179 = scmp.eq.s32.totalorder %s31, 1
    %p180 = por %p178, %p179
    %p182 = scmp.ne.s32.totalorder %s167, %s181
    %p183 = scmp.eq.s32.totalorder %s31, 0
    %p184 = por %p182, %p183
    %s186 = sadd.s32 %s185, 1
    %p189 = scmp.eq.s32.totalorder %s25, 1
    %p190 = scmp.ne.s32.totalorder %s185, %s187
    %p191 = scmp.eq.s32.totalorder %s25, 0
    %p192 = por %p190, %p191
    %p193 = scmp.ne.s32.totalorder %s185, %s187
    %p194 = scmp.eq.s32.totalorder %s30, 1
    %p195 = por %p193, %p194
    %p196 = scmp.ne.s32.totalorder %s187, %s188
    %p197 = scmp.eq.s32.totalorder %s30, 0
    %p198 = por %p196, %p197
    %p199 = scmp.ne.s32.totalorder %s187, %s188
    %p200 = scmp.eq.s32.totalorder %s31, 1
    %p201 = por %p199, %p200
    %p203 = scmp.ne.s32.totalorder %s188, %s202
    %p204 = scmp.eq.s32.totalorder %s31, 0
    %p205 = por %p203, %p204
    %s207 = sadd.s32 %s206, 1
    %p210 = scmp.eq.s32.totalorder %s25, 1
    %p211 = scmp.ne.s32.totalorder %s206, %s208
    %p212 = scmp.eq.s32.totalorder %s25, 0
    %p213 = por %p211, %p212
    %p214 = scmp.ne.s32.totalorder %s206, %s208
    %p215 = scmp.eq.s32.totalorder %s30, 1
    %p216 = por %p214, %p215
    %p217 = scmp.ne.s32.totalorder %s208, %s209
    %p218 = scmp.eq.s32.totalorder %s30, 0
    %p219 = por %p217, %p218
    %p220 = scmp.ne.s32.totalorder %s208, %s209
    %p221 = scmp.eq.s32.totalorder %s31, 1
    %p222 = por %p220, %p221
    %p224 = scmp.ne.s32.totalorder %s209, %s223
    %p225 = scmp.eq.s32.totalorder %s31, 0
    %p226 = por %p224, %p225
    %s228 = sadd.s32 %s227, 1
    %p231 = scmp.eq.s32.totalorder %s25, 1
    %p232 = scmp.ne.s32.totalorder %s227, %s229
    %p233 = scmp.eq.s32.totalorder %s25, 0
    %p234 = por %p232, %p233
    %p235 = scmp.ne.s32.totalorder %s227, %s229
    %p236 = scmp.eq.s32.totalorder %s30, 1
    %p237 = por %p235, %p236
    %p238 = scmp.ne.s32.totalorder %s229, %s230
    %p239 = scmp.eq.s32.totalorder %s30, 0
    %p240 = por %p238, %p239
    %p241 = scmp.ne.s32.totalorder %s229, %s230
    %p242 = scmp.eq.s32.totalorder %s31, 1
    %p243 = por %p241, %p242
    %p245 = scmp.ne.s32.totalorder %s230, %s244
    %p246 = scmp.eq.s32.totalorder %s31, 0
    %p247 = por %p245, %p246
    %s249 = sadd.s32 %s248, 1
    %p252 = scmp.eq.s32.totalorder %s25, 1
    %p253 = scmp.ne.s32.totalorder %s248, %s250
    %p254 = scmp.eq.s32.totalorder %s25, 0
    %p255 = por %p253, %p254
    %p256 = scmp.ne.s32.totalorder %s248, %s250
    %p257 = scmp.eq.s32.totalorder %s30, 1
    %p258 = por %p256, %p257
    %p259 = scmp.ne.s32.totalorder %s250, %s251
    %p260 = scmp.eq.s32.totalorder %s30, 0
    %p261 = por %p259, %p260
    %p262 = scmp.ne.s32.totalorder %s250, %s251
    %p263 = scmp.eq.s32.totalorder %s31, 1
    %p264 = por %p262, %p263
    %p266 = scmp.ne.s32.totalorder %s251, %s265
    %p267 = scmp.eq.s32.totalorder %s31, 0
    %p268 = por %p266, %p267
    %s270 = sadd.s32 %s269, 1
    %p273 = scmp.eq.s32.totalorder %s25, 1
    %p274 = scmp.ne.s32.totalorder %s269, %s271
    %p275 = scmp.eq.s32.totalorder %s25, 0
    %p276 = por %p274, %p275
    %p277 = scmp.ne.s32.totalorder %s269, %s271
    %p278 = scmp.eq.s32.totalorder %s30, 1
    %p279 = por %p277, %p278
    %p280 = scmp.ne.s32.totalorder %s271, %s272
    %p281 = scmp.eq.s32.totalorder %s30, 0
    %p282 = por %p280, %p281
    %p283 = scmp.ne.s32.totalorder %s271, %s272
    %p284 = scmp.eq.s32.totalorder %s31, 1
    %p285 = por %p283, %p284
    %p287 = scmp.ne.s32.totalorder %s272, %s286
    %p288 = scmp.eq.s32.totalorder %s31, 0
    %p289 = por %p287, %p288
    %s291 = sadd.s32 %s290, 1
    %p294 = scmp.eq.s32.totalorder %s25, 1
    %p295 = scmp.ne.s32.totalorder %s290, %s292
    %p296 = scmp.eq.s32.totalorder %s25, 0
    %p297 = por %p295, %p296
    %p298 = scmp.ne.s32.totalorder %s290, %s292
    %p299 = scmp.eq.s32.totalorder %s30, 1
    %p300 = por %p298, %p299
    %p301 = scmp.ne.s32.totalorder %s292, %s293
    %p302 = scmp.eq.s32.totalorder %s30, 0
    %p303 = por %p301, %p302
    %p304 = scmp.ne.s32.totalorder %s292, %s293
    %p305 = scmp.eq.s32.totalorder %s31, 1
    %p306 = por %p304, %p305
    %p308 = scmp.ne.s32.totalorder %s293, %s307
    %p309 = scmp.eq.s32.totalorder %s31, 0
    %p310 = por %p308, %p309
    %s312 = sadd.s32 %s311, 1
    %p315 = scmp.eq.s32.totalorder %s25, 1
    %p316 = scmp.ne.s32.totalorder %s311, %s313
    %p317 = scmp.eq.s32.totalorder %s25, 0
    %p318 = por %p316, %p317
    %p319 = scmp.ne.s32.totalorder %s311, %s313
    %p320 = scmp.eq.s32.totalorder %s30, 1
    %p321 = por %p319, %p320
    %p322 = scmp.ne.s32.totalorder %s313, %s314
    %p323 = scmp.eq.s32.totalorder %s30, 0
    %p324 = por %p322, %p323
    %p325 = scmp.ne.s32.totalorder %s313, %s314
    %p326 = scmp.eq.s32.totalorder %s31, 1
    %p327 = por %p325, %p326
    %p329 = scmp.ne.s32.totalorder %s314, %s328
    %p330 = scmp.eq.s32.totalorder %s31, 0
    %p331 = por %p329, %p330
    %s333 = sadd.s32 %s332, 1
    %p336 = scmp.eq.s32.totalorder %s25, 1
    %p337 = scmp.ne.s32.totalorder %s332, %s334
    %p338 = scmp.eq.s32.totalorder %s25, 0
    %p339 = por %p337, %p338
    %p340 = scmp.ne.s32.totalorder %s332, %s334
    %p341 = scmp.eq.s32.totalorder %s30, 1
    %p342 = por %p340, %p341
    %p343 = scmp.ne.s32.totalorder %s334, %s335
    %p344 = scmp.eq.s32.totalorder %s30, 0
    %p345 = por %p343, %p344
    %p346 = scmp.ne.s32.totalorder %s334, %s335
    %p347 = scmp.eq.s32.totalorder %s31, 1
    %p348 = por %p346, %p347
    %p350 = scmp.ne.s32.totalorder %s335, %s349
    %p351 = scmp.eq.s32.totalorder %s31, 0
    %p352 = por %p350, %p351
    %s354 = sadd.s32 %s353, 1
    %p357 = scmp.eq.s32.totalorder %s25, 1
    %p358 = scmp.ne.s32.totalorder %s353, %s355
    %p359 = scmp.eq.s32.totalorder %s25, 0
    %p360 = por %p358, %p359
    %p361 = scmp.ne.s32.totalorder %s353, %s355
    %p362 = scmp.eq.s32.totalorder %s30, 1
    %p363 = por %p361, %p362
    %p364 = scmp.ne.s32.totalorder %s355, %s356
    %p365 = scmp.eq.s32.totalorder %s30, 0
    %p366 = por %p364, %p365
    %p367 = scmp.ne.s32.totalorder %s355, %s356
    %p368 = scmp.eq.s32.totalorder %s31, 1
    %p369 = por %p367, %p368
    %p371 = scmp.ne.s32.totalorder %s356, %s370
    %p372 = scmp.eq.s32.totalorder %s31, 0
    %p373 = por %p371, %p372
    %s375 = sadd.s32 %s374, 1
    %p378 = scmp.eq.s32.totalorder %s25, 1
    %p379 = scmp.ne.s32.totalorder %s374, %s376
    %p380 = scmp.eq.s32.totalorder %s25, 0
    %p381 = por %p379, %p380
    %p382 = scmp.ne.s32.totalorder %s374, %s376
    %p383 = scmp.eq.s32.totalorder %s30, 1
    %p384 = por %p382, %p383
    %p385 = scmp.ne.s32.totalorder %s376, %s377
    %p386 = scmp.eq.s32.totalorder %s30, 0
    %p387 = por %p385, %p386
    %p388 = scmp.ne.s32.totalorder %s376, %s377
    %p389 = scmp.eq.s32.totalorder %s31, 1
    %p390 = por %p388, %p389
    %p392 = scmp.ne.s32.totalorder %s377, %s391
    %p393 = scmp.eq.s32.totalorder %s31, 0
    %p394 = por %p392, %p393
    %s396 = sadd.s32 %s395, 1
    %p399 = scmp.eq.s32.totalorder %s25, 1
    %p400 = scmp.ne.s32.totalorder %s395, %s397
    %p401 = scmp.eq.s32.totalorder %s25, 0
    %p402 = por %p400, %p401
    %p403 = scmp.ne.s32.totalorder %s395, %s397
    %p404 = scmp.eq.s32.totalorder %s30, 1
    %p405 = por %p403, %p404
    %p406 = scmp.ne.s32.totalorder %s397, %s398
    %p407 = scmp.eq.s32.totalorder %s30, 0
    %p408 = por %p406, %p407
    %p409 = scmp.ne.s32.totalorder %s397, %s398
    %p410 = scmp.eq.s32.totalorder %s31, 1
    %p411 = por %p409, %p410
    %p413 = scmp.ne.s32.totalorder %s398, %s412
    %p414 = scmp.eq.s32.totalorder %s31, 0
    %p415 = por %p413, %p414
    %s417 = sadd.s32 %s416, 1
    %p420 = scmp.eq.s32.totalorder %s25, 1
    %p421 = scmp.ne.s32.totalorder %s416, %s418
    %p422 = scmp.eq.s32.totalorder %s25, 0
    %p423 = por %p421, %p422
    %p424 = scmp.ne.s32.totalorder %s416, %s418
    %p425 = scmp.eq.s32.totalorder %s30, 1
    %p426 = por %p424, %p425
    %p427 = scmp.ne.s32.totalorder %s418, %s419
    %p428 = scmp.eq.s32.totalorder %s30, 0
    %p429 = por %p427, %p428
    %p430 = scmp.ne.s32.totalorder %s418, %s419
    %p431 = scmp.eq.s32.totalorder %s31, 1
    %p432 = por %p430, %p431
    %p434 = scmp.ne.s32.totalorder %s419, %s433
    %p435 = scmp.eq.s32.totalorder %s31, 0
    %p436 = por %p434, %p435
    %s437 = ssub.s32 %s25, %s32
    %p438 = scmp.eq.s32.totalorder %s437, 0
    %s440 = sadd.s32 %s439, 1
    %s441 = scalar_select %p438, %s439, %s440
    %p444 = pneg %p438
    %p445 = scmp.eq.s32.totalorder %s25, 1
    %p446 = por %p444, %p445
    %p447 = scmp.ne.s32.totalorder %s439, %s442
    %p448 = scmp.eq.s32.totalorder %s25, 0
    %p449 = por %p447, %p448
    %p450 = scmp.ne.s32.totalorder %s439, %s442
    %p451 = scmp.eq.s32.totalorder %s30, 1
    %p452 = por %p450, %p451
    %p453 = scmp.ne.s32.totalorder %s442, %s443
    %p454 = scmp.eq.s32.totalorder %s30, 0
    %p455 = por %p453, %p454
    %p456 = scmp.ne.s32.totalorder %s442, %s443
    %p457 = scmp.eq.s32.totalorder %s31, 1
    %p458 = por %p456, %p457
    %p460 = scmp.ne.s32.totalorder %s443, %s459
    %p461 = scmp.eq.s32.totalorder %s31, 0
    %p462 = por %p460, %p461
    %p463 = scmp.le.s32.totalorder 1, %s25
    %p464 = scmp.lt.s32.totalorder %s25, 3
    %p465 = pnand %p463, %p464
    %p466 = pneg %p465
    // Predicated region
    $region9: #{discriminator_forward.1} parent=5 // pred_check
      _
    $region10: #{discriminator_forward.1} parent=5 // pred_check_branch
      %468 = sbr.rel (%p465) target = $region12
    $region11: #{discriminator_forward.1} parent=5 // pred_region
      %s469 = ssub.s32 %s25, 1
      // Predicated region
      $region13: #{discriminator_forward.1} parent=11 // pred_check
        %p470 = pneg %p72
      $region14: #{discriminator_forward.1} parent=11 // pred_check_branch
        %472 = sbr.rel (%p470) target = $region16
      $region15: #{discriminator_forward.1} parent=11 // pred_region
        _
      $region16: #{discriminator_forward.1} parent=11 // pred_fallthru
        _
      // Predicated region
      $region17: #{discriminator_forward.1} parent=11 // pred_check
        %p473 = pneg %p93
      $region18: #{discriminator_forward.1} parent=11 // pred_check_branch
        %475 = sbr.rel (%p473) target = $region20
      $region19: #{discriminator_forward.1} parent=11 // pred_region
        _
      $region20: #{discriminator_forward.1} parent=11 // pred_fallthru
        _
      // Predicated region
      $region21: #{discriminator_forward.1} parent=11 // pred_check
        %p476 = pneg %p114
      $region22: #{discriminator_forward.1} parent=11 // pred_check_branch
        %478 = sbr.rel (%p476) target = $region24
      $region23: #{discriminator_forward.1} parent=11 // pred_region
        _
      $region24: #{discriminator_forward.1} parent=11 // pred_fallthru
        _
      // Predicated region
      $region25: #{discriminator_forward.1} parent=11 // pred_check
        %p479 = pneg %p135
      $region26: #{discriminator_forward.1} parent=11 // pred_check_branch
        %481 = sbr.rel (%p479) target = $region28
      $region27: #{discriminator_forward.1} parent=11 // pred_region
        _
      $region28: #{discriminator_forward.1} parent=11 // pred_fallthru
        _
      // Predicated region
      $region29: #{discriminator_forward.1} parent=11 // pred_check
        %p482 = pneg %p156
      $region30: #{discriminator_forward.1} parent=11 // pred_check_branch
        %484 = sbr.rel (%p482) target = $region32
      $region31: #{discriminator_forward.1} parent=11 // pred_region
        _
      $region32: #{discriminator_forward.1} parent=11 // pred_fallthru
        _
      // Predicated region
      $region33: #{discriminator_forward.1} parent=11 // pred_check
        %p485 = pneg %p177
      $region34: #{discriminator_forward.1} parent=11 // pred_check_branch
        %487 = sbr.rel (%p485) target = $region36
      $region35: #{discriminator_forward.1} parent=11 // pred_region
        _
      $region36: #{discriminator_forward.1} parent=11 // pred_fallthru
        _
      // Predicated region
      $region37: #{discriminator_forward.1} parent=11 // pred_check
        %p488 = pneg %p198
      $region38: #{discriminator_forward.1} parent=11 // pred_check_branch
        %490 = sbr.rel (%p488) target = $region40
      $region39: #{discriminator_forward.1} parent=11 // pred_region
        _
      $region40: #{discriminator_forward.1} parent=11 // pred_fallthru
        _
      // Predicated region
      $region41: #{discriminator_forward.1} parent=11 // pred_check
        %p491 = pneg %p219
      $region42: #{discriminator_forward.1} parent=11 // pred_check_branch
        %493 = sbr.rel (%p491) target = $region44
      $region43: #{discriminator_forward.1} parent=11 // pred_region
        _
      $region44: #{discriminator_forward.1} parent=11 // pred_fallthru
        _
      // Predicated region
      $region45: #{discriminator_forward.1} parent=11 // pred_check
        %p494 = pneg %p240
      $region46: #{discriminator_forward.1} parent=11 // pred_check_branch
        %496 = sbr.rel (%p494) target = $region48
      $region47: #{discriminator_forward.1} parent=11 // pred_region
        _
      $region48: #{discriminator_forward.1} parent=11 // pred_fallthru
        _
      // Predicated region
      $region49: #{discriminator_forward.1} parent=11 // pred_check
        %p497 = pneg %p261
      $region50: #{discriminator_forward.1} parent=11 // pred_check_branch
        %499 = sbr.rel (%p497) target = $region52
      $region51: #{discriminator_forward.1} parent=11 // pred_region
        _
      $region52: #{discriminator_forward.1} parent=11 // pred_fallthru
        _
      // Predicated region
      $region53: #{discriminator_forward.1} parent=11 // pred_check
        %p500 = pneg %p282
      $region54: #{discriminator_forward.1} parent=11 // pred_check_branch
        %502 = sbr.rel (%p500) target = $region56
      $region55: #{discriminator_forward.1} parent=11 // pred_region
        _
      $region56: #{discriminator_forward.1} parent=11 // pred_fallthru
        _
      // Predicated region
      $region57: #{discriminator_forward.1} parent=11 // pred_check
        %p503 = pneg %p303
      $region58: #{discriminator_forward.1} parent=11 // pred_check_branch
        %505 = sbr.rel (%p503) target = $region60
      $region59: #{discriminator_forward.1} parent=11 // pred_region
        _
      $region60: #{discriminator_forward.1} parent=11 // pred_fallthru
        _
      // Predicated region
      $region61: #{discriminator_forward.1} parent=11 // pred_check
        %p506 = pneg %p324
      $region62: #{discriminator_forward.1} parent=11 // pred_check_branch
        %508 = sbr.rel (%p506) target = $region64
      $region63: #{discriminator_forward.1} parent=11 // pred_region
        _
      $region64: #{discriminator_forward.1} parent=11 // pred_fallthru
        _
      // Predicated region
      $region65: #{discriminator_forward.1} parent=11 // pred_check
        %p509 = pneg %p345
      $region66: #{discriminator_forward.1} parent=11 // pred_check_branch
        %511 = sbr.rel (%p509) target = $region68
      $region67: #{discriminator_forward.1} parent=11 // pred_region
        _
      $region68: #{discriminator_forward.1} parent=11 // pred_fallthru
        _
      // Predicated region
      $region69: #{discriminator_forward.1} parent=11 // pred_check
        %p512 = pneg %p366
      $region70: #{discriminator_forward.1} parent=11 // pred_check_branch
        %514 = sbr.rel (%p512) target = $region72
      $region71: #{discriminator_forward.1} parent=11 // pred_region
        _
      $region72: #{discriminator_forward.1} parent=11 // pred_fallthru
        _
      // Predicated region
      $region73: #{discriminator_forward.1} parent=11 // pred_check
        %p515 = pneg %p387
      $region74: #{discriminator_forward.1} parent=11 // pred_check_branch
        %517 = sbr.rel (%p515) target = $region76
      $region75: #{discriminator_forward.1} parent=11 // pred_region
        _
      $region76: #{discriminator_forward.1} parent=11 // pred_fallthru
        _
      // Predicated region
      $region77: #{discriminator_forward.1} parent=11 // pred_check
        %p518 = pneg %p408
      $region78: #{discriminator_forward.1} parent=11 // pred_check_branch
        %520 = sbr.rel (%p518) target = $region80
      $region79: #{discriminator_forward.1} parent=11 // pred_region
        _
      $region80: #{discriminator_forward.1} parent=11 // pred_fallthru
        _
      // Predicated region
      $region81: #{discriminator_forward.1} parent=11 // pred_check
        %p521 = pneg %p429
      $region82: #{discriminator_forward.1} parent=11 // pred_check_branch
        %523 = sbr.rel (%p521) target = $region84
      $region83: #{discriminator_forward.1} parent=11 // pred_region
        _
      $region84: #{discriminator_forward.1} parent=11 // pred_fallthru
        _
    $region12: #{discriminator_forward.1} parent=5 // pred_fallthru
      _
    %p524 = scmp.lt.s32.totalorder %s25, 2
    // Predicated region
    $region85: #{discriminator_forward.1} parent=5 // pred_check
      %p525 = pneg %p524
    $region86: #{discriminator_forward.1} parent=5 // pred_check_branch
      %527 = sbr.rel (%p525) target = $region88
    $region87: #{discriminator_forward.1} parent=5 // pred_region
      // Predicated region
      $region89: #{discriminator_forward.1} parent=87 // pred_check
        %p528 = pneg %p45
      $region90: #{discriminator_forward.1} parent=87 // pred_check_branch
        %530 = sbr.rel (%p528) target = $region92
      $region91: #{discriminator_forward.1} parent=87 // pred_region
        %s531 = smul.u32 32, %s25
        %p532 = scmp.lt.s32.totalorder %s531, 63
        %s533 = scalar_select %p532, %s531, 63
        %s534 = smul.addr %s533, 4
        %s535 = scalar_lea.vmem %s0, %s534
        %s536 = smul.u32 32, %s25
      $region92: #{discriminator_forward.1} parent=87 // pred_fallthru
        _
    $region88: #{discriminator_forward.1} parent=5 // pred_fallthru
      _
    %p537 = scmp.le.s32.totalorder 1, %s25
    %p538 = scmp.lt.s32.totalorder %s25, 3
    %p539 = pnand %p537, %p538
    %p540 = pneg %p539
    // Predicated region
    $region93: #{discriminator_forward.1} parent=5 // pred_check
      _
    $region94: #{discriminator_forward.1} parent=5 // pred_check_branch
      %542 = sbr.rel (%p539) target = $region96
    $region95: #{discriminator_forward.1} parent=5 // pred_region
      %s543 = ssub.s32 %s25, 1
      %s544 = smul.u32 32, %s30
      %p545 = scmp.lt.s32.totalorder %s544, 63
      %s546 = scalar_select %p545, %s544, 63
      %s547 = smul.addr %s546, 4
      %s548 = scalar_lea.vmem %s0, %s547
      %p549 = pneg %p51
      %p550 = pneg %p48
      %p551 = pneg %p72
      %p552 = pneg %p69
      %p553 = pneg %p93
      %p554 = pneg %p90
      %p555 = pneg %p114
      %p556 = pneg %p111
      %p557 = pneg %p135
      %p558 = pneg %p132
      %p559 = pneg %p156
      %p560 = pneg %p153
      %p561 = pneg %p177
      %p562 = pneg %p174
      %p563 = pneg %p198
      %p564 = pneg %p195
      %p565 = pneg %p219
      %p566 = pneg %p216
      %p567 = pneg %p240
      %p568 = pneg %p237
      %p569 = pneg %p261
      %p570 = pneg %p258
      %p571 = pneg %p282
      %p572 = pneg %p279
      %p573 = pneg %p303
      %p574 = pneg %p300
      %p575 = pneg %p324
      %p576 = pneg %p321
      %p577 = pneg %p345
      %p578 = pneg %p342
      %p579 = pneg %p366
      %p580 = pneg %p363
      %p581 = pneg %p387
      %p582 = pneg %p384
      %p583 = pneg %p408
      %p584 = pneg %p405
      %p585 = pneg %p429
      %p586 = pneg %p426
      %p587 = pneg %p455
      %p588 = pneg %p452
      %p589 = scmp.lt.s32.totalorder %s30, 1
      %s590 = scalar_select %p589, %s30, 1
      %s591 = scalar_lea.vmem %s19, %s590
      %s592 = smul.u32 32, %s30
      %p593 = scmp.lt.s32.totalorder %s592, 63
      %s594 = scalar_select %p593, %s592, 63
      %s595 = smul.addr %s594, 4
      %s596 = scalar_lea.vmem %s0, %s595
      %s597 = smul.u32 32, %s30
      %p598 = scmp.lt.s32.totalorder %s30, 1
      %s599 = scalar_select %p598, %s30, 1
      %s600 = scalar_lea.vmem %s19, %s599
      %v602 = vld [vmem:[%s596] sm:$0xf]
      %v603 = vld [vmem:[%s596 + $0x4] sm:$0xf]
      %v604 = vld [vmem:[%s596 + $0x8] sm:$0xf]
      %v605 = vld [vmem:[%s596 + $0xc] sm:$0xf]
      %v606 = vld [vmem:[%s596 + $0x10] sm:$0xf]
      %v607 = vld [vmem:[%s596 + $0x14] sm:$0xf]
      %v608 = vld [vmem:[%s596 + $0x18] sm:$0xf]
      %v609 = vld [vmem:[%s596 + $0x1c] sm:$0xf]
      %v610 = vld [vmem:[%s596 + $0x20] sm:$0xf]
      %v611 = vld [vmem:[%s596 + $0x24] sm:$0xf]
      %v612 = vld [vmem:[%s596 + $0x28] sm:$0xf]
      %v613 = vld [vmem:[%s596 + $0x2c] sm:$0xf]
      %v614 = vld [vmem:[%s596 + $0x30] sm:$0xf]
      %v615 = vld [vmem:[%s596 + $0x34] sm:$0xf]
      %v616 = vld [vmem:[%s596 + $0x38] sm:$0xf]
      %v617 = vld [vmem:[%s596 + $0x3c] sm:$0xf]
      %v618 = vld [vmem:[%s596 + $0x40] sm:$0xf]
      %v619 = vld [vmem:[%s596 + $0x44] sm:$0xf]
      %v620 = vld [vmem:[%s596 + $0x48] sm:$0xf]
      %v621 = vld [vmem:[%s596 + $0x4c] sm:$0xf]
      %v622 = vld [vmem:[%s596 + $0x50] sm:$0xf]
      %v623 = vld [vmem:[%s596 + $0x54] sm:$0xf]
      %v624 = vld [vmem:[%s596 + $0x58] sm:$0xf]
      %v625 = vld [vmem:[%s596 + $0x5c] sm:$0xf]
      %v626 = vld [vmem:[%s596 + $0x60] sm:$0xf]
      %v627 = vld [vmem:[%s596 + $0x64] sm:$0xf]
      %v628 = vld [vmem:[%s596 + $0x68] sm:$0xf]
      %v629 = vld [vmem:[%s596 + $0x6c] sm:$0xf]
      %v630 = vld [vmem:[%s596 + $0x70] sm:$0xf]
      %v631 = vld [vmem:[%s596 + $0x74] sm:$0xf]
      %v632 = vld [vmem:[%s596 + $0x78] sm:$0xf]
      %v633 = vld [vmem:[%s596 + $0x7c] sm:$0xf]
      %v634 = vld [vmem:[%s1] sm:$0xf]
      %v635 = vld [vmem:[%s1 + $0x4] sm:$0xf]
      %v636 = vld [vmem:[%s1 + $0x8] sm:$0xf]
      %v637 = vld [vmem:[%s1 + $0xc] sm:$0xf]
      %v670 = vunpack.c.l.b16 %v602
      %v671 = vunpack.c.l.b16 %v603
      %v672 = vunpack.c.l.b16 %v604
      %v673 = vunpack.c.l.b16 %v605
      %v674 = vunpack.c.l.b16 %v606
      %v675 = vunpack.c.l.b16 %v607
      %v676 = vunpack.c.l.b16 %v608
      %v677 = vunpack.c.l.b16 %v609
      %v678 = vunpack.c.l.b16 %v610
      %v679 = vunpack.c.l.b16 %v611
      %v680 = vunpack.c.l.b16 %v612
      %v681 = vunpack.c.l.b16 %v613
      %v682 = vunpack.c.l.b16 %v614
      %v683 = vunpack.c.l.b16 %v615
      %v684 = vunpack.c.l.b16 %v616
      %v685 = vunpack.c.l.b16 %v617
      %v686 = vunpack.c.l.b16 %v618
      %v687 = vunpack.c.l.b16 %v619
      %v688 = vunpack.c.l.b16 %v620
      %v689 = vunpack.c.l.b16 %v621
      %v690 = vunpack.c.l.b16 %v622
      %v691 = vunpack.c.l.b16 %v623
      %v692 = vunpack.c.l.b16 %v624
      %v693 = vunpack.c.l.b16 %v625
      %v694 = vunpack.c.l.b16 %v626
      %v695 = vunpack.c.l.b16 %v627
      %v696 = vunpack.c.l.b16 %v628
      %v697 = vunpack.c.l.b16 %v629
      %v698 = vunpack.c.l.b16 %v630
      %v699 = vunpack.c.l.b16 %v631
      %v700 = vunpack.c.l.b16 %v632
      %v701 = vunpack.c.l.b16 %v633
      %v702 = vpack.c.b16 %v671, %v670
      %v703 = vpack.c.b16 %v673, %v672
      %v704 = vpack.c.b16 %v675, %v674
      %v705 = vpack.c.b16 %v677, %v676
      %v706 = vpack.c.b16 %v679, %v678
      %v707 = vpack.c.b16 %v681, %v680
      %v708 = vpack.c.b16 %v683, %v682
      %v709 = vpack.c.b16 %v685, %v684
      %v710 = vpack.c.b16 %v687, %v686
      %v711 = vpack.c.b16 %v689, %v688
      %v712 = vpack.c.b16 %v691, %v690
      %v713 = vpack.c.b16 %v693, %v692
      %v714 = vpack.c.b16 %v695, %v694
      %v715 = vpack.c.b16 %v697, %v696
      %v716 = vpack.c.b16 %v699, %v698
      %v717 = vpack.c.b16 %v701, %v700
      %v722 = vunpack.c.l.b16 %v634
      %v723 = vunpack.c.l.b16 %v635
      %v724 = vunpack.c.l.b16 %v636
      %v725 = vunpack.c.l.b16 %v637
      %v726 = vpack.c.b16 %v723, %v722
      %v727 = vpack.c.b16 %v725, %v724
      %vm730 = vcmask 261120
      %v732 = vsel %vm730, %v702, 0
      %v735 = vsel %vm730, %v703, 0
      %v738 = vsel %vm730, %v704, 0
      %v741 = vsel %vm730, %v705, 0
      %v744 = vsel %vm730, %v706, 0
      %v747 = vsel %vm730, %v707, 0
      %v750 = vsel %vm730, %v708, 0
      %v753 = vsel %vm730, %v709, 0
      %v756 = vsel %vm730, %v710, 0
      %v759 = vsel %vm730, %v711, 0
      %v762 = vsel %vm730, %v712, 0
      %v765 = vsel %vm730, %v713, 0
      %v768 = vsel %vm730, %v714, 0
      %v771 = vsel %vm730, %v715, 0
      %v774 = vsel %vm730, %v716, 0
      %v777 = vsel %vm730, %v717, 0
      %779 = vmatpush.bf16.msra.mxu0 0
      %780 = vmatpush.bf16.msra.mxu0 0
      %781 = vmatpush.bf16.msra.mxu0 0
      %782 = vmatpush.bf16.msra.mxu0 0
      %783 = vmatpush.bf16.msra.mxu0 0
      %784 = vmatpush.bf16.msra.mxu0 0
      %785 = vmatpush.bf16.msra.mxu0 %v727
      %786 = vmatpush.bf16.msra.mxu0 %v726
      %787 = vmatmul.bf16.gmra.mxu0 %v732
      %v788 = vpop.f32.mrf.mxu0
      %v789 = vadd.f32 0.0, %v788
      %v790 = vpop.f32.mrf.mxu0
      %v791 = vadd.f32 0.0, %v790
      %792 = vmatmul.bf16.gmra.mxu0 %v735
      %v793 = vpop.f32.mrf.mxu0
      %v794 = vadd.f32 0.0, %v793
      %v795 = vpop.f32.mrf.mxu0
      %v796 = vadd.f32 0.0, %v795
      %797 = vmatmul.bf16.gmra.mxu0 %v738
      %v798 = vpop.f32.mrf.mxu0
      %v799 = vadd.f32 0.0, %v798
      %v800 = vpop.f32.mrf.mxu0
      %v801 = vadd.f32 0.0, %v800
      %802 = vmatmul.bf16.gmra.mxu0 %v741
      %v803 = vpop.f32.mrf.mxu0
      %v804 = vadd.f32 0.0, %v803
      %v805 = vpop.f32.mrf.mxu0
      %v806 = vadd.f32 0.0, %v805
      %807 = vmatmul.bf16.gmra.mxu0 %v744
      %v808 = vpop.f32.mrf.mxu0
      %v809 = vadd.f32 0.0, %v808
      %v810 = vpop.f32.mrf.mxu0
      %v811 = vadd.f32 0.0, %v810
      %812 = vmatmul.bf16.gmra.mxu0 %v747
      %v813 = vpop.f32.mrf.mxu0
      %v814 = vadd.f32 0.0, %v813
      %v815 = vpop.f32.mrf.mxu0
      %v816 = vadd.f32 0.0, %v815
      %817 = vmatmul.bf16.gmra.mxu0 %v750
      %v818 = vpop.f32.mrf.mxu0
      %v819 = vadd.f32 0.0, %v818
      %v820 = vpop.f32.mrf.mxu0
      %v821 = vadd.f32 0.0, %v820
      %822 = vmatmul.bf16.gmra.mxu0 %v753
      %v823 = vpop.f32.mrf.mxu0
      %v824 = vadd.f32 0.0, %v823
      %v825 = vpop.f32.mrf.mxu0
      %v826 = vadd.f32 0.0, %v825
      %827 = vmatmul.bf16.gmra.mxu0 %v756
      %v828 = vpop.f32.mrf.mxu0
      %v829 = vadd.f32 0.0, %v828
      %v830 = vpop.f32.mrf.mxu0
      %v831 = vadd.f32 0.0, %v830
      %832 = vmatmul.bf16.gmra.mxu0 %v759
      %v833 = vpop.f32.mrf.mxu0
      %v834 = vadd.f32 0.0, %v833
      %v835 = vpop.f32.mrf.mxu0
      %v836 = vadd.f32 0.0, %v835
      %837 = vmatmul.bf16.gmra.mxu0 %v762
      %v838 = vpop.f32.mrf.mxu0
      %v839 = vadd.f32 0.0, %v838
      %v840 = vpop.f32.mrf.mxu0
      %v841 = vadd.f32 0.0, %v840
      %842 = vmatmul.bf16.gmra.mxu0 %v765
      %v843 = vpop.f32.mrf.mxu0
      %v844 = vadd.f32 0.0, %v843
      %v845 = vpop.f32.mrf.mxu0
      %v846 = vadd.f32 0.0, %v845
      %847 = vmatmul.bf16.gmra.mxu0 %v768
      %v848 = vpop.f32.mrf.mxu0
      %v849 = vadd.f32 0.0, %v848
      %v850 = vpop.f32.mrf.mxu0
      %v851 = vadd.f32 0.0, %v850
      %852 = vmatmul.bf16.gmra.mxu0 %v771
      %v853 = vpop.f32.mrf.mxu0
      %v854 = vadd.f32 0.0, %v853
      %v855 = vpop.f32.mrf.mxu0
      %v856 = vadd.f32 0.0, %v855
      %857 = vmatmul.bf16.gmra.mxu0 %v774
      %v858 = vpop.f32.mrf.mxu0
      %v859 = vadd.f32 0.0, %v858
      %v860 = vpop.f32.mrf.mxu0
      %v861 = vadd.f32 0.0, %v860
      %862 = vmatmul.bf16.gmra.mxu0 %v777
      %v863 = vpop.f32.mrf.mxu0
      %v864 = vadd.f32 0.0, %v863
      %v865 = vpop.f32.mrf.mxu0
      %v866 = vadd.f32 0.0, %v865
      %867 = vdwg.mxu0
      %vm868 = vcmask 130048
      %v869 = vsel %vm868, %v789, 0.0
      %v870 = vsel %vm868, %v791, 0.0
      %v871 = vadd.f32 %v869, %v870
      %v872 = vsel %vm868, %v794, 0.0
      %v873 = vadd.f32 %v871, %v872
      %v874 = vsel %vm868, %v796, 0.0
      %v875 = vadd.f32 %v873, %v874
      %v876 = vsel %vm868, %v799, 0.0
      %v877 = vadd.f32 %v875, %v876
      %v878 = vsel %vm868, %v801, 0.0
      %v879 = vadd.f32 %v877, %v878
      %v880 = vsel %vm868, %v804, 0.0
      %v881 = vadd.f32 %v879, %v880
      %v882 = vsel %vm868, %v806, 0.0
      %v883 = vadd.f32 %v881, %v882
      %v884 = vsel %vm868, %v809, 0.0
      %v885 = vadd.f32 %v883, %v884
      %v886 = vsel %vm868, %v811, 0.0
      %v887 = vadd.f32 %v885, %v886
      %v888 = vsel %vm868, %v814, 0.0
      %v889 = vadd.f32 %v887, %v888
      %v890 = vsel %vm868, %v816, 0.0
      %v891 = vadd.f32 %v889, %v890
      %v892 = vsel %vm868, %v819, 0.0
      %v893 = vadd.f32 %v891, %v892
      %v894 = vsel %vm868, %v821, 0.0
      %v895 = vadd.f32 %v893, %v894
      %v896 = vsel %vm868, %v824, 0.0
      %v897 = vadd.f32 %v895, %v896
      %v898 = vsel %vm868, %v826, 0.0
      %v899 = vadd.f32 %v897, %v898
      %v900 = vsel %vm868, %v829, 0.0
      %v901 = vadd.f32 %v899, %v900
      %v902 = vsel %vm868, %v831, 0.0
      %v903 = vadd.f32 %v901, %v902
      %v904 = vsel %vm868, %v834, 0.0
      %v905 = vadd.f32 %v903, %v904
      %v906 = vsel %vm868, %v836, 0.0
      %v907 = vadd.f32 %v905, %v906
      %v908 = vsel %vm868, %v839, 0.0
      %v909 = vadd.f32 %v907, %v908
      %v910 = vsel %vm868, %v841, 0.0
      %v911 = vadd.f32 %v909, %v910
      %v912 = vsel %vm868, %v844, 0.0
      %v913 = vadd.f32 %v911, %v912
      %v914 = vsel %vm868, %v846, 0.0
      %v915 = vadd.f32 %v913, %v914
      %v916 = vsel %vm868, %v849, 0.0
      %v917 = vadd.f32 %v915, %v916
      %v918 = vsel %vm868, %v851, 0.0
      %v919 = vadd.f32 %v917, %v918
      %v920 = vsel %vm868, %v854, 0.0
      %v921 = vadd.f32 %v919, %v920
      %v922 = vsel %vm868, %v856, 0.0
      %v923 = vadd.f32 %v921, %v922
      %v924 = vsel %vm868, %v859, 0.0
      %v925 = vadd.f32 %v923, %v924
      %v926 = vsel %vm868, %v861, 0.0
      %v927 = vadd.f32 %v925, %v926
      %v928 = vsel %vm868, %v864, 0.0
      %v929 = vadd.f32 %v927, %v928
      %v930 = vsel %vm868, %v866, 0.0
      %v931 = vadd.f32 %v929, %v930
      %v932 = vrot.slane %v931, 4
      %v933 = vadd.f32 %v931, %v932
      %v934 = vrot.slane %v933, 2
      %v935 = vadd.f32 %v933, %v934
      %v936 = vrot.slane %v935, 1
      %v937 = vadd.f32 %v935, %v936
      %v938 = vmul.f32 %v937, 0.00390625
      %v939 = vsub.f32 %v789, %v938
      %v940 = vsub.f32 %v791, %v938
      %v941 = vsub.f32 %v794, %v938
      %v942 = vsub.f32 %v796, %v938
      %v943 = vsub.f32 %v799, %v938
      %v944 = vsub.f32 %v801, %v938
      %v945 = vsub.f32 %v804, %v938
      %v946 = vsub.f32 %v806, %v938
      %v947 = vsub.f32 %v809, %v938
      %v948 = vsub.f32 %v811, %v938
      %v949 = vsub.f32 %v814, %v938
      %v950 = vsub.f32 %v816, %v938
      %v951 = vsub.f32 %v819, %v938
      %v952 = vsub.f32 %v821, %v938
      %v953 = vsub.f32 %v824, %v938
      %v954 = vsub.f32 %v826, %v938
      %v955 = vsub.f32 %v829, %v938
      %v956 = vsub.f32 %v831, %v938
      %v957 = vsub.f32 %v834, %v938
      %v958 = vsub.f32 %v836, %v938
      %v959 = vsub.f32 %v839, %v938
      %v960 = vsub.f32 %v841, %v938
      %v961 = vsub.f32 %v844, %v938
      %v962 = vsub.f32 %v846, %v938
      %v963 = vsub.f32 %v849, %v938
      %v964 = vsub.f32 %v851, %v938
      %v965 = vsub.f32 %v854, %v938
      %v966 = vsub.f32 %v856, %v938
      %v967 = vsub.f32 %v859, %v938
      %v968 = vsub.f32 %v861, %v938
      %v969 = vsub.f32 %v864, %v938
      %v970 = vsub.f32 %v866, %v938
      %v971 = vmul.f32 %v939, %v939
      %v972 = vmul.f32 %v940, %v940
      %v973 = vmul.f32 %v941, %v941
      %v974 = vmul.f32 %v942, %v942
      %v975 = vmul.f32 %v943, %v943
      %v976 = vmul.f32 %v944, %v944
      %v977 = vmul.f32 %v945, %v945
      %v978 = vmul.f32 %v946, %v946
      %v979 = vmul.f32 %v947, %v947
      %v980 = vmul.f32 %v948, %v948
      %v981 = vmul.f32 %v949, %v949
      %v982 = vmul.f32 %v950, %v950
      %v983 = vmul.f32 %v951, %v951
      %v984 = vmul.f32 %v952, %v952
      %v985 = vmul.f32 %v953, %v953
      %v986 = vmul.f32 %v954, %v954
      %v987 = vmul.f32 %v955, %v955
      %v988 = vmul.f32 %v956, %v956
      %v989 = vmul.f32 %v957, %v957
      %v990 = vmul.f32 %v958, %v958
      %v991 = vmul.f32 %v959, %v959
      %v992 = vmul.f32 %v960, %v960
      %v993 = vmul.f32 %v961, %v961
      %v994 = vmul.f32 %v962, %v962
      %v995 = vmul.f32 %v963, %v963
      %v996 = vmul.f32 %v964, %v964
      %v997 = vmul.f32 %v965, %v965
      %v998 = vmul.f32 %v966, %v966
      %v999 = vmul.f32 %v967, %v967
      %v1000 = vmul.f32 %v968, %v968
      %v1001 = vmul.f32 %v969, %v969
      %v1002 = vmul.f32 %v970, %v970
      %v1003 = vsel %vm868, %v971, 0.0
      %v1004 = vsel %vm868, %v972, 0.0
      %v1005 = vadd.f32 %v1003, %v1004
      %v1006 = vsel %vm868, %v973, 0.0
      %v1007 = vadd.f32 %v1005, %v1006
      %v1008 = vsel %vm868, %v974, 0.0
      %v1009 = vadd.f32 %v1007, %v1008
      %v1010 = vsel %vm868, %v975, 0.0
      %v1011 = vadd.f32 %v1009, %v1010
      %v1012 = vsel %vm868, %v976, 0.0
      %v1013 = vadd.f32 %v1011, %v1012
      %v1014 = vsel %vm868, %v977, 0.0
      %v1015 = vadd.f32 %v1013, %v1014
      %v1016 = vsel %vm868, %v978, 0.0
      %v1017 = vadd.f32 %v1015, %v1016
      %v1018 = vsel %vm868, %v979, 0.0
      %v1019 = vadd.f32 %v1017, %v1018
      %v1020 = vsel %vm868, %v980, 0.0
      %v1021 = vadd.f32 %v1019, %v1020
      %v1022 = vsel %vm868, %v981, 0.0
      %v1023 = vadd.f32 %v1021, %v1022
      %v1024 = vsel %vm868, %v982, 0.0
      %v1025 = vadd.f32 %v1023, %v1024
      %v1026 = vsel %vm868, %v983, 0.0
      %v1027 = vadd.f32 %v1025, %v1026
      %v1028 = vsel %vm868, %v984, 0.0
      %v1029 = vadd.f32 %v1027, %v1028
      %v1030 = vsel %vm868, %v985, 0.0
      %v1031 = vadd.f32 %v1029, %v1030
      %v1032 = vsel %vm868, %v986, 0.0
      %v1033 = vadd.f32 %v1031, %v1032
      %v1034 = vsel %vm868, %v987, 0.0
      %v1035 = vadd.f32 %v1033, %v1034
      %v1036 = vsel %vm868, %v988, 0.0
      %v1037 = vadd.f32 %v1035, %v1036
      %v1038 = vsel %vm868, %v989, 0.0
      %v1039 = vadd.f32 %v1037, %v1038
      %v1040 = vsel %vm868, %v990, 0.0
      %v1041 = vadd.f32 %v1039, %v1040
      %v1042 = vsel %vm868, %v991, 0.0
      %v1043 = vadd.f32 %v1041, %v1042
      %v1044 = vsel %vm868, %v992, 0.0
      %v1045 = vadd.f32 %v1043, %v1044
      %v1046 = vsel %vm868, %v993, 0.0
      %v1047 = vadd.f32 %v1045, %v1046
      %v1048 = vsel %vm868, %v994, 0.0
      %v1049 = vadd.f32 %v1047, %v1048
      %v1050 = vsel %vm868, %v995, 0.0
      %v1051 = vadd.f32 %v1049, %v1050
      %v1052 = vsel %vm868, %v996, 0.0
      %v1053 = vadd.f32 %v1051, %v1052
      %v1054 = vsel %vm868, %v997, 0.0
      %v1055 = vadd.f32 %v1053, %v1054
      %v1056 = vsel %vm868, %v998, 0.0
      %v1057 = vadd.f32 %v1055, %v1056
      %v1058 = vsel %vm868, %v999, 0.0
      %v1059 = vadd.f32 %v1057, %v1058
      %v1060 = vsel %vm868, %v1000, 0.0
      %v1061 = vadd.f32 %v1059, %v1060
      %v1062 = vsel %vm868, %v1001, 0.0
      %v1063 = vadd.f32 %v1061, %v1062
      %v1064 = vsel %vm868, %v1002, 0.0
      %v1065 = vadd.f32 %v1063, %v1064
      %v1066 = vrot.slane %v1065, 4
      %v1067 = vadd.f32 %v1065, %v1066
      %v1068 = vrot.slane %v1067, 2
      %v1069 = vadd.f32 %v1067, %v1068
      %v1070 = vrot.slane %v1069, 1
      %v1071 = vadd.f32 %v1069, %v1070
      %v1072 = vmul.f32 %v1071, 0.00390625
      %v1073 = vadd.f32 %v1072, 1e-05
      %v1074 = vrsqrt.pop %v1073
      %v1075 = vmul.f32 %v1074, %v1073
      %v1076 = vmul.f32 %v1075, %v1074
      %v1077 = vmul.f32 0.5, %v1076
      %v1078 = vsub.f32 1.5, %v1077
      %v1079 = vmul.f32 %v1074, %v1078
      %vm1080 = vweird.f32 %v1073
      %vm1081 = vweird.f32 %v1074
      %vm1082 = vmor %vm1080, %vm1081
      %v1083 = vsel %vm1082, %v1074, %v1079
      %v1084 = vmul.f32 %v939, %v1083
      %v1085 = vmul.f32 %v940, %v1083
      %v1086 = vmul.f32 %v941, %v1083
      %v1087 = vmul.f32 %v942, %v1083
      %v1088 = vmul.f32 %v943, %v1083
      %v1089 = vmul.f32 %v944, %v1083
      %v1090 = vmul.f32 %v945, %v1083
      %v1091 = vmul.f32 %v946, %v1083
      %v1092 = vmul.f32 %v947, %v1083
      %v1093 = vmul.f32 %v948, %v1083
      %v1094 = vmul.f32 %v949, %v1083
      %v1095 = vmul.f32 %v950, %v1083
      %v1096 = vmul.f32 %v951, %v1083
      %v1097 = vmul.f32 %v952, %v1083
      %v1098 = vmul.f32 %v953, %v1083
      %v1099 = vmul.f32 %v954, %v1083
      %v1100 = vmul.f32 %v955, %v1083
      %v1101 = vmul.f32 %v956, %v1083
      %v1102 = vmul.f32 %v957, %v1083
      %v1103 = vmul.f32 %v958, %v1083
      %v1104 = vmul.f32 %v959, %v1083
      %v1105 = vmul.f32 %v960, %v1083
      %v1106 = vmul.f32 %v961, %v1083
      %v1107 = vmul.f32 %v962, %v1083
      %v1108 = vmul.f32 %v963, %v1083
      %v1109 = vmul.f32 %v964, %v1083
      %v1110 = vmul.f32 %v965, %v1083
      %v1111 = vmul.f32 %v966, %v1083
      %v1112 = vmul.f32 %v967, %v1083
      %v1113 = vmul.f32 %v968, %v1083
      %v1114 = vmul.f32 %v969, %v1083
      %v1115 = vmul.f32 %v970, %v1083
      %v1116 = vld [vmem:[%s2] sm:$0x1]
      %v1117 = vperm.slane %v1116, 0
      %v1118 = vmul.f32 %v1084, %v1117
      %v1119 = vmul.f32 %v1085, %v1117
      %v1120 = vmul.f32 %v1086, %v1117
      %v1121 = vmul.f32 %v1087, %v1117
      %v1122 = vmul.f32 %v1088, %v1117
      %v1123 = vmul.f32 %v1089, %v1117
      %v1124 = vmul.f32 %v1090, %v1117
      %v1125 = vmul.f32 %v1091, %v1117
      %v1126 = vmul.f32 %v1092, %v1117
      %v1127 = vmul.f32 %v1093, %v1117
      %v1128 = vmul.f32 %v1094, %v1117
      %v1129 = vmul.f32 %v1095, %v1117
      %v1130 = vmul.f32 %v1096, %v1117
      %v1131 = vmul.f32 %v1097, %v1117
      %v1132 = vmul.f32 %v1098, %v1117
      %v1133 = vmul.f32 %v1099, %v1117
      %v1134 = vmul.f32 %v1100, %v1117
      %v1135 = vmul.f32 %v1101, %v1117
      %v1136 = vmul.f32 %v1102, %v1117
      %v1137 = vmul.f32 %v1103, %v1117
      %v1138 = vmul.f32 %v1104, %v1117
      %v1139 = vmul.f32 %v1105, %v1117
      %v1140 = vmul.f32 %v1106, %v1117
      %v1141 = vmul.f32 %v1107, %v1117
      %v1142 = vmul.f32 %v1108, %v1117
      %v1143 = vmul.f32 %v1109, %v1117
      %v1144 = vmul.f32 %v1110, %v1117
      %v1145 = vmul.f32 %v1111, %v1117
      %v1146 = vmul.f32 %v1112, %v1117
      %v1147 = vmul.f32 %v1113, %v1117
      %v1148 = vmul.f32 %v1114, %v1117
      %v1149 = vmul.f32 %v1115, %v1117
      %v1150 = vld [vmem:[%s2 + $0x1] sm:$0x1]
      %v1151 = vperm.slane %v1150, 0
      %v1152 = vadd.f32 %v1118, %v1151
      %v1153 = vadd.f32 %v1119, %v1151
      %v1154 = vadd.f32 %v1120, %v1151
      %v1155 = vadd.f32 %v1121, %v1151
      %v1156 = vadd.f32 %v1122, %v1151
      %v1157 = vadd.f32 %v1123, %v1151
      %v1158 = vadd.f32 %v1124, %v1151
      %v1159 = vadd.f32 %v1125, %v1151
      %v1160 = vadd.f32 %v1126, %v1151
      %v1161 = vadd.f32 %v1127, %v1151
      %v1162 = vadd.f32 %v1128, %v1151
      %v1163 = vadd.f32 %v1129, %v1151
      %v1164 = vadd.f32 %v1130, %v1151
      %v1165 = vadd.f32 %v1131, %v1151
      %v1166 = vadd.f32 %v1132, %v1151
      %v1167 = vadd.f32 %v1133, %v1151
      %v1168 = vadd.f32 %v1134, %v1151
      %v1169 = vadd.f32 %v1135, %v1151
      %v1170 = vadd.f32 %v1136, %v1151
      %v1171 = vadd.f32 %v1137, %v1151
      %v1172 = vadd.f32 %v1138, %v1151
      %v1173 = vadd.f32 %v1139, %v1151
      %v1174 = vadd.f32 %v1140, %v1151
      %v1175 = vadd.f32 %v1141, %v1151
      %v1176 = vadd.f32 %v1142, %v1151
      %v1177 = vadd.f32 %v1143, %v1151
      %v1178 = vadd.f32 %v1144, %v1151
      %v1179 = vadd.f32 %v1145, %v1151
      %v1180 = vadd.f32 %v1146, %v1151
      %v1181 = vadd.f32 %v1147, %v1151
      %v1182 = vadd.f32 %v1148, %v1151
      %v1183 = vadd.f32 %v1149, %v1151
      %vm1184 = vcmp.ge.f32.partialorder %v1152, 0.0
      %vm1185 = vcmp.ge.f32.partialorder %v1153, 0.0
      %vm1186 = vcmp.ge.f32.partialorder %v1154, 0.0
      %vm1187 = vcmp.ge.f32.partialorder %v1155, 0.0
      %vm1188 = vcmp.ge.f32.partialorder %v1156, 0.0
      %vm1189 = vcmp.ge.f32.partialorder %v1157, 0.0
      %vm1190 = vcmp.ge.f32.partialorder %v1158, 0.0
      %vm1191 = vcmp.ge.f32.partialorder %v1159, 0.0
      %vm1192 = vcmp.ge.f32.partialorder %v1160, 0.0
      %vm1193 = vcmp.ge.f32.partialorder %v1161, 0.0
      %vm1194 = vcmp.ge.f32.partialorder %v1162, 0.0
      %vm1195 = vcmp.ge.f32.partialorder %v1163, 0.0
      %vm1196 = vcmp.ge.f32.partialorder %v1164, 0.0
      %vm1197 = vcmp.ge.f32.partialorder %v1165, 0.0
      %vm1198 = vcmp.ge.f32.partialorder %v1166, 0.0
      %vm1199 = vcmp.ge.f32.partialorder %v1167, 0.0
      %vm1200 = vcmp.ge.f32.partialorder %v1168, 0.0
      %vm1201 = vcmp.ge.f32.partialorder %v1169, 0.0
      %vm1202 = vcmp.ge.f32.partialorder %v1170, 0.0
      %vm1203 = vcmp.ge.f32.partialorder %v1171, 0.0
      %vm1204 = vcmp.ge.f32.partialorder %v1172, 0.0
      %vm1205 = vcmp.ge.f32.partialorder %v1173, 0.0
      %vm1206 = vcmp.ge.f32.partialorder %v1174, 0.0
      %vm1207 = vcmp.ge.f32.partialorder %v1175, 0.0
      %vm1208 = vcmp.ge.f32.partialorder %v1176, 0.0
      %vm1209 = vcmp.ge.f32.partialorder %v1177, 0.0
      %vm1210 = vcmp.ge.f32.partialorder %v1178, 0.0
      %vm1211 = vcmp.ge.f32.partialorder %v1179, 0.0
      %vm1212 = vcmp.ge.f32.partialorder %v1180, 0.0
      %vm1213 = vcmp.ge.f32.partialorder %v1181, 0.0
      %vm1214 = vcmp.ge.f32.partialorder %v1182, 0.0
      %vm1215 = vcmp.ge.f32.partialorder %v1183, 0.0
      %v1216 = vld [vmem:[%s2 + $0x2] sm:$0x1]
      %v1217 = vperm.slane %v1216, 0
      %v1218 = vmul.f32 %v1217, %v1152
      %v1219 = vmul.f32 %v1217, %v1153
      %v1220 = vmul.f32 %v1217, %v1154
      %v1221 = vmul.f32 %v1217, %v1155
      %v1222 = vmul.f32 %v1217, %v1156
      %v1223 = vmul.f32 %v1217, %v1157
      %v1224 = vmul.f32 %v1217, %v1158
      %v1225 = vmul.f32 %v1217, %v1159
      %v1226 = vmul.f32 %v1217, %v1160
      %v1227 = vmul.f32 %v1217, %v1161
      %v1228 = vmul.f32 %v1217, %v1162
      %v1229 = vmul.f32 %v1217, %v1163
      %v1230 = vmul.f32 %v1217, %v1164
      %v1231 = vmul.f32 %v1217, %v1165
      %v1232 = vmul.f32 %v1217, %v1166
      %v1233 = vmul.f32 %v1217, %v1167
      %v1234 = vmul.f32 %v1217, %v1168
      %v1235 = vmul.f32 %v1217, %v1169
      %v1236 = vmul.f32 %v1217, %v1170
      %v1237 = vmul.f32 %v1217, %v1171
      %v1238 = vmul.f32 %v1217, %v1172
      %v1239 = vmul.f32 %v1217, %v1173
      %v1240 = vmul.f32 %v1217, %v1174
      %v1241 = vmul.f32 %v1217, %v1175
      %v1242 = vmul.f32 %v1217, %v1176
      %v1243 = vmul.f32 %v1217, %v1177
      %v1244 = vmul.f32 %v1217, %v1178
      %v1245 = vmul.f32 %v1217, %v1179
      %v1246 = vmul.f32 %v1217, %v1180
      %v1247 = vmul.f32 %v1217, %v1181
      %v1248 = vmul.f32 %v1217, %v1182
      %v1249 = vmul.f32 %v1217, %v1183
      %v1250 = vsel %vm1184, %v1152, %v1218
      %v1251 = vsel %vm1185, %v1153, %v1219
      %v1252 = vsel %vm1186, %v1154, %v1220
      %v1253 = vsel %vm1187, %v1155, %v1221
      %v1254 = vsel %vm1188, %v1156, %v1222
      %v1255 = vsel %vm1189, %v1157, %v1223
      %v1256 = vsel %vm1190, %v1158, %v1224
      %v1257 = vsel %vm1191, %v1159, %v1225
      %v1258 = vsel %vm1192, %v1160, %v1226
      %v1259 = vsel %vm1193, %v1161, %v1227
      %v1260 = vsel %vm1194, %v1162, %v1228
      %v1261 = vsel %vm1195, %v1163, %v1229
      %v1262 = vsel %vm1196, %v1164, %v1230
      %v1263 = vsel %vm1197, %v1165, %v1231
      %v1264 = vsel %vm1198, %v1166, %v1232
      %v1265 = vsel %vm1199, %v1167, %v1233
      %v1266 = vsel %vm1200, %v1168, %v1234
      %v1267 = vsel %vm1201, %v1169, %v1235
      %v1268 = vsel %vm1202, %v1170, %v1236
      %v1269 = vsel %vm1203, %v1171, %v1237
      %v1270 = vsel %vm1204, %v1172, %v1238
      %v1271 = vsel %vm1205, %v1173, %v1239
      %v1272 = vsel %vm1206, %v1174, %v1240
      %v1273 = vsel %vm1207, %v1175, %v1241
      %v1274 = vsel %vm1208, %v1176, %v1242
      %v1275 = vsel %vm1209, %v1177, %v1243
      %v1276 = vsel %vm1210, %v1178, %v1244
      %v1277 = vsel %vm1211, %v1179, %v1245
      %v1278 = vsel %vm1212, %v1180, %v1246
      %v1279 = vsel %vm1213, %v1181, %v1247
      %v1280 = vsel %vm1214, %v1182, %v1248
      %v1281 = vsel %vm1215, %v1183, %v1249
      %vm1282 = vcmask 125952
      %1283 = vst.msk [vmem:[#allocation2 + $0xc0] sm:$0xf] %vm1282, 0
      %1284 = vst.msk [vmem:[#allocation2 + $0xc4] sm:$0xf] %vm1282, 0
      %v1285 = vpack.c.bf16 %v1250, %v1250
      %v1286 = vpack.c.bf16 %v1251, %v1251
      %v1287 = vpack.c.bf16 %v1252, %v1252
      %v1288 = vpack.c.bf16 %v1253, %v1253
      %v1289 = vpack.c.bf16 %v1254, %v1254
      %v1290 = vpack.c.bf16 %v1255, %v1255
      %v1291 = vpack.c.bf16 %v1256, %v1256
      %v1292 = vpack.c.bf16 %v1257, %v1257
      %v1293 = vpack.c.bf16 %v1258, %v1258
      %v1294 = vpack.c.bf16 %v1259, %v1259
      %v1295 = vpack.c.bf16 %v1260, %v1260
      %v1296 = vpack.c.bf16 %v1261, %v1261
      %v1297 = vpack.c.bf16 %v1262, %v1262
      %v1298 = vpack.c.bf16 %v1263, %v1263
      %v1299 = vpack.c.bf16 %v1264, %v1264
      %v1300 = vpack.c.bf16 %v1265, %v1265
      %v1301 = vpack.c.bf16 %v1266, %v1266
      %v1302 = vpack.c.bf16 %v1267, %v1267
      %v1303 = vpack.c.bf16 %v1268, %v1268
      %v1304 = vpack.c.bf16 %v1269, %v1269
      %v1305 = vpack.c.bf16 %v1270, %v1270
      %v1306 = vpack.c.bf16 %v1271, %v1271
      %v1307 = vpack.c.bf16 %v1272, %v1272
      %v1308 = vpack.c.bf16 %v1273, %v1273
      %v1309 = vpack.c.bf16 %v1274, %v1274
      %v1310 = vpack.c.bf16 %v1275, %v1275
      %v1311 = vpack.c.bf16 %v1276, %v1276
      %v1312 = vpack.c.bf16 %v1277, %v1277
      %v1313 = vpack.c.bf16 %v1278, %v1278
      %v1314 = vpack.c.bf16 %v1279, %v1279
      %v1315 = vpack.c.bf16 %v1280, %v1280
      %v1316 = vpack.c.bf16 %v1281, %v1281
      %v1317 = vld [vmem:[%s3] sm:$0xff]
      %v1318 = vld [vmem:[%s3 + $0x8] sm:$0xff]
      %v1319 = vld [vmem:[%s3 + $0x10] sm:$0xff]
      %v1320 = vld [vmem:[%s3 + $0x18] sm:$0xff]
      %v1321 = vld [vmem:[%s3 + $0x20] sm:$0xff]
      %v1322 = vld [vmem:[%s3 + $0x28] sm:$0xff]
      %v1323 = vld [vmem:[%s3 + $0x30] sm:$0xff]
      %v1324 = vld [vmem:[%s3 + $0x38] sm:$0xff]
      %v1325 = vld [vmem:[%s3 + $0x40] sm:$0xff]
      %v1326 = vld [vmem:[%s3 + $0x48] sm:$0xff]
      %v1327 = vld [vmem:[%s3 + $0x50] sm:$0xff]
      %v1328 = vld [vmem:[%s3 + $0x58] sm:$0xff]
      %v1329 = vld [vmem:[%s3 + $0x60] sm:$0xff]
      %v1330 = vld [vmem:[%s3 + $0x68] sm:$0xff]
      %v1331 = vld [vmem:[%s3 + $0x70] sm:$0xff]
      %v1332 = vld [vmem:[%s3 + $0x78] sm:$0xff]
      %v1333 = vld [vmem:[%s3 + $0x80] sm:$0xff]
      %v1334 = vld [vmem:[%s3 + $0x88] sm:$0xff]
      %v1335 = vld [vmem:[%s3 + $0x90] sm:$0xff]
      %v1336 = vld [vmem:[%s3 + $0x98] sm:$0xff]
      %v1337 = vld [vmem:[%s3 + $0xa0] sm:$0xff]
      %v1338 = vld [vmem:[%s3 + $0xa8] sm:$0xff]
      %v1339 = vld [vmem:[%s3 + $0xb0] sm:$0xff]
      %v1340 = vld [vmem:[%s3 + $0xb8] sm:$0xff]
      %v1341 = vld [vmem:[%s3 + $0xc0] sm:$0xff]
      %v1342 = vld [vmem:[%s3 + $0xc8] sm:$0xff]
      %v1343 = vld [vmem:[%s3 + $0xd0] sm:$0xff]
      %v1344 = vld [vmem:[%s3 + $0xd8] sm:$0xff]
      %v1345 = vld [vmem:[%s3 + $0xe0] sm:$0xff]
      %v1346 = vld [vmem:[%s3 + $0xe8] sm:$0xff]
      %v1347 = vld [vmem:[%s3 + $0xf0] sm:$0xff]
      %v1348 = vld [vmem:[%s3 + $0xf8] sm:$0xff]
      %v1349 = vld [vmem:[%s3 + $0x100] sm:$0xff]
      %v1350 = vld [vmem:[%s3 + $0x108] sm:$0xff]
      %v1351 = vld [vmem:[%s3 + $0x110] sm:$0xff]
      %v1352 = vld [vmem:[%s3 + $0x118] sm:$0xff]
      %v1353 = vld [vmem:[%s3 + $0x120] sm:$0xff]
      %v1354 = vld [vmem:[%s3 + $0x128] sm:$0xff]
      %v1355 = vld [vmem:[%s3 + $0x130] sm:$0xff]
      %v1356 = vld [vmem:[%s3 + $0x138] sm:$0xff]
      %v1357 = vld [vmem:[%s3 + $0x140] sm:$0xff]
      %v1358 = vld [vmem:[%s3 + $0x148] sm:$0xff]
      %v1359 = vld [vmem:[%s3 + $0x150] sm:$0xff]
      %v1360 = vld [vmem:[%s3 + $0x158] sm:$0xff]
      %v1361 = vld [vmem:[%s3 + $0x160] sm:$0xff]
      %v1362 = vld [vmem:[%s3 + $0x168] sm:$0xff]
      %v1363 = vld [vmem:[%s3 + $0x170] sm:$0xff]
      %v1364 = vld [vmem:[%s3 + $0x178] sm:$0xff]
      %v1413 = vunpack.c.l.b16 %v1317
      %v1414 = vunpack.c.h.b16 %v1317
      %v1415 = vunpack.c.l.b16 %v1318
      %v1416 = vunpack.c.h.b16 %v1318
      %v1417 = vunpack.c.l.b16 %v1319
      %v1418 = vunpack.c.h.b16 %v1319
      %v1419 = vunpack.c.l.b16 %v1320
      %v1420 = vunpack.c.h.b16 %v1320
      %v1421 = vunpack.c.l.b16 %v1321
      %v1422 = vunpack.c.h.b16 %v1321
      %v1423 = vunpack.c.l.b16 %v1322
      %v1424 = vunpack.c.h.b16 %v1322
      %v1425 = vunpack.c.l.b16 %v1323
      %v1426 = vunpack.c.h.b16 %v1323
      %v1427 = vunpack.c.l.b16 %v1324
      %v1428 = vunpack.c.h.b16 %v1324
      %v1429 = vunpack.c.l.b16 %v1325
      %v1430 = vunpack.c.h.b16 %v1325
      %v1431 = vunpack.c.l.b16 %v1326
      %v1432 = vunpack.c.h.b16 %v1326
      %v1433 = vunpack.c.l.b16 %v1327
      %v1434 = vunpack.c.h.b16 %v1327
      %v1435 = vunpack.c.l.b16 %v1328
      %v1436 = vunpack.c.h.b16 %v1328
      %v1437 = vunpack.c.l.b16 %v1329
      %v1438 = vunpack.c.h.b16 %v1329
      %v1439 = vunpack.c.l.b16 %v1330
      %v1440 = vunpack.c.h.b16 %v1330
      %v1441 = vunpack.c.l.b16 %v1331
      %v1442 = vunpack.c.h.b16 %v1331
      %v1443 = vunpack.c.l.b16 %v1332
      %v1444 = vunpack.c.h.b16 %v1332
      %v1445 = vunpack.c.l.b16 %v1333
      %v1446 = vunpack.c.h.b16 %v1333
      %v1447 = vunpack.c.l.b16 %v1334
      %v1448 = vunpack.c.h.b16 %v1334
      %v1449 = vunpack.c.l.b16 %v1335
      %v1450 = vunpack.c.h.b16 %v1335
      %v1451 = vunpack.c.l.b16 %v1336
      %v1452 = vunpack.c.h.b16 %v1336
      %v1453 = vunpack.c.l.b16 %v1337
      %v1454 = vunpack.c.h.b16 %v1337
      %v1455 = vunpack.c.l.b16 %v1338
      %v1456 = vunpack.c.h.b16 %v1338
      %v1457 = vunpack.c.l.b16 %v1339
      %v1458 = vunpack.c.h.b16 %v1339
      %v1459 = vunpack.c.l.b16 %v1340
      %v1460 = vunpack.c.h.b16 %v1340
      %v1461 = vunpack.c.l.b16 %v1341
      %v1462 = vunpack.c.h.b16 %v1341
      %v1463 = vunpack.c.l.b16 %v1342
      %v1464 = vunpack.c.h.b16 %v1342
      %v1465 = vunpack.c.l.b16 %v1343
      %v1466 = vunpack.c.h.b16 %v1343
      %v1467 = vunpack.c.l.b16 %v1344
      %v1468 = vunpack.c.h.b16 %v1344
      %v1469 = vunpack.c.l.b16 %v1345
      %v1470 = vunpack.c.h.b16 %v1345
      %v1471 = vunpack.c.l.b16 %v1346
      %v1472 = vunpack.c.h.b16 %v1346
      %v1473 = vunpack.c.l.b16 %v1347
      %v1474 = vunpack.c.h.b16 %v1347
      %v1475 = vunpack.c.l.b16 %v1348
      %v1476 = vunpack.c.h.b16 %v1348
      %v1477 = vunpack.c.l.b16 %v1349
      %v1478 = vunpack.c.h.b16 %v1349
      %v1479 = vunpack.c.l.b16 %v1350
      %v1480 = vunpack.c.h.b16 %v1350
      %v1481 = vunpack.c.l.b16 %v1351
      %v1482 = vunpack.c.h.b16 %v1351
      %v1483 = vunpack.c.l.b16 %v1352
      %v1484 = vunpack.c.h.b16 %v1352
      %v1485 = vunpack.c.l.b16 %v1353
      %v1486 = vunpack.c.h.b16 %v1353
      %v1487 = vunpack.c.l.b16 %v1354
      %v1488 = vunpack.c.h.b16 %v1354
      %v1489 = vunpack.c.l.b16 %v1355
      %v1490 = vunpack.c.h.b16 %v1355
      %v1491 = vunpack.c.l.b16 %v1356
      %v1492 = vunpack.c.h.b16 %v1356
      %v1493 = vunpack.c.l.b16 %v1357
      %v1494 = vunpack.c.h.b16 %v1357
      %v1495 = vunpack.c.l.b16 %v1358
      %v1496 = vunpack.c.h.b16 %v1358
      %v1497 = vunpack.c.l.b16 %v1359
      %v1498 = vunpack.c.h.b16 %v1359
      %v1499 = vunpack.c.l.b16 %v1360
      %v1500 = vunpack.c.h.b16 %v1360
      %v1501 = vunpack.c.l.b16 %v1361
      %v1502 = vunpack.c.h.b16 %v1361
      %v1503 = vunpack.c.l.b16 %v1362
      %v1504 = vunpack.c.h.b16 %v1362
      %v1505 = vunpack.c.l.b16 %v1363
      %v1506 = vunpack.c.h.b16 %v1363
      %v1507 = vunpack.c.l.b16 %v1364
      %v1508 = vunpack.c.h.b16 %v1364
      %v1509 = vpack.c.b16 %v1415, %v1413
      %v1510 = vpack.c.b16 %v1416, %v1414
      %v1511 = vpack.c.b16 %v1419, %v1417
      %v1512 = vpack.c.b16 %v1420, %v1418
      %v1513 = vpack.c.b16 %v1423, %v1421
      %v1514 = vpack.c.b16 %v1424, %v1422
      %v1515 = vpack.c.b16 %v1427, %v1425
      %v1516 = vpack.c.b16 %v1428, %v1426
      %v1517 = vpack.c.b16 %v1431, %v1429
      %v1518 = vpack.c.b16 %v1432, %v1430
      %v1519 = vpack.c.b16 %v1435, %v1433
      %v1520 = vpack.c.b16 %v1436, %v1434
      %v1521 = vpack.c.b16 %v1439, %v1437
      %v1522 = vpack.c.b16 %v1440, %v1438
      %v1523 = vpack.c.b16 %v1443, %v1441
      %v1524 = vpack.c.b16 %v1444, %v1442
      %v1525 = vpack.c.b16 %v1447, %v1445
      %v1526 = vpack.c.b16 %v1448, %v1446
      %v1527 = vpack.c.b16 %v1451, %v1449
      %v1528 = vpack.c.b16 %v1452, %v1450
      %v1529 = vpack.c.b16 %v1455, %v1453
      %v1530 = vpack.c.b16 %v1456, %v1454
      %v1531 = vpack.c.b16 %v1459, %v1457
      %v1532 = vpack.c.b16 %v1460, %v1458
      %v1533 = vpack.c.b16 %v1463, %v1461
      %v1534 = vpack.c.b16 %v1464, %v1462
      %v1535 = vpack.c.b16 %v1467, %v1465
      %v1536 = vpack.c.b16 %v1468, %v1466
      %v1537 = vpack.c.b16 %v1471, %v1469
      %v1538 = vpack.c.b16 %v1472, %v1470
      %v1539 = vpack.c.b16 %v1475, %v1473
      %v1540 = vpack.c.b16 %v1476, %v1474
      %v1541 = vpack.c.b16 %v1479, %v1477
      %v1542 = vpack.c.b16 %v1480, %v1478
      %v1543 = vpack.c.b16 %v1483, %v1481
      %v1544 = vpack.c.b16 %v1484, %v1482
      %v1545 = vpack.c.b16 %v1487, %v1485
      %v1546 = vpack.c.b16 %v1488, %v1486
      %v1547 = vpack.c.b16 %v1491, %v1489
      %v1548 = vpack.c.b16 %v1492, %v1490
      %v1549 = vpack.c.b16 %v1495, %v1493
      %v1550 = vpack.c.b16 %v1496, %v1494
      %v1551 = vpack.c.b16 %v1499, %v1497
      %v1552 = vpack.c.b16 %v1500, %v1498
      %v1553 = vpack.c.b16 %v1503, %v1501
      %v1554 = vpack.c.b16 %v1504, %v1502
      %v1555 = vpack.c.b16 %v1507, %v1505
      %v1556 = vpack.c.b16 %v1508, %v1506
      %v1637 = vunpack.c.l.b16 %v1285
      %v1638 = vunpack.c.l.b16 %v1286
      %v1639 = vunpack.c.l.b16 %v1287
      %v1640 = vunpack.c.l.b16 %v1288
      %v1641 = vunpack.c.l.b16 %v1289
      %v1642 = vunpack.c.l.b16 %v1290
      %v1643 = vunpack.c.l.b16 %v1291
      %v1644 = vunpack.c.l.b16 %v1292
      %v1645 = vunpack.c.l.b16 %v1293
      %v1646 = vunpack.c.l.b16 %v1294
      %v1647 = vunpack.c.l.b16 %v1295
      %v1648 = vunpack.c.l.b16 %v1296
      %v1649 = vunpack.c.l.b16 %v1297
      %v1650 = vunpack.c.l.b16 %v1298
      %v1651 = vunpack.c.l.b16 %v1299
      %v1652 = vunpack.c.l.b16 %v1300
      %v1653 = vunpack.c.l.b16 %v1301
      %v1654 = vunpack.c.l.b16 %v1302
      %v1655 = vunpack.c.l.b16 %v1303
      %v1656 = vunpack.c.l.b16 %v1304
      %v1657 = vunpack.c.l.b16 %v1305
      %v1658 = vunpack.c.l.b16 %v1306
      %v1659 = vunpack.c.l.b16 %v1307
      %v1660 = vunpack.c.l.b16 %v1308
      %v1661 = vunpack.c.l.b16 %v1309
      %v1662 = vunpack.c.l.b16 %v1310
      %v1663 = vunpack.c.l.b16 %v1311
      %v1664 = vunpack.c.l.b16 %v1312
      %v1665 = vunpack.c.l.b16 %v1313
      %v1666 = vunpack.c.l.b16 %v1314
      %v1667 = vunpack.c.l.b16 %v1315
      %v1668 = vunpack.c.l.b16 %v1316
      %v1669 = vpack.c.b16 %v1638, %v1637
      %v1670 = vpack.c.b16 %v1640, %v1639
      %v1671 = vpack.c.b16 %v1642, %v1641
      %v1672 = vpack.c.b16 %v1644, %v1643
      %v1673 = vpack.c.b16 %v1646, %v1645
      %v1674 = vpack.c.b16 %v1648, %v1647
      %v1675 = vpack.c.b16 %v1650, %v1649
      %v1676 = vpack.c.b16 %v1652, %v1651
      %v1677 = vpack.c.b16 %v1654, %v1653
      %v1678 = vpack.c.b16 %v1656, %v1655
      %v1679 = vpack.c.b16 %v1658, %v1657
      %v1680 = vpack.c.b16 %v1660, %v1659
      %v1681 = vpack.c.b16 %v1662, %v1661
      %v1682 = vpack.c.b16 %v1664, %v1663
      %v1683 = vpack.c.b16 %v1666, %v1665
      %v1684 = vpack.c.b16 %v1668, %v1667
      %1701 = vmatpush.bf16.msra.mxu0 %v1676
      %1702 = vmatpush.bf16.msra.mxu0 %v1675
      %1703 = vmatpush.bf16.msra.mxu0 %v1674
      %1704 = vmatpush.bf16.msra.mxu0 %v1673
      %1705 = vmatpush.bf16.msra.mxu0 %v1672
      %1706 = vmatpush.bf16.msra.mxu0 %v1671
      %1707 = vmatpush.bf16.msra.mxu0 %v1670
      %1708 = vmatpush.bf16.msra.mxu0 %v1669
      %1709 = vmatmul.bf16.gmra.mxu0 %v1509
      %v1710 = vpop.f32.mrf.mxu0
      %v1711 = vadd.f32 0.0, %v1710
      %v1712 = vpop.f32.mrf.mxu0
      %v1713 = vadd.f32 0.0, %v1712
      %1714 = vmatmul.bf16.gmra.mxu0 %v1511
      %v1715 = vpop.f32.mrf.mxu0
      %v1716 = vadd.f32 0.0, %v1715
      %v1717 = vpop.f32.mrf.mxu0
      %v1718 = vadd.f32 0.0, %v1717
      %1719 = vmatmul.bf16.gmra.mxu0 %v1513
      %v1720 = vpop.f32.mrf.mxu0
      %v1721 = vadd.f32 0.0, %v1720
      %v1722 = vpop.f32.mrf.mxu0
      %v1723 = vadd.f32 0.0, %v1722
      %1724 = vmatmul.bf16.gmra.mxu0 %v1515
      %v1725 = vpop.f32.mrf.mxu0
      %v1726 = vadd.f32 0.0, %v1725
      %v1727 = vpop.f32.mrf.mxu0
      %v1728 = vadd.f32 0.0, %v1727
      %1729 = vmatmul.bf16.gmra.mxu0 %v1517
      %v1730 = vpop.f32.mrf.mxu0
      %v1731 = vadd.f32 0.0, %v1730
      %v1732 = vpop.f32.mrf.mxu0
      %v1733 = vadd.f32 0.0, %v1732
      %1734 = vmatmul.bf16.gmra.mxu0 %v1519
      %v1735 = vpop.f32.mrf.mxu0
      %v1736 = vadd.f32 0.0, %v1735
      %v1737 = vpop.f32.mrf.mxu0
      %v1738 = vadd.f32 0.0, %v1737
      %1739 = vmatmul.bf16.gmra.mxu0 %v1521
      %v1740 = vpop.f32.mrf.mxu0
      %v1741 = vadd.f32 0.0, %v1740
      %v1742 = vpop.f32.mrf.mxu0
      %v1743 = vadd.f32 0.0, %v1742
      %1744 = vmatmul.bf16.gmra.mxu0 %v1523
      %v1745 = vpop.f32.mrf.mxu0
      %v1746 = vadd.f32 0.0, %v1745
      %v1747 = vpop.f32.mrf.mxu0
      %v1748 = vadd.f32 0.0, %v1747
      %1749 = vmatmul.bf16.gmra.mxu0 %v1525
      %v1750 = vpop.f32.mrf.mxu0
      %v1751 = vadd.f32 0.0, %v1750
      %v1752 = vpop.f32.mrf.mxu0
      %v1753 = vadd.f32 0.0, %v1752
      %1754 = vmatmul.bf16.gmra.mxu0 %v1527
      %v1755 = vpop.f32.mrf.mxu0
      %v1756 = vadd.f32 0.0, %v1755
      %v1757 = vpop.f32.mrf.mxu0
      %v1758 = vadd.f32 0.0, %v1757
      %1759 = vmatmul.bf16.gmra.mxu0 %v1529
      %v1760 = vpop.f32.mrf.mxu0
      %v1761 = vadd.f32 0.0, %v1760
      %v1762 = vpop.f32.mrf.mxu0
      %v1763 = vadd.f32 0.0, %v1762
      %1764 = vmatmul.bf16.gmra.mxu0 %v1531
      %v1765 = vpop.f32.mrf.mxu0
      %v1766 = vadd.f32 0.0, %v1765
      %v1767 = vpop.f32.mrf.mxu0
      %v1768 = vadd.f32 0.0, %v1767
      %1769 = vmatmul.bf16.gmra.mxu0 %v1533
      %v1770 = vpop.f32.mrf.mxu0
      %v1771 = vadd.f32 0.0, %v1770
      %v1772 = vpop.f32.mrf.mxu0
      %v1773 = vadd.f32 0.0, %v1772
      %1774 = vmatmul.bf16.gmra.mxu0 %v1535
      %v1775 = vpop.f32.mrf.mxu0
      %v1776 = vadd.f32 0.0, %v1775
      %v1777 = vpop.f32.mrf.mxu0
      %v1778 = vadd.f32 0.0, %v1777
      %1779 = vmatmul.bf16.gmra.mxu0 %v1537
      %v1780 = vpop.f32.mrf.mxu0
      %v1781 = vadd.f32 0.0, %v1780
      %v1782 = vpop.f32.mrf.mxu0
      %v1783 = vadd.f32 0.0, %v1782
      %1784 = vmatmul.bf16.gmra.mxu0 %v1539
      %v1785 = vpop.f32.mrf.mxu0
      %v1786 = vadd.f32 0.0, %v1785
      %v1787 = vpop.f32.mrf.mxu0
      %v1788 = vadd.f32 0.0, %v1787
      %1789 = vmatmul.bf16.gmra.mxu0 %v1541
      %v1790 = vpop.f32.mrf.mxu0
      %v1791 = vadd.f32 0.0, %v1790
      %v1792 = vpop.f32.mrf.mxu0
      %v1793 = vadd.f32 0.0, %v1792
      %1794 = vmatmul.bf16.gmra.mxu0 %v1543
      %v1795 = vpop.f32.mrf.mxu0
      %v1796 = vadd.f32 0.0, %v1795
      %v1797 = vpop.f32.mrf.mxu0
      %v1798 = vadd.f32 0.0, %v1797
      %1799 = vmatmul.bf16.gmra.mxu0 %v1545
      %v1800 = vpop.f32.mrf.mxu0
      %v1801 = vadd.f32 0.0, %v1800
      %v1802 = vpop.f32.mrf.mxu0
      %v1803 = vadd.f32 0.0, %v1802
      %1804 = vmatmul.bf16.gmra.mxu0 %v1547
      %v1805 = vpop.f32.mrf.mxu0
      %v1806 = vadd.f32 0.0, %v1805
      %v1807 = vpop.f32.mrf.mxu0
      %v1808 = vadd.f32 0.0, %v1807
      %1809 = vmatmul.bf16.gmra.mxu0 %v1549
      %v1810 = vpop.f32.mrf.mxu0
      %v1811 = vadd.f32 0.0, %v1810
      %v1812 = vpop.f32.mrf.mxu0
      %v1813 = vadd.f32 0.0, %v1812
      %1814 = vmatmul.bf16.gmra.mxu0 %v1551
      %v1815 = vpop.f32.mrf.mxu0
      %v1816 = vadd.f32 0.0, %v1815
      %v1817 = vpop.f32.mrf.mxu0
      %v1818 = vadd.f32 0.0, %v1817
      %1819 = vmatmul.bf16.gmra.mxu0 %v1553
      %v1820 = vpop.f32.mrf.mxu0
      %v1821 = vadd.f32 0.0, %v1820
      %v1822 = vpop.f32.mrf.mxu0
      %v1823 = vadd.f32 0.0, %v1822
      %1824 = vmatmul.bf16.gmra.mxu0 %v1555
      %v1825 = vpop.f32.mrf.mxu0
      %v1826 = vadd.f32 0.0, %v1825
      %v1827 = vpop.f32.mrf.mxu0
      %v1828 = vadd.f32 0.0, %v1827
      %1829 = vdwg.mxu0
      %1830 = vmatpush.bf16.msra.mxu0 %v1684
      %1831 = vmatpush.bf16.msra.mxu0 %v1683
      %1832 = vmatpush.bf16.msra.mxu0 %v1682
      %1833 = vmatpush.bf16.msra.mxu0 %v1681
      %1834 = vmatpush.bf16.msra.mxu0 %v1680
      %1835 = vmatpush.bf16.msra.mxu0 %v1679
      %1836 = vmatpush.bf16.msra.mxu0 %v1678
      %1837 = vmatpush.bf16.msra.mxu0 %v1677
      %1838 = vmatmul.bf16.gmra.mxu0 %v1510
      %v1839 = vpop.f32.mrf.mxu0
      %v1840 = vadd.f32 %v1711, %v1839
      %v1841 = vpop.f32.mrf.mxu0
      %v1842 = vadd.f32 %v1713, %v1841
      %1843 = vmatmul.bf16.gmra.mxu0 %v1512
      %v1844 = vpop.f32.mrf.mxu0
      %v1845 = vadd.f32 %v1716, %v1844
      %v1846 = vpop.f32.mrf.mxu0
      %v1847 = vadd.f32 %v1718, %v1846
      %1848 = vmatmul.bf16.gmra.mxu0 %v1514
      %v1849 = vpop.f32.mrf.mxu0
      %v1850 = vadd.f32 %v1721, %v1849
      %v1851 = vpop.f32.mrf.mxu0
      %v1852 = vadd.f32 %v1723, %v1851
      %1853 = vmatmul.bf16.gmra.mxu0 %v1516
      %v1854 = vpop.f32.mrf.mxu0
      %v1855 = vadd.f32 %v1726, %v1854
      %v1856 = vpop.f32.mrf.mxu0
      %v1857 = vadd.f32 %v1728, %v1856
      %1858 = vmatmul.bf16.gmra.mxu0 %v1518
      %v1859 = vpop.f32.mrf.mxu0
      %v1860 = vadd.f32 %v1731, %v1859
      %v1861 = vpop.f32.mrf.mxu0
      %v1862 = vadd.f32 %v1733, %v1861
      %1863 = vmatmul.bf16.gmra.mxu0 %v1520
      %v1864 = vpop.f32.mrf.mxu0
      %v1865 = vadd.f32 %v1736, %v1864
      %v1866 = vpop.f32.mrf.mxu0
      %v1867 = vadd.f32 %v1738, %v1866
      %1868 = vmatmul.bf16.gmra.mxu0 %v1522
      %v1869 = vpop.f32.mrf.mxu0
      %v1870 = vadd.f32 %v1741, %v1869
      %v1871 = vpop.f32.mrf.mxu0
      %v1872 = vadd.f32 %v1743, %v1871
      %1873 = vmatmul.bf16.gmra.mxu0 %v1524
      %v1874 = vpop.f32.mrf.mxu0
      %v1875 = vadd.f32 %v1746, %v1874
      %v1876 = vpop.f32.mrf.mxu0
      %v1877 = vadd.f32 %v1748, %v1876
      %1878 = vmatmul.bf16.gmra.mxu0 %v1526
      %v1879 = vpop.f32.mrf.mxu0
      %v1880 = vadd.f32 %v1751, %v1879
      %v1881 = vpop.f32.mrf.mxu0
      %v1882 = vadd.f32 %v1753, %v1881
      %1883 = vmatmul.bf16.gmra.mxu0 %v1528
      %v1884 = vpop.f32.mrf.mxu0
      %v1885 = vadd.f32 %v1756, %v1884
      %v1886 = vpop.f32.mrf.mxu0
      %v1887 = vadd.f32 %v1758, %v1886
      %1888 = vmatmul.bf16.gmra.mxu0 %v1530
      %v1889 = vpop.f32.mrf.mxu0
      %v1890 = vadd.f32 %v1761, %v1889
      %v1891 = vpop.f32.mrf.mxu0
      %v1892 = vadd.f32 %v1763, %v1891
      %1893 = vmatmul.bf16.gmra.mxu0 %v1532
      %v1894 = vpop.f32.mrf.mxu0
      %v1895 = vadd.f32 %v1766, %v1894
      %v1896 = vpop.f32.mrf.mxu0
      %v1897 = vadd.f32 %v1768, %v1896
      %1898 = vmatmul.bf16.gmra.mxu0 %v1534
      %v1899 = vpop.f32.mrf.mxu0
      %v1900 = vadd.f32 %v1771, %v1899
      %v1901 = vpop.f32.mrf.mxu0
      %v1902 = vadd.f32 %v1773, %v1901
      %1903 = vmatmul.bf16.gmra.mxu0 %v1536
      %v1904 = vpop.f32.mrf.mxu0
      %v1905 = vadd.f32 %v1776, %v1904
      %v1906 = vpop.f32.mrf.mxu0
      %v1907 = vadd.f32 %v1778, %v1906
      %1908 = vmatmul.bf16.gmra.mxu0 %v1538
      %v1909 = vpop.f32.mrf.mxu0
      %v1910 = vadd.f32 %v1781, %v1909
      %v1911 = vpop.f32.mrf.mxu0
      %v1912 = vadd.f32 %v1783, %v1911
      %1913 = vmatmul.bf16.gmra.mxu0 %v1540
      %v1914 = vpop.f32.mrf.mxu0
      %v1915 = vadd.f32 %v1786, %v1914
      %v1916 = vpop.f32.mrf.mxu0
      %v1917 = vadd.f32 %v1788, %v1916
      %1918 = vmatmul.bf16.gmra.mxu0 %v1542
      %v1919 = vpop.f32.mrf.mxu0
      %v1920 = vadd.f32 %v1791, %v1919
      %v1921 = vpop.f32.mrf.mxu0
      %v1922 = vadd.f32 %v1793, %v1921
      %1923 = vmatmul.bf16.gmra.mxu0 %v1544
      %v1924 = vpop.f32.mrf.mxu0
      %v1925 = vadd.f32 %v1796, %v1924
      %v1926 = vpop.f32.mrf.mxu0
      %v1927 = vadd.f32 %v1798, %v1926
      %1928 = vmatmul.bf16.gmra.mxu0 %v1546
      %v1929 = vpop.f32.mrf.mxu0
      %v1930 = vadd.f32 %v1801, %v1929
      %v1931 = vpop.f32.mrf.mxu0
      %v1932 = vadd.f32 %v1803, %v1931
      %1933 = vmatmul.bf16.gmra.mxu0 %v1548
      %v1934 = vpop.f32.mrf.mxu0
      %v1935 = vadd.f32 %v1806, %v1934
      %v1936 = vpop.f32.mrf.mxu0
      %v1937 = vadd.f32 %v1808, %v1936
      %1938 = vmatmul.bf16.gmra.mxu0 %v1550
      %v1939 = vpop.f32.mrf.mxu0
      %v1940 = vadd.f32 %v1811, %v1939
      %v1941 = vpop.f32.mrf.mxu0
      %v1942 = vadd.f32 %v1813, %v1941
      %1943 = vmatmul.bf16.gmra.mxu0 %v1552
      %v1944 = vpop.f32.mrf.mxu0
      %v1945 = vadd.f32 %v1816, %v1944
      %v1946 = vpop.f32.mrf.mxu0
      %v1947 = vadd.f32 %v1818, %v1946
      %1948 = vmatmul.bf16.gmra.mxu0 %v1554
      %v1949 = vpop.f32.mrf.mxu0
      %v1950 = vadd.f32 %v1821, %v1949
      %v1951 = vpop.f32.mrf.mxu0
      %v1952 = vadd.f32 %v1823, %v1951
      %1953 = vmatmul.bf16.gmra.mxu0 %v1556
      %v1954 = vpop.f32.mrf.mxu0
      %v1955 = vadd.f32 %v1826, %v1954
      %v1956 = vpop.f32.mrf.mxu0
      %v1957 = vadd.f32 %v1828, %v1956
      %1958 = vdwg.mxu0
      %v1959 = vpack.c.bf16 %v1840, %v1840
      %v1960 = vpack.c.bf16 %v1842, %v1842
      %v1961 = vpack.c.bf16 %v1845, %v1845
      %v1962 = vpack.c.bf16 %v1847, %v1847
      %v1963 = vpack.c.bf16 %v1850, %v1850
      %v1964 = vpack.c.bf16 %v1852, %v1852
      %v1965 = vpack.c.bf16 %v1855, %v1855
      %v1966 = vpack.c.bf16 %v1857, %v1857
      %v1967 = vpack.c.bf16 %v1860, %v1860
      %v1968 = vpack.c.bf16 %v1862, %v1862
      %v1969 = vpack.c.bf16 %v1865, %v1865
      %v1970 = vpack.c.bf16 %v1867, %v1867
      %v1971 = vpack.c.bf16 %v1870, %v1870
      %v1972 = vpack.c.bf16 %v1872, %v1872
      %v1973 = vpack.c.bf16 %v1875, %v1875
      %v1974 = vpack.c.bf16 %v1877, %v1877
      %v1975 = vpack.c.bf16 %v1880, %v1880
      %v1976 = vpack.c.bf16 %v1882, %v1882
      %v1977 = vpack.c.bf16 %v1885, %v1885
      %v1978 = vpack.c.bf16 %v1887, %v1887
      %v1979 = vpack.c.bf16 %v1890, %v1890
      %v1980 = vpack.c.bf16 %v1892, %v1892
      %v1981 = vpack.c.bf16 %v1895, %v1895
      %v1982 = vpack.c.bf16 %v1897, %v1897
      %v1983 = vpack.c.bf16 %v1900, %v1900
      %v1984 = vpack.c.bf16 %v1902, %v1902
      %v1985 = vpack.c.bf16 %v1905, %v1905
      %v1986 = vpack.c.bf16 %v1907, %v1907
      %v1987 = vpack.c.bf16 %v1910, %v1910
      %v1988 = vpack.c.bf16 %v1912, %v1912
      %v1989 = vpack.c.bf16 %v1915, %v1915
      %v1990 = vpack.c.bf16 %v1917, %v1917
      %v1991 = vpack.c.bf16 %v1920, %v1920
      %v1992 = vpack.c.bf16 %v1922, %v1922
      %v1993 = vpack.c.bf16 %v1925, %v1925
      %v1994 = vpack.c.bf16 %v1927, %v1927
      %v1995 = vpack.c.bf16 %v1930, %v1930
      %v1996 = vpack.c.bf16 %v1932, %v1932
      %v1997 = vpack.c.bf16 %v1935, %v1935
      %v1998 = vpack.c.bf16 %v1937, %v1937
      %v1999 = vpack.c.bf16 %v1940, %v1940
      %v2000 = vpack.c.bf16 %v1942, %v1942
      %v2001 = vpack.c.bf16 %v1945, %v1945
      %v2002 = vpack.c.bf16 %v1947, %v1947
      %v2003 = vpack.c.bf16 %v1950, %v1950
      %v2004 = vpack.c.bf16 %v1952, %v1952
      %v2005 = vpack.c.bf16 %v1955, %v1955
      %v2006 = vpack.c.bf16 %v1957, %v1957
      %2007 = vst.msk [vmem:[#allocation2] sm:$0xf] %vm1282, %v1959
      %2008 = vst.msk [vmem:[#allocation2 + $0x4] sm:$0xf] %vm1282, %v1960
      %2009 = vst.msk [vmem:[#allocation2 + $0x8] sm:$0xf] %vm1282, %v1961
      %2010 = vst.msk [vmem:[#allocation2 + $0xc] sm:$0xf] %vm1282, %v1962
      %2011 = vst.msk [vmem:[#allocation2 + $0x10] sm:$0xf] %vm1282, %v1963
      %2012 = vst.msk [vmem:[#allocation2 + $0x14] sm:$0xf] %vm1282, %v1964
      %2013 = vst.msk [vmem:[#allocation2 + $0x18] sm:$0xf] %vm1282, %v1965
      %2014 = vst.msk [vmem:[#allocation2 + $0x1c] sm:$0xf] %vm1282, %v1966
      %2015 = vst.msk [vmem:[#allocation2 + $0x20] sm:$0xf] %vm1282, %v1967
      %2016 = vst.msk [vmem:[#allocation2 + $0x24] sm:$0xf] %vm1282, %v1968
      %2017 = vst.msk [vmem:[#allocation2 + $0x28] sm:$0xf] %vm1282, %v1969
      %2018 = vst.msk [vmem:[#allocation2 + $0x2c] sm:$0xf] %vm1282, %v1970
      %2019 = vst.msk [vmem:[#allocation2 + $0x30] sm:$0xf] %vm1282, %v1971
      %2020 = vst.msk [vmem:[#allocation2 + $0x34] sm:$0xf] %vm1282, %v1972
      %2021 = vst.msk [vmem:[#allocation2 + $0x38] sm:$0xf] %vm1282, %v1973
      %2022 = vst.msk [vmem:[#allocation2 + $0x3c] sm:$0xf] %vm1282, %v1974
      %2023 = vst.msk [vmem:[#allocation2 + $0x40] sm:$0xf] %vm1282, %v1975
      %2024 = vst.msk [vmem:[#allocation2 + $0x44] sm:$0xf] %vm1282, %v1976
      %2025 = vst.msk [vmem:[#allocation2 + $0x48] sm:$0xf] %vm1282, %v1977
      %2026 = vst.msk [vmem:[#allocation2 + $0x4c] sm:$0xf] %vm1282, %v1978
      %2027 = vst.msk [vmem:[#allocation2 + $0x50] sm:$0xf] %vm1282, %v1979
      %2028 = vst.msk [vmem:[#allocation2 + $0x54] sm:$0xf] %vm1282, %v1980
      %2029 = vst.msk [vmem:[#allocation2 + $0x58] sm:$0xf] %vm1282, %v1981
      %2030 = vst.msk [vmem:[#allocation2 + $0x5c] sm:$0xf] %vm1282, %v1982
      %2031 = vst.msk [vmem:[#allocation2 + $0x60] sm:$0xf] %vm1282, %v1983
      %2032 = vst.msk [vmem:[#allocation2 + $0x64] sm:$0xf] %vm1282, %v1984
      %2033 = vst.msk [vmem:[#allocation2 + $0x68] sm:$0xf] %vm1282, %v1985
      %2034 = vst.msk [vmem:[#allocation2 + $0x6c] sm:$0xf] %vm1282, %v1986
      %2035 = vst.msk [vmem:[#allocation2 + $0x70] sm:$0xf] %vm1282, %v1987
      %2036 = vst.msk [vmem:[#allocation2 + $0x74] sm:$0xf] %vm1282, %v1988
      %2037 = vst.msk [vmem:[#allocation2 + $0x78] sm:$0xf] %vm1282, %v1989
      %2038 = vst.msk [vmem:[#allocation2 + $0x7c] sm:$0xf] %vm1282, %v1990
      %2039 = vst.msk [vmem:[#allocation2 + $0x80] sm:$0xf] %vm1282, %v1991
      %2040 = vst.msk [vmem:[#allocation2 + $0x84] sm:$0xf] %vm1282, %v1992
      %2041 = vst.msk [vmem:[#allocation2 + $0x88] sm:$0xf] %vm1282, %v1993
      %2042 = vst.msk [vmem:[#allocation2 + $0x8c] sm:$0xf] %vm1282, %v1994
      %2043 = vst.msk [vmem:[#allocation2 + $0x90] sm:$0xf] %vm1282, %v1995
      %2044 = vst.msk [vmem:[#allocation2 + $0x94] sm:$0xf] %vm1282, %v1996
      %2045 = vst.msk [vmem:[#allocation2 + $0x98] sm:$0xf] %vm1282, %v1997
      %2046 = vst.msk [vmem:[#allocation2 + $0x9c] sm:$0xf] %vm1282, %v1998
      %2047 = vst.msk [vmem:[#allocation2 + $0xa0] sm:$0xf] %vm1282, %v1999
      %2048 = vst.msk [vmem:[#allocation2 + $0xa4] sm:$0xf] %vm1282, %v2000
      %2049 = vst.msk [vmem:[#allocation2 + $0xa8] sm:$0xf] %vm1282, %v2001
      %2050 = vst.msk [vmem:[#allocation2 + $0xac] sm:$0xf] %vm1282, %v2002
      %2051 = vst.msk [vmem:[#allocation2 + $0xb0] sm:$0xf] %vm1282, %v2003
      %2052 = vst.msk [vmem:[#allocation2 + $0xb4] sm:$0xf] %vm1282, %v2004
      %2053 = vst.msk [vmem:[#allocation2 + $0xb8] sm:$0xf] %vm1282, %v2005
      %2054 = vst.msk [vmem:[#allocation2 + $0xbc] sm:$0xf] %vm1282, %v2006
      %v2055 = vld [vmem:[#allocation2] sm:$0xf]
      %v2056 = vld [vmem:[#allocation2 + $0x4] sm:$0xf]
      %v2057 = vld [vmem:[#allocation2 + $0x8] sm:$0xf]
      %v2058 = vld [vmem:[#allocation2 + $0xc] sm:$0xf]
      %v2059 = vld [vmem:[#allocation2 + $0x10] sm:$0xf]
      %v2060 = vld [vmem:[#allocation2 + $0x14] sm:$0xf]
      %v2061 = vld [vmem:[#allocation2 + $0x18] sm:$0xf]
      %v2062 = vld [vmem:[#allocation2 + $0x1c] sm:$0xf]
      %v2063 = vld [vmem:[#allocation2 + $0x20] sm:$0xf]
      %v2064 = vld [vmem:[#allocation2 + $0x24] sm:$0xf]
      %v2065 = vld [vmem:[#allocation2 + $0x28] sm:$0xf]
      %v2066 = vld [vmem:[#allocation2 + $0x2c] sm:$0xf]
      %v2067 = vld [vmem:[#allocation2 + $0x30] sm:$0x1]
      %v2068 = vld [vmem:[#allocation2 + $0x30] sm:$0xf]
      %v2069 = vld [vmem:[#allocation2 + $0x34] sm:$0x1]
      %v2070 = vld [vmem:[#allocation2 + $0x4] sm:$0xe]
      %v2071 = vld [vmem:[#allocation2 + $0x34] sm:$0xf]
      %v2072 = vld [vmem:[#allocation2 + $0x38] sm:$0xf]
      %v2073 = vld [vmem:[#allocation2 + $0x3c] sm:$0xf]
      %v2074 = vld [vmem:[#allocation2 + $0x40] sm:$0xf]
      %v2075 = vld [vmem:[#allocation2 + $0x44] sm:$0xf]
      %v2076 = vld [vmem:[#allocation2 + $0x48] sm:$0xf]
      %v2077 = vld [vmem:[#allocation2 + $0x4c] sm:$0xf]
      %v2078 = vld [vmem:[#allocation2 + $0x50] sm:$0xf]
      %v2079 = vld [vmem:[#allocation2 + $0x54] sm:$0xf]
      %v2080 = vld [vmem:[#allocation2 + $0x58] sm:$0xf]
      %v2081 = vld [vmem:[#allocation2 + $0x5c] sm:$0xf]
      %v2082 = vld [vmem:[#allocation2 + $0x60] sm:$0x1]
      %v2083 = vld [vmem:[#allocation2 + $0x60] sm:$0xf]
      %v2084 = vld [vmem:[#allocation2 + $0x64] sm:$0x1]
      %v2085 = vld [vmem:[#allocation2 + $0x34] sm:$0xe]
      %v2086 = vld [vmem:[#allocation2 + $0x64] sm:$0xf]
      %v2087 = vld [vmem:[#allocation2 + $0x68] sm:$0xf]
      %v2088 = vld [vmem:[#allocation2 + $0x6c] sm:$0xf]
      %v2089 = vld [vmem:[#allocation2 + $0x70] sm:$0xf]
      %v2090 = vld [vmem:[#allocation2 + $0x74] sm:$0xf]
      %v2091 = vld [vmem:[#allocation2 + $0x78] sm:$0xf]
      %v2092 = vld [vmem:[#allocation2 + $0x7c] sm:$0xf]
      %v2093 = vld [vmem:[#allocation2 + $0x80] sm:$0xf]
      %v2094 = vld [vmem:[#allocation2 + $0x84] sm:$0xf]
      %v2095 = vld [vmem:[#allocation2 + $0x88] sm:$0xf]
      %v2096 = vld [vmem:[#allocation2 + $0x8c] sm:$0xf]
      %v2097 = vld [vmem:[#allocation2 + $0x90] sm:$0x1]
      %v2098 = vld [vmem:[#allocation2 + $0x90] sm:$0xf]
      %v2099 = vld [vmem:[#allocation2 + $0x94] sm:$0x1]
      %v2100 = vld [vmem:[#allocation2 + $0x64] sm:$0xe]
      %v2101 = vld [vmem:[#allocation2 + $0x94] sm:$0xf]
      %v2102 = vld [vmem:[#allocation2 + $0x98] sm:$0xf]
      %v2103 = vld [vmem:[#allocation2 + $0x9c] sm:$0xf]
      %v2104 = vld [vmem:[#allocation2 + $0xa0] sm:$0xf]
      %v2105 = vld [vmem:[#allocation2 + $0xa4] sm:$0xf]
      %v2106 = vld [vmem:[#allocation2 + $0xa8] sm:$0xf]
      %v2107 = vld [vmem:[#allocation2 + $0xac] sm:$0xf]
      %v2108 = vld [vmem:[#allocation2 + $0xb0] sm:$0xf]
      %v2109 = vld [vmem:[#allocation2 + $0xb4] sm:$0xf]
      %v2110 = vld [vmem:[#allocation2 + $0xb8] sm:$0xf]
      %v2111 = vld [vmem:[#allocation2 + $0xbc] sm:$0xf]
      %v2112 = vld [vmem:[#allocation2 + $0xc0] sm:$0x1]
      %v2113 = vld [vmem:[#allocation2 + $0xc0] sm:$0xf]
      %v2114 = vld [vmem:[#allocation2 + $0xc4] sm:$0x1]
      %v2115 = vld [vmem:[#allocation2 + $0x94] sm:$0xe]
      %v2128 = vunpack.c.l.b16 %v2055
      %v2129 = vunpack.c.l.b16 %v2056
      %v2130 = vunpack.c.l.b16 %v2057
      %v2131 = vunpack.c.l.b16 %v2058
      %v2132 = vunpack.c.l.b16 %v2059
      %v2133 = vunpack.c.l.b16 %v2060
      %v2134 = vunpack.c.l.b16 %v2061
      %v2135 = vunpack.c.l.b16 %v2062
      %v2136 = vunpack.c.l.b16 %v2063
      %v2137 = vunpack.c.l.b16 %v2064
      %v2138 = vunpack.c.l.b16 %v2065
      %v2139 = vunpack.c.l.b16 %v2066
      %v2140 = vpack.c.b16 %v2129, %v2128
      %v2141 = vpack.c.b16 %v2131, %v2130
      %v2142 = vpack.c.b16 %v2133, %v2132
      %v2143 = vpack.c.b16 %v2135, %v2134
      %v2144 = vpack.c.b16 %v2137, %v2136
      %v2145 = vpack.c.b16 %v2139, %v2138
      %v2147 = vunpack.c.l.b16 %v2067
      %v2148 = vpack.c.b16 %v2147, %v2147
      %vm2149 = vsmask.f32 7424
      %v2151 = vshrl.u32 %v2140, 16
      %v2153 = vshll.u32 %v2140, 16
      %v2155 = vrot.slane %v2153, 1
      %v2156 = vor.u32 %v2151, %v2155
      %v2158 = vshll.u32 %v2141, 16
      %v2160 = vrot.slane %v2158, 1
      %v2161 = vsel %vm2149, %v2156, %v2160
      %v2162 = vshrl.u32 %v2141, 16
      %v2164 = vor.u32 %v2162, %v2160
      %v2166 = vshll.u32 %v2142, 16
      %v2168 = vrot.slane %v2166, 1
      %v2169 = vsel %vm2149, %v2164, %v2168
      %v2170 = vshrl.u32 %v2142, 16
      %v2172 = vor.u32 %v2170, %v2168
      %v2174 = vshll.u32 %v2143, 16
      %v2176 = vrot.slane %v2174, 1
      %v2177 = vsel %vm2149, %v2172, %v2176
      %v2178 = vshrl.u32 %v2143, 16
      %v2180 = vor.u32 %v2178, %v2176
      %v2182 = vshll.u32 %v2144, 16
      %v2184 = vrot.slane %v2182, 1
      %v2185 = vsel %vm2149, %v2180, %v2184
      %v2186 = vshrl.u32 %v2144, 16
      %v2188 = vor.u32 %v2186, %v2184
      %v2190 = vshll.u32 %v2145, 16
      %v2192 = vrot.slane %v2190, 1
      %v2193 = vsel %vm2149, %v2188, %v2192
      %v2194 = vshrl.u32 %v2145, 16
      %v2196 = vor.u32 %v2194, %v2192
      %v2198 = vshll.u32 %v2148, 16
      %v2200 = vrot.slane %v2198, 1
      %v2201 = vsel %vm2149, %v2196, %v2200
      %2202 = vrot.lane.b32.xlu0 %v2161, 16
      %v2203 = vpop.permute.xlu0 %2202
      %2204 = vrot.lane.b32.xlu0 %v2169, 16
      %v2205 = vpop.permute.xlu0 %2204
      %2206 = vrot.lane.b32.xlu0 %v2177, 16
      %v2207 = vpop.permute.xlu0 %2206
      %2208 = vrot.lane.b32.xlu0 %v2185, 16
      %v2209 = vpop.permute.xlu0 %2208
      %2210 = vrot.lane.b32.xlu0 %v2193, 16
      %v2211 = vpop.permute.xlu0 %2210
      %2212 = vrot.lane.b32.xlu0 %v2201, 16
      %v2213 = vpop.permute.xlu0 %2212
      %v2216 = vunpack.c.l.b16 %v2068
      %v2217 = vunpack.c.l.b16 %v2069
      %v2218 = vpack.c.b16 %v2130, %v2129
      %v2219 = vpack.c.b16 %v2132, %v2131
      %v2220 = vpack.c.b16 %v2134, %v2133
      %v2221 = vpack.c.b16 %v2136, %v2135
      %v2222 = vpack.c.b16 %v2138, %v2137
      %v2223 = vpack.c.b16 %v2216, %v2139
      %v2224 = vpack.c.b16 %v2217, %v2217
      %v2226 = vshrl.u32 %v2218, 16
      %v2228 = vshll.u32 %v2218, 16
      %v2230 = vrot.slane %v2228, 1
      %v2231 = vor.u32 %v2226, %v2230
      %v2233 = vshll.u32 %v2219, 16
      %v2235 = vrot.slane %v2233, 1
      %v2236 = vsel %vm2149, %v2231, %v2235
      %v2237 = vshrl.u32 %v2219, 16
      %v2239 = vor.u32 %v2237, %v2235
      %v2241 = vshll.u32 %v2220, 16
      %v2243 = vrot.slane %v2241, 1
      %v2244 = vsel %vm2149, %v2239, %v2243
      %v2245 = vshrl.u32 %v2220, 16
      %v2247 = vor.u32 %v2245, %v2243
      %v2249 = vshll.u32 %v2221, 16
      %v2251 = vrot.slane %v2249, 1
      %v2252 = vsel %vm2149, %v2247, %v2251
      %v2253 = vshrl.u32 %v2221, 16
      %v2255 = vor.u32 %v2253, %v2251
      %v2257 = vshll.u32 %v2222, 16
      %v2259 = vrot.slane %v2257, 1
      %v2260 = vsel %vm2149, %v2255, %v2259
      %v2261 = vshrl.u32 %v2222, 16
      %v2263 = vor.u32 %v2261, %v2259
      %v2265 = vshll.u32 %v2223, 16
      %v2267 = vrot.slane %v2265, 1
      %v2268 = vsel %vm2149, %v2263, %v2267
      %v2269 = vshrl.u32 %v2223, 16
      %v2271 = vor.u32 %v2269, %v2267
      %v2273 = vshll.u32 %v2224, 16
      %v2275 = vrot.slane %v2273, 1
      %v2276 = vsel %vm2149, %v2271, %v2275
      %2277 = vrot.lane.b32.xlu0 %v2236, 32
      %v2278 = vpop.permute.xlu0 %2277
      %2279 = vrot.lane.b32.xlu0 %v2244, 32
      %v2280 = vpop.permute.xlu0 %2279
      %2281 = vrot.lane.b32.xlu0 %v2252, 32
      %v2282 = vpop.permute.xlu0 %2281
      %2283 = vrot.lane.b32.xlu0 %v2260, 32
      %v2284 = vpop.permute.xlu0 %2283
      %2285 = vrot.lane.b32.xlu0 %v2268, 32
      %v2286 = vpop.permute.xlu0 %2285
      %2287 = vrot.lane.b32.xlu0 %v2276, 32
      %v2288 = vpop.permute.xlu0 %2287
      %v2290 = vunpack.c.l.b16 %v2070
      %v2291 = vpack.c.b16 %v2130, %v2290
      %vm2292 = vcmask 1046528
      %v2293 = vrot.slane %v2291, 1
      %v2294 = vrot.slane %v2219, 1
      %v2295 = vsel %vm2292, %v2293, %v2294
      %v2296 = vrot.slane %v2220, 1
      %v2297 = vsel %vm2292, %v2294, %v2296
      %v2298 = vrot.slane %v2221, 1
      %v2299 = vsel %vm2292, %v2296, %v2298
      %v2300 = vrot.slane %v2222, 1
      %v2301 = vsel %vm2292, %v2298, %v2300
      %v2302 = vrot.slane %v2223, 1
      %v2303 = vsel %vm2292, %v2300, %v2302
      %v2304 = vrot.slane %v2224, 1
      %v2305 = vsel %vm2292, %v2302, %v2304
      %2306 = vrot.lane.b32.xlu0 %v2295, 48
      %v2307 = vpop.permute.xlu0 %2306
      %2308 = vrot.lane.b32.xlu0 %v2297, 48
      %v2309 = vpop.permute.xlu0 %2308
      %2310 = vrot.lane.b32.xlu0 %v2299, 48
      %v2311 = vpop.permute.xlu0 %2310
      %2312 = vrot.lane.b32.xlu0 %v2301, 48
      %v2313 = vpop.permute.xlu0 %2312
      %2314 = vrot.lane.b32.xlu0 %v2303, 48
      %v2315 = vpop.permute.xlu0 %2314
      %2316 = vrot.lane.b32.xlu0 %v2305, 48
      %v2317 = vpop.permute.xlu0 %2316
      %v2329 = vunpack.c.l.b16 %v2071
      %v2330 = vunpack.c.l.b16 %v2072
      %v2331 = vunpack.c.l.b16 %v2073
      %v2332 = vunpack.c.l.b16 %v2074
      %v2333 = vunpack.c.l.b16 %v2075
      %v2334 = vunpack.c.l.b16 %v2076
      %v2335 = vunpack.c.l.b16 %v2077
      %v2336 = vunpack.c.l.b16 %v2078
      %v2337 = vunpack.c.l.b16 %v2079
      %v2338 = vunpack.c.l.b16 %v2080
      %v2339 = vunpack.c.l.b16 %v2081
      %v2340 = vpack.c.b16 %v2329, %v2216
      %v2341 = vpack.c.b16 %v2331, %v2330
      %v2342 = vpack.c.b16 %v2333, %v2332
      %v2343 = vpack.c.b16 %v2335, %v2334
      %v2344 = vpack.c.b16 %v2337, %v2336
      %v2345 = vpack.c.b16 %v2339, %v2338
      %2346 = vrot.lane.b32.xlu0 %v2340, 64
      %v2347 = vpop.permute.xlu0 %2346
      %2348 = vrot.lane.b32.xlu0 %v2341, 64
      %v2349 = vpop.permute.xlu0 %2348
      %2350 = vrot.lane.b32.xlu0 %v2342, 64
      %v2351 = vpop.permute.xlu0 %2350
      %2352 = vrot.lane.b32.xlu0 %v2343, 64
      %v2353 = vpop.permute.xlu0 %2352
      %2354 = vrot.lane.b32.xlu0 %v2344, 64
      %v2355 = vpop.permute.xlu0 %2354
      %2356 = vrot.lane.b32.xlu0 %v2345, 64
      %v2357 = vpop.permute.xlu0 %2356
      %v2359 = vunpack.c.l.b16 %v2082
      %v2360 = vpack.c.b16 %v2359, %v2359
      %v2362 = vshrl.u32 %v2340, 16
      %v2364 = vshll.u32 %v2340, 16
      %v2366 = vrot.slane %v2364, 1
      %v2367 = vor.u32 %v2362, %v2366
      %v2369 = vshll.u32 %v2341, 16
      %v2371 = vrot.slane %v2369, 1
      %v2372 = vsel %vm2149, %v2367, %v2371
      %v2373 = vshrl.u32 %v2341, 16
      %v2375 = vor.u32 %v2373, %v2371
      %v2377 = vshll.u32 %v2342, 16
      %v2379 = vrot.slane %v2377, 1
      %v2380 = vsel %vm2149, %v2375, %v2379
      %v2381 = vshrl.u32 %v2342, 16
      %v2383 = vor.u32 %v2381, %v2379
      %v2385 = vshll.u32 %v2343, 16
      %v2387 = vrot.slane %v2385, 1
      %v2388 = vsel %vm2149, %v2383, %v2387
      %v2389 = vshrl.u32 %v2343, 16
      %v2391 = vor.u32 %v2389, %v2387
      %v2393 = vshll.u32 %v2344, 16
      %v2395 = vrot.slane %v2393, 1
      %v2396 = vsel %vm2149, %v2391, %v2395
      %v2397 = vshrl.u32 %v2344, 16
      %v2399 = vor.u32 %v2397, %v2395
      %v2401 = vshll.u32 %v2345, 16
      %v2403 = vrot.slane %v2401, 1
      %v2404 = vsel %vm2149, %v2399, %v2403
      %v2405 = vshrl.u32 %v2345, 16
      %v2407 = vor.u32 %v2405, %v2403
      %v2409 = vshll.u32 %v2360, 16
      %v2411 = vrot.slane %v2409, 1
      %v2412 = vsel %vm2149, %v2407, %v2411
      %2413 = vrot.lane.b32.xlu0 %v2372, 80
      %v2414 = vpop.permute.xlu0 %2413
      %2415 = vrot.lane.b32.xlu0 %v2380, 80
      %v2416 = vpop.permute.xlu0 %2415
      %2417 = vrot.lane.b32.xlu0 %v2388, 80
      %v2418 = vpop.permute.xlu0 %2417
      %2419 = vrot.lane.b32.xlu0 %v2396, 80
      %v2420 = vpop.permute.xlu0 %2419
      %2421 = vrot.lane.b32.xlu0 %v2404, 80
      %v2422 = vpop.permute.xlu0 %2421
      %2423 = vrot.lane.b32.xlu0 %v2412, 80
      %v2424 = vpop.permute.xlu0 %2423
      %v2427 = vunpack.c.l.b16 %v2083
      %v2428 = vunpack.c.l.b16 %v2084
      %v2429 = vpack.c.b16 %v2330, %v2329
      %v2430 = vpack.c.b16 %v2332, %v2331
      %v2431 = vpack.c.b16 %v2334, %v2333
      %v2432 = vpack.c.b16 %v2336, %v2335
      %v2433 = vpack.c.b16 %v2338, %v2337
      %v2434 = vpack.c.b16 %v2427, %v2339
      %v2435 = vpack.c.b16 %v2428, %v2428
      %v2437 = vshrl.u32 %v2429, 16
      %v2439 = vshll.u32 %v2429, 16
      %v2441 = vrot.slane %v2439, 1
      %v2442 = vor.u32 %v2437, %v2441
      %v2444 = vshll.u32 %v2430, 16
      %v2446 = vrot.slane %v2444, 1
      %v2447 = vsel %vm2149, %v2442, %v2446
      %v2448 = vshrl.u32 %v2430, 16
      %v2450 = vor.u32 %v2448, %v2446
      %v2452 = vshll.u32 %v2431, 16
      %v2454 = vrot.slane %v2452, 1
      %v2455 = vsel %vm2149, %v2450, %v2454
      %v2456 = vshrl.u32 %v2431, 16
      %v2458 = vor.u32 %v2456, %v2454
      %v2460 = vshll.u32 %v2432, 16
      %v2462 = vrot.slane %v2460, 1
      %v2463 = vsel %vm2149, %v2458, %v2462
      %v2464 = vshrl.u32 %v2432, 16
      %v2466 = vor.u32 %v2464, %v2462
      %v2468 = vshll.u32 %v2433, 16
      %v2470 = vrot.slane %v2468, 1
      %v2471 = vsel %vm2149, %v2466, %v2470
      %v2472 = vshrl.u32 %v2433, 16
      %v2474 = vor.u32 %v2472, %v2470
      %v2476 = vshll.u32 %v2434, 16
      %v2478 = vrot.slane %v2476, 1
      %v2479 = vsel %vm2149, %v2474, %v2478
      %v2480 = vshrl.u32 %v2434, 16
      %v2482 = vor.u32 %v2480, %v2478
      %v2484 = vshll.u32 %v2435, 16
      %v2486 = vrot.slane %v2484, 1
      %v2487 = vsel %vm2149, %v2482, %v2486
      %2488 = vrot.lane.b32.xlu0 %v2447, 96
      %v2489 = vpop.permute.xlu0 %2488
      %2490 = vrot.lane.b32.xlu0 %v2455, 96
      %v2491 = vpop.permute.xlu0 %2490
      %2492 = vrot.lane.b32.xlu0 %v2463, 96
      %v2493 = vpop.permute.xlu0 %2492
      %2494 = vrot.lane.b32.xlu0 %v2471, 96
      %v2495 = vpop.permute.xlu0 %2494
      %2496 = vrot.lane.b32.xlu0 %v2479, 96
      %v2497 = vpop.permute.xlu0 %2496
      %2498 = vrot.lane.b32.xlu0 %v2487, 96
      %v2499 = vpop.permute.xlu0 %2498
      %v2501 = vunpack.c.l.b16 %v2085
      %v2502 = vpack.c.b16 %v2330, %v2501
      %v2503 = vrot.slane %v2502, 1
      %v2504 = vrot.slane %v2430, 1
      %v2505 = vsel %vm2292, %v2503, %v2504
      %v2506 = vrot.slane %v2431, 1
      %v2507 = vsel %vm2292, %v2504, %v2506
      %v2508 = vrot.slane %v2432, 1
      %v2509 = vsel %vm2292, %v2506, %v2508
      %v2510 = vrot.slane %v2433, 1
      %v2511 = vsel %vm2292, %v2508, %v2510
      %v2512 = vrot.slane %v2434, 1
      %v2513 = vsel %vm2292, %v2510, %v2512
      %v2514 = vrot.slane %v2435, 1
      %v2515 = vsel %vm2292, %v2512, %v2514
      %2516 = vrot.lane.b32.xlu0 %v2505, 112
      %v2517 = vpop.permute.xlu0 %2516
      %2518 = vrot.lane.b32.xlu0 %v2507, 112
      %v2519 = vpop.permute.xlu0 %2518
      %2520 = vrot.lane.b32.xlu0 %v2509, 112
      %v2521 = vpop.permute.xlu0 %2520
      %2522 = vrot.lane.b32.xlu0 %v2511, 112
      %v2523 = vpop.permute.xlu0 %2522
      %2524 = vrot.lane.b32.xlu0 %v2513, 112
      %v2525 = vpop.permute.xlu0 %2524
      %2526 = vrot.lane.b32.xlu0 %v2515, 112
      %v2527 = vpop.permute.xlu0 %2526
      %v2539 = vunpack.c.l.b16 %v2086
      %v2540 = vunpack.c.l.b16 %v2087
      %v2541 = vunpack.c.l.b16 %v2088
      %v2542 = vunpack.c.l.b16 %v2089
      %v2543 = vunpack.c.l.b16 %v2090
      %v2544 = vunpack.c.l.b16 %v2091
      %v2545 = vunpack.c.l.b16 %v2092
      %v2546 = vunpack.c.l.b16 %v2093
      %v2547 = vunpack.c.l.b16 %v2094
      %v2548 = vunpack.c.l.b16 %v2095
      %v2549 = vunpack.c.l.b16 %v2096
      %v2550 = vpack.c.b16 %v2539, %v2427
      %v2551 = vpack.c.b16 %v2541, %v2540
      %v2552 = vpack.c.b16 %v2543, %v2542
      %v2553 = vpack.c.b16 %v2545, %v2544
      %v2554 = vpack.c.b16 %v2547, %v2546
      %v2555 = vpack.c.b16 %v2549, %v2548
      %v2557 = vunpack.c.l.b16 %v2097
      %v2558 = vpack.c.b16 %v2557, %v2557
      %v2560 = vshrl.u32 %v2550, 16
      %v2562 = vshll.u32 %v2550, 16
      %v2564 = vrot.slane %v2562, 1
      %v2565 = vor.u32 %v2560, %v2564
      %v2567 = vshll.u32 %v2551, 16
      %v2569 = vrot.slane %v2567, 1
      %v2570 = vsel %vm2149, %v2565, %v2569
      %v2571 = vshrl.u32 %v2551, 16
      %v2573 = vor.u32 %v2571, %v2569
      %v2575 = vshll.u32 %v2552, 16
      %v2577 = vrot.slane %v2575, 1
      %v2578 = vsel %vm2149, %v2573, %v2577
      %v2579 = vshrl.u32 %v2552, 16
      %v2581 = vor.u32 %v2579, %v2577
      %v2583 = vshll.u32 %v2553, 16
      %v2585 = vrot.slane %v2583, 1
      %v2586 = vsel %vm2149, %v2581, %v2585
      %v2587 = vshrl.u32 %v2553, 16
      %v2589 = vor.u32 %v2587, %v2585
      %v2591 = vshll.u32 %v2554, 16
      %v2593 = vrot.slane %v2591, 1
      %v2594 = vsel %vm2149, %v2589, %v2593
      %v2595 = vshrl.u32 %v2554, 16
      %v2597 = vor.u32 %v2595, %v2593
      %v2599 = vshll.u32 %v2555, 16
      %v2601 = vrot.slane %v2599, 1
      %v2602 = vsel %vm2149, %v2597, %v2601
      %v2603 = vshrl.u32 %v2555, 16
      %v2605 = vor.u32 %v2603, %v2601
      %v2607 = vshll.u32 %v2558, 16
      %v2609 = vrot.slane %v2607, 1
      %v2610 = vsel %vm2149, %v2605, %v2609
      %2611 = vrot.lane.b32.xlu0 %v2570, 16
      %v2612 = vpop.permute.xlu0 %2611
      %2613 = vrot.lane.b32.xlu0 %v2578, 16
      %v2614 = vpop.permute.xlu0 %2613
      %2615 = vrot.lane.b32.xlu0 %v2586, 16
      %v2616 = vpop.permute.xlu0 %2615
      %2617 = vrot.lane.b32.xlu0 %v2594, 16
      %v2618 = vpop.permute.xlu0 %2617
      %2619 = vrot.lane.b32.xlu0 %v2602, 16
      %v2620 = vpop.permute.xlu0 %2619
      %2621 = vrot.lane.b32.xlu0 %v2610, 16
      %v2622 = vpop.permute.xlu0 %2621
      %v2625 = vunpack.c.l.b16 %v2098
      %v2626 = vunpack.c.l.b16 %v2099
      %v2627 = vpack.c.b16 %v2540, %v2539
      %v2628 = vpack.c.b16 %v2542, %v2541
      %v2629 = vpack.c.b16 %v2544, %v2543
      %v2630 = vpack.c.b16 %v2546, %v2545
      %v2631 = vpack.c.b16 %v2548, %v2547
      %v2632 = vpack.c.b16 %v2625, %v2549
      %v2633 = vpack.c.b16 %v2626, %v2626
      %v2635 = vshrl.u32 %v2627, 16
      %v2637 = vshll.u32 %v2627, 16
      %v2639 = vrot.slane %v2637, 1
      %v2640 = vor.u32 %v2635, %v2639
      %v2642 = vshll.u32 %v2628, 16
      %v2644 = vrot.slane %v2642, 1
      %v2645 = vsel %vm2149, %v2640, %v2644
      %v2646 = vshrl.u32 %v2628, 16
      %v2648 = vor.u32 %v2646, %v2644
      %v2650 = vshll.u32 %v2629, 16
      %v2652 = vrot.slane %v2650, 1
      %v2653 = vsel %vm2149, %v2648, %v2652
      %v2654 = vshrl.u32 %v2629, 16
      %v2656 = vor.u32 %v2654, %v2652
      %v2658 = vshll.u32 %v2630, 16
      %v2660 = vrot.slane %v2658, 1
      %v2661 = vsel %vm2149, %v2656, %v2660
      %v2662 = vshrl.u32 %v2630, 16
      %v2664 = vor.u32 %v2662, %v2660
      %v2666 = vshll.u32 %v2631, 16
      %v2668 = vrot.slane %v2666, 1
      %v2669 = vsel %vm2149, %v2664, %v2668
      %v2670 = vshrl.u32 %v2631, 16
      %v2672 = vor.u32 %v2670, %v2668
      %v2674 = vshll.u32 %v2632, 16
      %v2676 = vrot.slane %v2674, 1
      %v2677 = vsel %vm2149, %v2672, %v2676
      %v2678 = vshrl.u32 %v2632, 16
      %v2680 = vor.u32 %v2678, %v2676
      %v2682 = vshll.u32 %v2633, 16
      %v2684 = vrot.slane %v2682, 1
      %v2685 = vsel %vm2149, %v2680, %v2684
      %2686 = vrot.lane.b32.xlu0 %v2645, 32
      %v2687 = vpop.permute.xlu0 %2686
      %2688 = vrot.lane.b32.xlu0 %v2653, 32
      %v2689 = vpop.permute.xlu0 %2688
      %2690 = vrot.lane.b32.xlu0 %v2661, 32
      %v2691 = vpop.permute.xlu0 %2690
      %2692 = vrot.lane.b32.xlu0 %v2669, 32
      %v2693 = vpop.permute.xlu0 %2692
      %2694 = vrot.lane.b32.xlu0 %v2677, 32
      %v2695 = vpop.permute.xlu0 %2694
      %2696 = vrot.lane.b32.xlu0 %v2685, 32
      %v2697 = vpop.permute.xlu0 %2696
      %v2699 = vunpack.c.l.b16 %v2100
      %v2700 = vpack.c.b16 %v2540, %v2699
      %v2701 = vrot.slane %v2700, 1
      %v2702 = vrot.slane %v2628, 1
      %v2703 = vsel %vm2292, %v2701, %v2702
      %v2704 = vrot.slane %v2629, 1
      %v2705 = vsel %vm2292, %v2702, %v2704
      %v2706 = vrot.slane %v2630, 1
      %v2707 = vsel %vm2292, %v2704, %v2706
      %v2708 = vrot.slane %v2631, 1
      %v2709 = vsel %vm2292, %v2706, %v2708
      %v2710 = vrot.slane %v2632, 1
      %v2711 = vsel %vm2292, %v2708, %v2710
      %v2712 = vrot.slane %v2633, 1
      %v2713 = vsel %vm2292, %v2710, %v2712
      %2714 = vrot.lane.b32.xlu0 %v2703, 48
      %v2715 = vpop.permute.xlu0 %2714
      %2716 = vrot.lane.b32.xlu0 %v2705, 48
      %v2717 = vpop.permute.xlu0 %2716
      %2718 = vrot.lane.b32.xlu0 %v2707, 48
      %v2719 = vpop.permute.xlu0 %2718
      %2720 = vrot.lane.b32.xlu0 %v2709, 48
      %v2721 = vpop.permute.xlu0 %2720
      %2722 = vrot.lane.b32.xlu0 %v2711, 48
      %v2723 = vpop.permute.xlu0 %2722
      %2724 = vrot.lane.b32.xlu0 %v2713, 48
      %v2725 = vpop.permute.xlu0 %2724
      %v2737 = vunpack.c.l.b16 %v2101
      %v2738 = vunpack.c.l.b16 %v2102
      %v2739 = vunpack.c.l.b16 %v2103
      %v2740 = vunpack.c.l.b16 %v2104
      %v2741 = vunpack.c.l.b16 %v2105
      %v2742 = vunpack.c.l.b16 %v2106
      %v2743 = vunpack.c.l.b16 %v2107
      %v2744 = vunpack.c.l.b16 %v2108
      %v2745 = vunpack.c.l.b16 %v2109
      %v2746 = vunpack.c.l.b16 %v2110
      %v2747 = vunpack.c.l.b16 %v2111
      %v2748 = vpack.c.b16 %v2737, %v2625
      %v2749 = vpack.c.b16 %v2739, %v2738
      %v2750 = vpack.c.b16 %v2741, %v2740
      %v2751 = vpack.c.b16 %v2743, %v2742
      %v2752 = vpack.c.b16 %v2745, %v2744
      %v2753 = vpack.c.b16 %v2747, %v2746
      %2754 = vrot.lane.b32.xlu0 %v2748, 64
      %v2755 = vpop.permute.xlu0 %2754
      %2756 = vrot.lane.b32.xlu0 %v2749, 64
      %v2757 = vpop.permute.xlu0 %2756
      %2758 = vrot.lane.b32.xlu0 %v2750, 64
      %v2759 = vpop.permute.xlu0 %2758
      %2760 = vrot.lane.b32.xlu0 %v2751, 64
      %v2761 = vpop.permute.xlu0 %2760
      %2762 = vrot.lane.b32.xlu0 %v2752, 64
      %v2763 = vpop.permute.xlu0 %2762
      %2764 = vrot.lane.b32.xlu0 %v2753, 64
      %v2765 = vpop.permute.xlu0 %2764
      %v2767 = vunpack.c.l.b16 %v2112
      %v2768 = vpack.c.b16 %v2767, %v2767
      %v2770 = vshrl.u32 %v2748, 16
      %v2772 = vshll.u32 %v2748, 16
      %v2774 = vrot.slane %v2772, 1
      %v2775 = vor.u32 %v2770, %v2774
      %v2777 = vshll.u32 %v2749, 16
      %v2779 = vrot.slane %v2777, 1
      %v2780 = vsel %vm2149, %v2775, %v2779
      %v2781 = vshrl.u32 %v2749, 16
      %v2783 = vor.u32 %v2781, %v2779
      %v2785 = vshll.u32 %v2750, 16
      %v2787 = vrot.slane %v2785, 1
      %v2788 = vsel %vm2149, %v2783, %v2787
      %v2789 = vshrl.u32 %v2750, 16
      %v2791 = vor.u32 %v2789, %v2787
      %v2793 = vshll.u32 %v2751, 16
      %v2795 = vrot.slane %v2793, 1
      %v2796 = vsel %vm2149, %v2791, %v2795
      %v2797 = vshrl.u32 %v2751, 16
      %v2799 = vor.u32 %v2797, %v2795
      %v2801 = vshll.u32 %v2752, 16
      %v2803 = vrot.slane %v2801, 1
      %v2804 = vsel %vm2149, %v2799, %v2803
      %v2805 = vshrl.u32 %v2752, 16
      %v2807 = vor.u32 %v2805, %v2803
      %v2809 = vshll.u32 %v2753, 16
      %v2811 = vrot.slane %v2809, 1
      %v2812 = vsel %vm2149, %v2807, %v2811
      %v2813 = vshrl.u32 %v2753, 16
      %v2815 = vor.u32 %v2813, %v2811
      %v2817 = vshll.u32 %v2768, 16
      %v2819 = vrot.slane %v2817, 1
      %v2820 = vsel %vm2149, %v2815, %v2819
      %2821 = vrot.lane.b32.xlu0 %v2780, 80
      %v2822 = vpop.permute.xlu0 %2821
      %2823 = vrot.lane.b32.xlu0 %v2788, 80
      %v2824 = vpop.permute.xlu0 %2823
      %2825 = vrot.lane.b32.xlu0 %v2796, 80
      %v2826 = vpop.permute.xlu0 %2825
      %2827 = vrot.lane.b32.xlu0 %v2804, 80
      %v2828 = vpop.permute.xlu0 %2827
      %2829 = vrot.lane.b32.xlu0 %v2812, 80
      %v2830 = vpop.permute.xlu0 %2829
      %2831 = vrot.lane.b32.xlu0 %v2820, 80
      %v2832 = vpop.permute.xlu0 %2831
      %v2835 = vunpack.c.l.b16 %v2113
      %v2836 = vunpack.c.l.b16 %v2114
      %v2837 = vpack.c.b16 %v2738, %v2737
      %v2838 = vpack.c.b16 %v2740, %v2739
      %v2839 = vpack.c.b16 %v2742, %v2741
      %v2840 = vpack.c.b16 %v2744, %v2743
      %v2841 = vpack.c.b16 %v2746, %v2745
      %v2842 = vpack.c.b16 %v2835, %v2747
      %v2843 = vpack.c.b16 %v2836, %v2836
      %v2845 = vshrl.u32 %v2837, 16
      %v2847 = vshll.u32 %v2837, 16
      %v2849 = vrot.slane %v2847, 1
      %v2850 = vor.u32 %v2845, %v2849
      %v2852 = vshll.u32 %v2838, 16
      %v2854 = vrot.slane %v2852, 1
      %v2855 = vsel %vm2149, %v2850, %v2854
      %v2856 = vshrl.u32 %v2838, 16
      %v2858 = vor.u32 %v2856, %v2854
      %v2860 = vshll.u32 %v2839, 16
      %v2862 = vrot.slane %v2860, 1
      %v2863 = vsel %vm2149, %v2858, %v2862
      %v2864 = vshrl.u32 %v2839, 16
      %v2866 = vor.u32 %v2864, %v2862
      %v2868 = vshll.u32 %v2840, 16
      %v2870 = vrot.slane %v2868, 1
      %v2871 = vsel %vm2149, %v2866, %v2870
      %v2872 = vshrl.u32 %v2840, 16
      %v2874 = vor.u32 %v2872, %v2870
      %v2876 = vshll.u32 %v2841, 16
      %v2878 = vrot.slane %v2876, 1
      %v2879 = vsel %vm2149, %v2874, %v2878
      %v2880 = vshrl.u32 %v2841, 16
      %v2882 = vor.u32 %v2880, %v2878
      %v2884 = vshll.u32 %v2842, 16
      %v2886 = vrot.slane %v2884, 1
      %v2887 = vsel %vm2149, %v2882, %v2886
      %v2888 = vshrl.u32 %v2842, 16
      %v2890 = vor.u32 %v2888, %v2886
      %v2892 = vshll.u32 %v2843, 16
      %v2894 = vrot.slane %v2892, 1
      %v2895 = vsel %vm2149, %v2890, %v2894
      %2896 = vrot.lane.b32.xlu0 %v2855, 96
      %v2897 = vpop.permute.xlu0 %2896
      %2898 = vrot.lane.b32.xlu0 %v2863, 96
      %v2899 = vpop.permute.xlu0 %2898
      %2900 = vrot.lane.b32.xlu0 %v2871, 96
      %v2901 = vpop.permute.xlu0 %2900
      %2902 = vrot.lane.b32.xlu0 %v2879, 96
      %v2903 = vpop.permute.xlu0 %2902
      %2904 = vrot.lane.b32.xlu0 %v2887, 96
      %v2905 = vpop.permute.xlu0 %2904
      %2906 = vrot.lane.b32.xlu0 %v2895, 96
      %v2907 = vpop.permute.xlu0 %2906
      %v2909 = vunpack.c.l.b16 %v2115
      %v2910 = vpack.c.b16 %v2738, %v2909
      %v2911 = vrot.slane %v2910, 1
      %v2912 = vrot.slane %v2838, 1
      %v2913 = vsel %vm2292, %v2911, %v2912
      %v2914 = vrot.slane %v2839, 1
      %v2915 = vsel %vm2292, %v2912, %v2914
      %v2916 = vrot.slane %v2840, 1
      %v2917 = vsel %vm2292, %v2914, %v2916
      %v2918 = vrot.slane %v2841, 1
      %v2919 = vsel %vm2292, %v2916, %v2918
      %v2920 = vrot.slane %v2842, 1
      %v2921 = vsel %vm2292, %v2918, %v2920
      %v2922 = vrot.slane %v2843, 1
      %v2923 = vsel %vm2292, %v2920, %v2922
      %2924 = vrot.lane.b32.xlu0 %v2913, 112
      %v2925 = vpop.permute.xlu0 %2924
      %2926 = vrot.lane.b32.xlu0 %v2915, 112
      %v2927 = vpop.permute.xlu0 %2926
      %2928 = vrot.lane.b32.xlu0 %v2917, 112
      %v2929 = vpop.permute.xlu0 %2928
      %2930 = vrot.lane.b32.xlu0 %v2919, 112
      %v2931 = vpop.permute.xlu0 %2930
      %2932 = vrot.lane.b32.xlu0 %v2921, 112
      %v2933 = vpop.permute.xlu0 %2932
      %2934 = vrot.lane.b32.xlu0 %v2923, 112
      %v2935 = vpop.permute.xlu0 %2934
      %v2937 = vsel %vm868, %v2140, %v2203
      %v2939 = vsel %vm868, %v2141, %v2205
      %v2941 = vsel %vm868, %v2142, %v2207
      %v2943 = vsel %vm868, %v2143, %v2209
      %v2945 = vsel %vm868, %v2144, %v2211
      %v2947 = vsel %vm868, %v2145, %v2213
      %v2949 = vsel %vm730, %v2937, %v2278
      %v2951 = vsel %vm730, %v2939, %v2280
      %v2953 = vsel %vm730, %v2941, %v2282
      %v2955 = vsel %vm730, %v2943, %v2284
      %v2957 = vsel %vm730, %v2945, %v2286
      %v2959 = vsel %vm730, %v2947, %v2288
      %vm2960 = vcmask 392192
      %v2962 = vsel %vm2960, %v2949, %v2307
      %v2964 = vsel %vm2960, %v2951, %v2309
      %v2966 = vsel %vm2960, %v2953, %v2311
      %v2968 = vsel %vm2960, %v2955, %v2313
      %v2970 = vsel %vm2960, %v2957, %v2315
      %v2972 = vsel %vm2960, %v2959, %v2317
      %vm2973 = vcmask 523264
      %v2975 = vsel %vm2973, %v2962, %v2347
      %v2977 = vsel %vm2973, %v2964, %v2349
      %v2979 = vsel %vm2973, %v2966, %v2351
      %v2981 = vsel %vm2973, %v2968, %v2353
      %v2983 = vsel %vm2973, %v2970, %v2355
      %v2985 = vsel %vm2973, %v2972, %v2357
      %vm2986 = vcmask 654336
      %v2988 = vsel %vm2986, %v2975, %v2414
      %v2990 = vsel %vm2986, %v2977, %v2416
      %v2992 = vsel %vm2986, %v2979, %v2418
      %v2994 = vsel %vm2986, %v2981, %v2420
      %v2996 = vsel %vm2986, %v2983, %v2422
      %v2998 = vsel %vm2986, %v2985, %v2424
      %vm2999 = vcmask 785408
      %v3001 = vsel %vm2999, %v2988, %v2489
      %v3003 = vsel %vm2999, %v2990, %v2491
      %v3005 = vsel %vm2999, %v2992, %v2493
      %v3007 = vsel %vm2999, %v2994, %v2495
      %v3009 = vsel %vm2999, %v2996, %v2497
      %v3011 = vsel %vm2999, %v2998, %v2499
      %vm3012 = vcmask 916480
      %v3014 = vsel %vm3012, %v3001, %v2517
      %v3017 = vsel %vm3012, %v3003, %v2519
      %v3020 = vsel %vm3012, %v3005, %v2521
      %v3023 = vsel %vm3012, %v3007, %v2523
      %v3026 = vsel %vm3012, %v3009, %v2525
      %v3029 = vsel %vm3012, %v3011, %v2527
      %v3032 = vsel %vm868, %v2550, %v2612
      %v3034 = vsel %vm868, %v2551, %v2614
      %v3036 = vsel %vm868, %v2552, %v2616
      %v3038 = vsel %vm868, %v2553, %v2618
      %v3040 = vsel %vm868, %v2554, %v2620
      %v3042 = vsel %vm868, %v2555, %v2622
      %v3044 = vsel %vm730, %v3032, %v2687
      %v3046 = vsel %vm730, %v3034, %v2689
      %v3048 = vsel %vm730, %v3036, %v2691
      %v3050 = vsel %vm730, %v3038, %v2693
      %v3052 = vsel %vm730, %v3040, %v2695
      %v3054 = vsel %vm730, %v3042, %v2697
      %v3056 = vsel %vm2960, %v3044, %v2715
      %v3058 = vsel %vm2960, %v3046, %v2717
      %v3060 = vsel %vm2960, %v3048, %v2719
      %v3062 = vsel %vm2960, %v3050, %v2721
      %v3064 = vsel %vm2960, %v3052, %v2723
      %v3066 = vsel %vm2960, %v3054, %v2725
      %v3068 = vsel %vm2973, %v3056, %v2755
      %v3070 = vsel %vm2973, %v3058, %v2757
      %v3072 = vsel %vm2973, %v3060, %v2759
      %v3074 = vsel %vm2973, %v3062, %v2761
      %v3076 = vsel %vm2973, %v3064, %v2763
      %v3078 = vsel %vm2973, %v3066, %v2765
      %v3080 = vsel %vm2986, %v3068, %v2822
      %v3082 = vsel %vm2986, %v3070, %v2824
      %v3084 = vsel %vm2986, %v3072, %v2826
      %v3086 = vsel %vm2986, %v3074, %v2828
      %v3088 = vsel %vm2986, %v3076, %v2830
      %v3090 = vsel %vm2986, %v3078, %v2832
      %v3092 = vsel %vm2999, %v3080, %v2897
      %v3094 = vsel %vm2999, %v3082, %v2899
      %v3096 = vsel %vm2999, %v3084, %v2901
      %v3098 = vsel %vm2999, %v3086, %v2903
      %v3100 = vsel %vm2999, %v3088, %v2905
      %v3102 = vsel %vm2999, %v3090, %v2907
      %v3104 = vsel %vm3012, %v3092, %v2925
      %v3107 = vsel %vm3012, %v3094, %v2927
      %v3110 = vsel %vm3012, %v3096, %v2929
      %v3113 = vsel %vm3012, %v3098, %v2931
      %v3116 = vsel %vm3012, %v3100, %v2933
      %v3119 = vsel %vm3012, %v3102, %v2935
      %v3121 = vld [vmem:[%s4] sm:$0xf]
      %v3122 = vld [vmem:[%s4 + $0x4] sm:$0xf]
      %v3123 = vld [vmem:[%s4 + $0x8] sm:$0xf]
      %v3124 = vld [vmem:[%s4 + $0xc] sm:$0xf]
      %v3125 = vld [vmem:[%s4 + $0x10] sm:$0xf]
      %v3126 = vld [vmem:[%s4 + $0x14] sm:$0xf]
      %v3127 = vld [vmem:[%s4 + $0x18] sm:$0xf]
      %v3128 = vld [vmem:[%s4 + $0x1c] sm:$0xf]
      %v3129 = vld [vmem:[%s4 + $0x20] sm:$0xf]
      %v3130 = vld [vmem:[%s4 + $0x24] sm:$0xf]
      %v3131 = vld [vmem:[%s4 + $0x28] sm:$0xf]
      %v3132 = vld [vmem:[%s4 + $0x2c] sm:$0xf]
      %v3133 = vld [vmem:[%s4 + $0x30] sm:$0xf]
      %v3134 = vld [vmem:[%s4 + $0x34] sm:$0xf]
      %v3135 = vld [vmem:[%s4 + $0x38] sm:$0xf]
      %v3136 = vld [vmem:[%s4 + $0x3c] sm:$0xf]
      %v3137 = vld [vmem:[%s4 + $0x40] sm:$0xf]
      %v3138 = vld [vmem:[%s4 + $0x44] sm:$0xf]
      %v3139 = vld [vmem:[%s4 + $0x48] sm:$0xf]
      %v3140 = vld [vmem:[%s4 + $0x4c] sm:$0xf]
      %v3141 = vld [vmem:[%s4 + $0x50] sm:$0xf]
      %v3142 = vld [vmem:[%s4 + $0x54] sm:$0xf]
      %v3143 = vld [vmem:[%s4 + $0x58] sm:$0xf]
      %v3144 = vld [vmem:[%s4 + $0x5c] sm:$0xf]
      %v3145 = vld [vmem:[%s4 + $0x60] sm:$0xf]
      %v3146 = vld [vmem:[%s4 + $0x64] sm:$0xf]
      %v3147 = vld [vmem:[%s4 + $0x68] sm:$0xf]
      %v3148 = vld [vmem:[%s4 + $0x6c] sm:$0xf]
      %v3149 = vld [vmem:[%s4 + $0x70] sm:$0xf]
      %v3150 = vld [vmem:[%s4 + $0x74] sm:$0xf]
      %v3151 = vld [vmem:[%s4 + $0x78] sm:$0xf]
      %v3152 = vld [vmem:[%s4 + $0x7c] sm:$0xf]
      %v3185 = vunpack.c.l.b16 %v3121
      %v3186 = vunpack.c.l.b16 %v3122
      %v3187 = vunpack.c.l.b16 %v3123
      %v3188 = vunpack.c.l.b16 %v3124
      %v3189 = vunpack.c.l.b16 %v3125
      %v3190 = vunpack.c.l.b16 %v3126
      %v3191 = vunpack.c.l.b16 %v3127
      %v3192 = vunpack.c.l.b16 %v3128
      %v3193 = vunpack.c.l.b16 %v3129
      %v3194 = vunpack.c.l.b16 %v3130
      %v3195 = vunpack.c.l.b16 %v3131
      %v3196 = vunpack.c.l.b16 %v3132
      %v3197 = vunpack.c.l.b16 %v3133
      %v3198 = vunpack.c.l.b16 %v3134
      %v3199 = vunpack.c.l.b16 %v3135
      %v3200 = vunpack.c.l.b16 %v3136
      %v3201 = vunpack.c.l.b16 %v3137
      %v3202 = vunpack.c.l.b16 %v3138
      %v3203 = vunpack.c.l.b16 %v3139
      %v3204 = vunpack.c.l.b16 %v3140
      %v3205 = vunpack.c.l.b16 %v3141
      %v3206 = vunpack.c.l.b16 %v3142
      %v3207 = vunpack.c.l.b16 %v3143
      %v3208 = vunpack.c.l.b16 %v3144
      %v3209 = vunpack.c.l.b16 %v3145
      %v3210 = vunpack.c.l.b16 %v3146
      %v3211 = vunpack.c.l.b16 %v3147
      %v3212 = vunpack.c.l.b16 %v3148
      %v3213 = vunpack.c.l.b16 %v3149
      %v3214 = vunpack.c.l.b16 %v3150
      %v3215 = vunpack.c.l.b16 %v3151
      %v3216 = vunpack.c.l.b16 %v3152
      %v3217 = vpack.c.b16 %v3186, %v3185
      %v3218 = vpack.c.b16 %v3188, %v3187
      %v3219 = vpack.c.b16 %v3190, %v3189
      %v3220 = vpack.c.b16 %v3192, %v3191
      %v3221 = vpack.c.b16 %v3194, %v3193
      %v3222 = vpack.c.b16 %v3196, %v3195
      %v3223 = vpack.c.b16 %v3198, %v3197
      %v3224 = vpack.c.b16 %v3200, %v3199
      %v3225 = vpack.c.b16 %v3202, %v3201
      %v3226 = vpack.c.b16 %v3204, %v3203
      %v3227 = vpack.c.b16 %v3206, %v3205
      %v3228 = vpack.c.b16 %v3208, %v3207
      %v3229 = vpack.c.b16 %v3210, %v3209
      %v3230 = vpack.c.b16 %v3212, %v3211
      %v3231 = vpack.c.b16 %v3214, %v3213
      %v3232 = vpack.c.b16 %v3216, %v3215
      %3249 = vmatpush.bf16.msra.mxu0 %v3224
      %3250 = vmatpush.bf16.msra.mxu0 %v3223
      %3251 = vmatpush.bf16.msra.mxu0 %v3222
      %3252 = vmatpush.bf16.msra.mxu0 %v3221
      %3253 = vmatpush.bf16.msra.mxu0 %v3220
      %3254 = vmatpush.bf16.msra.mxu0 %v3219
      %3255 = vmatpush.bf16.msra.mxu0 %v3218
      %3256 = vmatpush.bf16.msra.mxu0 %v3217
      %3257 = vmatmul.bf16.gmra.mxu0 %v3014
      %v3258 = vpop.f32.mrf.mxu0
      %v3259 = vadd.f32 0.0, %v3258
      %v3260 = vpop.f32.mrf.mxu0
      %v3261 = vadd.f32 0.0, %v3260
      %3262 = vmatmul.bf16.gmra.mxu0 %v3017
      %v3263 = vpop.f32.mrf.mxu0
      %v3264 = vadd.f32 0.0, %v3263
      %v3265 = vpop.f32.mrf.mxu0
      %v3266 = vadd.f32 0.0, %v3265
      %3267 = vmatmul.bf16.gmra.mxu0 %v3020
      %v3268 = vpop.f32.mrf.mxu0
      %v3269 = vadd.f32 0.0, %v3268
      %v3270 = vpop.f32.mrf.mxu0
      %v3271 = vadd.f32 0.0, %v3270
      %3272 = vmatmul.bf16.gmra.mxu0 %v3023
      %v3273 = vpop.f32.mrf.mxu0
      %v3274 = vadd.f32 0.0, %v3273
      %v3275 = vpop.f32.mrf.mxu0
      %v3276 = vadd.f32 0.0, %v3275
      %3277 = vmatmul.bf16.gmra.mxu0 %v3026
      %v3278 = vpop.f32.mrf.mxu0
      %v3279 = vadd.f32 0.0, %v3278
      %v3280 = vpop.f32.mrf.mxu0
      %v3281 = vadd.f32 0.0, %v3280
      %3282 = vmatmul.bf16.gmra.mxu0 %v3029
      %v3283 = vpop.f32.mrf.mxu0
      %v3284 = vadd.f32 0.0, %v3283
      %v3285 = vpop.f32.mrf.mxu0
      %v3286 = vadd.f32 0.0, %v3285
      %3287 = vdwg.mxu0
      %3288 = vmatpush.bf16.msra.mxu0 %v3232
      %3289 = vmatpush.bf16.msra.mxu0 %v3231
      %3290 = vmatpush.bf16.msra.mxu0 %v3230
      %3291 = vmatpush.bf16.msra.mxu0 %v3229
      %3292 = vmatpush.bf16.msra.mxu0 %v3228
      %3293 = vmatpush.bf16.msra.mxu0 %v3227
      %3294 = vmatpush.bf16.msra.mxu0 %v3226
      %3295 = vmatpush.bf16.msra.mxu0 %v3225
      %3296 = vmatmul.bf16.gmra.mxu0 %v3104
      %v3297 = vpop.f32.mrf.mxu0
      %v3298 = vadd.f32 %v3259, %v3297
      %v3299 = vpop.f32.mrf.mxu0
      %v3300 = vadd.f32 %v3261, %v3299
      %3301 = vmatmul.bf16.gmra.mxu0 %v3107
      %v3302 = vpop.f32.mrf.mxu0
      %v3303 = vadd.f32 %v3264, %v3302
      %v3304 = vpop.f32.mrf.mxu0
      %v3305 = vadd.f32 %v3266, %v3304
      %3306 = vmatmul.bf16.gmra.mxu0 %v3110
      %v3307 = vpop.f32.mrf.mxu0
      %v3308 = vadd.f32 %v3269, %v3307
      %v3309 = vpop.f32.mrf.mxu0
      %v3310 = vadd.f32 %v3271, %v3309
      %3311 = vmatmul.bf16.gmra.mxu0 %v3113
      %v3312 = vpop.f32.mrf.mxu0
      %v3313 = vadd.f32 %v3274, %v3312
      %v3314 = vpop.f32.mrf.mxu0
      %v3315 = vadd.f32 %v3276, %v3314
      %3316 = vmatmul.bf16.gmra.mxu0 %v3116
      %v3317 = vpop.f32.mrf.mxu0
      %v3318 = vadd.f32 %v3279, %v3317
      %v3319 = vpop.f32.mrf.mxu0
      %v3320 = vadd.f32 %v3281, %v3319
      %3321 = vmatmul.bf16.gmra.mxu0 %v3119
      %v3322 = vpop.f32.mrf.mxu0
      %v3323 = vadd.f32 %v3284, %v3322
      %v3324 = vpop.f32.mrf.mxu0
      %v3325 = vadd.f32 %v3286, %v3324
      %3326 = vdwg.mxu0
      %v3327 = vld [vmem:[%s6] sm:$0xff]
      %v3328 = vld [vmem:[%s6 + $0x8] sm:$0xff]
      %v3329 = vld [vmem:[%s6 + $0x10] sm:$0xff]
      %v3330 = vld [vmem:[%s6 + $0x18] sm:$0xff]
      %v3331 = vld [vmem:[%s6 + $0x20] sm:$0xff]
      %v3332 = vld [vmem:[%s6 + $0x28] sm:$0xff]
      %v3333 = vld [vmem:[%s6 + $0x30] sm:$0xff]
      %v3334 = vld [vmem:[%s6 + $0x38] sm:$0xff]
      %v3335 = vld [vmem:[%s6 + $0x40] sm:$0xff]
      %v3336 = vld [vmem:[%s6 + $0x48] sm:$0xff]
      %v3337 = vld [vmem:[%s6 + $0x50] sm:$0xff]
      %v3338 = vld [vmem:[%s6 + $0x58] sm:$0xff]
      %vm3339 = vcmp.gt.f32.partialorder %v3327, 0.0
      %vm3340 = vcmp.gt.f32.partialorder %v3328, 0.0
      %vm3341 = vcmp.gt.f32.partialorder %v3329, 0.0
      %vm3342 = vcmp.gt.f32.partialorder %v3330, 0.0
      %vm3343 = vcmp.gt.f32.partialorder %v3331, 0.0
      %vm3344 = vcmp.gt.f32.partialorder %v3332, 0.0
      %vm3345 = vcmp.gt.f32.partialorder %v3333, 0.0
      %vm3346 = vcmp.gt.f32.partialorder %v3334, 0.0
      %vm3347 = vcmp.gt.f32.partialorder %v3335, 0.0
      %vm3348 = vcmp.gt.f32.partialorder %v3336, 0.0
      %vm3349 = vcmp.gt.f32.partialorder %v3337, 0.0
      %vm3350 = vcmp.gt.f32.partialorder %v3338, 0.0
      %v3351 = vsel %vm3339, 1, 0
      %v3352 = vsel %vm3340, 1, 0
      %v3353 = vsel %vm3341, 1, 0
      %v3354 = vsel %vm3342, 1, 0
      %v3355 = vsel %vm3343, 1, 0
      %v3356 = vsel %vm3344, 1, 0
      %v3357 = vsel %vm3345, 1, 0
      %v3358 = vsel %vm3346, 1, 0
      %v3359 = vsel %vm3347, 1, 0
      %v3360 = vsel %vm3348, 1, 0
      %v3361 = vsel %vm3349, 1, 0
      %v3362 = vsel %vm3350, 1, 0
      %3363 = vset.pattern.permute.xlu0 0
      %3364 = vperm.xlu0 %3363, %v3351
      %v3365 = vpop.permute.xlu0 %3364
      %3366 = vset.pattern.permute.xlu0 0
      %3367 = vperm.xlu0 %3366, %v3352
      %v3368 = vpop.permute.xlu0 %3367
      %3369 = vset.pattern.permute.xlu0 0
      %3370 = vperm.xlu0 %3369, %v3353
      %v3371 = vpop.permute.xlu0 %3370
      %3372 = vset.pattern.permute.xlu0 0
      %3373 = vperm.xlu0 %3372, %v3354
      %v3374 = vpop.permute.xlu0 %3373
      %3375 = vset.pattern.permute.xlu0 0
      %3376 = vperm.xlu0 %3375, %v3355
      %v3377 = vpop.permute.xlu0 %3376
      %3378 = vset.pattern.permute.xlu0 0
      %3379 = vperm.xlu0 %3378, %v3356
      %v3380 = vpop.permute.xlu0 %3379
      %3381 = vset.pattern.permute.xlu0 0
      %3382 = vperm.xlu0 %3381, %v3357
      %v3383 = vpop.permute.xlu0 %3382
      %3384 = vset.pattern.permute.xlu0 0
      %3385 = vperm.xlu0 %3384, %v3358
      %v3386 = vpop.permute.xlu0 %3385
      %3387 = vset.pattern.permute.xlu0 0
      %3388 = vperm.xlu0 %3387, %v3359
      %v3389 = vpop.permute.xlu0 %3388
      %3390 = vset.pattern.permute.xlu0 0
      %3391 = vperm.xlu0 %3390, %v3360
      %v3392 = vpop.permute.xlu0 %3391
      %3393 = vset.pattern.permute.xlu0 0
      %3394 = vperm.xlu0 %3393, %v3361
      %v3395 = vpop.permute.xlu0 %3394
      %3396 = vset.pattern.permute.xlu0 0
      %3397 = vperm.xlu0 %3396, %v3362
      %v3398 = vpop.permute.xlu0 %3397
      %vm3399 = vcmp.eq.s32.totalorder %v3365, 1
      %vm3400 = vcmp.eq.s32.totalorder %v3368, 1
      %vm3401 = vcmp.eq.s32.totalorder %v3371, 1
      %vm3402 = vcmp.eq.s32.totalorder %v3374, 1
      %vm3403 = vcmp.eq.s32.totalorder %v3377, 1
      %vm3404 = vcmp.eq.s32.totalorder %v3380, 1
      %vm3405 = vcmp.eq.s32.totalorder %v3383, 1
      %vm3406 = vcmp.eq.s32.totalorder %v3386, 1
      %vm3407 = vcmp.eq.s32.totalorder %v3389, 1
      %vm3408 = vcmp.eq.s32.totalorder %v3392, 1
      %vm3409 = vcmp.eq.s32.totalorder %v3395, 1
      %vm3410 = vcmp.eq.s32.totalorder %v3398, 1
      %v3411 = vsel %vm3399, %v3298, 0.0
      %v3412 = vsel %vm3400, %v3300, 0.0
      %v3413 = vsel %vm3401, %v3303, 0.0
      %v3414 = vsel %vm3402, %v3305, 0.0
      %v3415 = vsel %vm3403, %v3308, 0.0
      %v3416 = vsel %vm3404, %v3310, 0.0
      %v3417 = vsel %vm3405, %v3313, 0.0
      %v3418 = vsel %vm3406, %v3315, 0.0
      %v3419 = vsel %vm3407, %v3318, 0.0
      %v3420 = vsel %vm3408, %v3320, 0.0
      %v3421 = vsel %vm3409, %v3323, 0.0
      %v3422 = vsel %vm3410, %v3325, 0.0
      %v3423 = vsel %vm730, %v3411, 0.0
      %v3424 = vsel %vm730, %v3412, 0.0
      %v3425 = vadd.f32 %v3423, %v3424
      %v3426 = vsel %vm730, %v3413, 0.0
      %v3427 = vadd.f32 %v3425, %v3426
      %v3428 = vsel %vm730, %v3414, 0.0
      %v3429 = vadd.f32 %v3427, %v3428
      %v3430 = vsel %vm730, %v3415, 0.0
      %v3431 = vadd.f32 %v3429, %v3430
      %v3432 = vsel %vm730, %v3416, 0.0
      %v3433 = vadd.f32 %v3431, %v3432
      %v3434 = vsel %vm730, %v3417, 0.0
      %v3435 = vadd.f32 %v3433, %v3434
      %v3436 = vsel %vm730, %v3418, 0.0
      %v3437 = vadd.f32 %v3435, %v3436
      %v3438 = vsel %vm730, %v3419, 0.0
      %v3439 = vadd.f32 %v3437, %v3438
      %v3440 = vsel %vm730, %v3420, 0.0
      %v3441 = vadd.f32 %v3439, %v3440
      %v3442 = vsel %vm730, %v3421, 0.0
      %v3443 = vadd.f32 %v3441, %v3442
      %v3444 = vsel %vm730, %v3422, 0.0
      %v3445 = vadd.f32 %v3443, %v3444
      %v3446 = vrot.slane %v3445, 4
      %v3447 = vadd.f32 %v3445, %v3446
      %v3448 = vrot.slane %v3447, 2
      %v3449 = vadd.f32 %v3447, %v3448
      %v3450 = vrot.slane %v3449, 1
      %v3451 = vadd.f32 %v3449, %v3450
      %v3452 = vmul.f32 %v3451, 0.015625
      %v3453 = vsub.f32 %v3298, %v3452
      %v3454 = vsub.f32 %v3300, %v3452
      %v3455 = vsub.f32 %v3303, %v3452
      %v3456 = vsub.f32 %v3305, %v3452
      %v3457 = vsub.f32 %v3308, %v3452
      %v3458 = vsub.f32 %v3310, %v3452
      %v3459 = vsub.f32 %v3313, %v3452
      %v3460 = vsub.f32 %v3315, %v3452
      %v3461 = vsub.f32 %v3318, %v3452
      %v3462 = vsub.f32 %v3320, %v3452
      %v3463 = vsub.f32 %v3323, %v3452
      %v3464 = vsub.f32 %v3325, %v3452
      %v3465 = vsel %vm3399, %v3453, 0.0
      %v3466 = vsel %vm3400, %v3454, 0.0
      %v3467 = vsel %vm3401, %v3455, 0.0
      %v3468 = vsel %vm3402, %v3456, 0.0
      %v3469 = vsel %vm3403, %v3457, 0.0
      %v3470 = vsel %vm3404, %v3458, 0.0
      %v3471 = vsel %vm3405, %v3459, 0.0
      %v3472 = vsel %vm3406, %v3460, 0.0
      %v3473 = vsel %vm3407, %v3461, 0.0
      %v3474 = vsel %vm3408, %v3462, 0.0
      %v3475 = vsel %vm3409, %v3463, 0.0
      %v3476 = vsel %vm3410, %v3464, 0.0
      %v3477 = vmul.f32 %v3465, %v3465
      %v3478 = vmul.f32 %v3466, %v3466
      %v3479 = vmul.f32 %v3467, %v3467
      %v3480 = vmul.f32 %v3468, %v3468
      %v3481 = vmul.f32 %v3469, %v3469
      %v3482 = vmul.f32 %v3470, %v3470
      %v3483 = vmul.f32 %v3471, %v3471
      %v3484 = vmul.f32 %v3472, %v3472
      %v3485 = vmul.f32 %v3473, %v3473
      %v3486 = vmul.f32 %v3474, %v3474
      %v3487 = vmul.f32 %v3475, %v3475
      %v3488 = vmul.f32 %v3476, %v3476
      %v3489 = vsel %vm730, %v3477, 0.0
      %v3490 = vsel %vm730, %v3478, 0.0
      %v3491 = vadd.f32 %v3489, %v3490
      %v3492 = vsel %vm730, %v3479, 0.0
      %v3493 = vadd.f32 %v3491, %v3492
      %v3494 = vsel %vm730, %v3480, 0.0
      %v3495 = vadd.f32 %v3493, %v3494
      %v3496 = vsel %vm730, %v3481, 0.0
      %v3497 = vadd.f32 %v3495, %v3496
      %v3498 = vsel %vm730, %v3482, 0.0
      %v3499 = vadd.f32 %v3497, %v3498
      %v3500 = vsel %vm730, %v3483, 0.0
      %v3501 = vadd.f32 %v3499, %v3500
      %v3502 = vsel %vm730, %v3484, 0.0
      %v3503 = vadd.f32 %v3501, %v3502
      %v3504 = vsel %vm730, %v3485, 0.0
      %v3505 = vadd.f32 %v3503, %v3504
      %v3506 = vsel %vm730, %v3486, 0.0
      %v3507 = vadd.f32 %v3505, %v3506
      %v3508 = vsel %vm730, %v3487, 0.0
      %v3509 = vadd.f32 %v3507, %v3508
      %v3510 = vsel %vm730, %v3488, 0.0
      %v3511 = vadd.f32 %v3509, %v3510
      %v3512 = vrot.slane %v3511, 4
      %v3513 = vadd.f32 %v3511, %v3512
      %v3514 = vrot.slane %v3513, 2
      %v3515 = vadd.f32 %v3513, %v3514
      %v3516 = vrot.slane %v3515, 1
      %v3517 = vadd.f32 %v3515, %v3516
      %v3518 = vmul.f32 %v3517, 0.015625
      %v3519 = vadd.f32 %v3518, 1e-05
      %v3520 = vrsqrt.pop %v3519
      %v3521 = vmul.f32 %v3520, %v3519
      %v3522 = vmul.f32 %v3521, %v3520
      %v3523 = vmul.f32 0.5, %v3522
      %v3524 = vsub.f32 1.5, %v3523
      %v3525 = vmul.f32 %v3520, %v3524
      %vm3526 = vweird.f32 %v3519
      %vm3527 = vweird.f32 %v3520
      %vm3528 = vmor %vm3526, %vm3527
      %v3529 = vsel %vm3528, %v3520, %v3525
      %v3530 = vmul.f32 %v3453, %v3529
      %v3531 = vmul.f32 %v3454, %v3529
      %v3532 = vmul.f32 %v3455, %v3529
      %v3533 = vmul.f32 %v3456, %v3529
      %v3534 = vmul.f32 %v3457, %v3529
      %v3535 = vmul.f32 %v3458, %v3529
      %v3536 = vmul.f32 %v3459, %v3529
      %v3537 = vmul.f32 %v3460, %v3529
      %v3538 = vmul.f32 %v3461, %v3529
      %v3539 = vmul.f32 %v3462, %v3529
      %v3540 = vmul.f32 %v3463, %v3529
      %v3541 = vmul.f32 %v3464, %v3529
      %v3542 = vld [vmem:[%s5] sm:$0x1]
      %v3543 = vperm.slane %v3542, 0
      %v3544 = vmul.f32 %v3530, %v3543
      %v3545 = vmul.f32 %v3531, %v3543
      %v3546 = vmul.f32 %v3532, %v3543
      %v3547 = vmul.f32 %v3533, %v3543
      %v3548 = vmul.f32 %v3534, %v3543
      %v3549 = vmul.f32 %v3535, %v3543
      %v3550 = vmul.f32 %v3536, %v3543
      %v3551 = vmul.f32 %v3537, %v3543
      %v3552 = vmul.f32 %v3538, %v3543
      %v3553 = vmul.f32 %v3539, %v3543
      %v3554 = vmul.f32 %v3540, %v3543
      %v3555 = vmul.f32 %v3541, %v3543
      %v3556 = vld [vmem:[%s5 + $0x1] sm:$0x1]
      %v3557 = vperm.slane %v3556, 0
      %v3558 = vadd.f32 %v3544, %v3557
      %v3559 = vadd.f32 %v3545, %v3557
      %v3560 = vadd.f32 %v3546, %v3557
      %v3561 = vadd.f32 %v3547, %v3557
      %v3562 = vadd.f32 %v3548, %v3557
      %v3563 = vadd.f32 %v3549, %v3557
      %v3564 = vadd.f32 %v3550, %v3557
      %v3565 = vadd.f32 %v3551, %v3557
      %v3566 = vadd.f32 %v3552, %v3557
      %v3567 = vadd.f32 %v3553, %v3557
      %v3568 = vadd.f32 %v3554, %v3557
      %v3569 = vadd.f32 %v3555, %v3557
      %vm3570 = vcmp.ge.f32.partialorder %v3558, 0.0
      %vm3571 = vcmp.ge.f32.partialorder %v3559, 0.0
      %vm3572 = vcmp.ge.f32.partialorder %v3560, 0.0
      %vm3573 = vcmp.ge.f32.partialorder %v3561, 0.0
      %vm3574 = vcmp.ge.f32.partialorder %v3562, 0.0
      %vm3575 = vcmp.ge.f32.partialorder %v3563, 0.0
      %vm3576 = vcmp.ge.f32.partialorder %v3564, 0.0
      %vm3577 = vcmp.ge.f32.partialorder %v3565, 0.0
      %vm3578 = vcmp.ge.f32.partialorder %v3566, 0.0
      %vm3579 = vcmp.ge.f32.partialorder %v3567, 0.0
      %vm3580 = vcmp.ge.f32.partialorder %v3568, 0.0
      %vm3581 = vcmp.ge.f32.partialorder %v3569, 0.0
      %v3582 = vld [vmem:[%s5 + $0x2] sm:$0x1]
      %v3583 = vperm.slane %v3582, 0
      %v3584 = vmul.f32 %v3583, %v3558
      %v3585 = vmul.f32 %v3583, %v3559
      %v3586 = vmul.f32 %v3583, %v3560
      %v3587 = vmul.f32 %v3583, %v3561
      %v3588 = vmul.f32 %v3583, %v3562
      %v3589 = vmul.f32 %v3583, %v3563
      %v3590 = vmul.f32 %v3583, %v3564
      %v3591 = vmul.f32 %v3583, %v3565
      %v3592 = vmul.f32 %v3583, %v3566
      %v3593 = vmul.f32 %v3583, %v3567
      %v3594 = vmul.f32 %v3583, %v3568
      %v3595 = vmul.f32 %v3583, %v3569
      %v3596 = vsel %vm3570, %v3558, %v3584
      %v3597 = vsel %vm3571, %v3559, %v3585
      %v3598 = vsel %vm3572, %v3560, %v3586
      %v3599 = vsel %vm3573, %v3561, %v3587
      %v3600 = vsel %vm3574, %v3562, %v3588
      %v3601 = vsel %vm3575, %v3563, %v3589
      %v3602 = vsel %vm3576, %v3564, %v3590
      %v3603 = vsel %vm3577, %v3565, %v3591
      %v3604 = vsel %vm3578, %v3566, %v3592
      %v3605 = vsel %vm3579, %v3567, %v3593
      %v3606 = vsel %vm3580, %v3568, %v3594
      %v3607 = vsel %vm3581, %v3569, %v3595
      %vm3608 = vcmask 257024
      %3609 = vst.msk [vmem:[#allocation3 + $0x40] sm:$0xf] %vm3608, 0
      %3610 = vst.msk [vmem:[#allocation3 + $0x44] sm:$0xf] %vm3608, 0
      %v3611 = vpack.c.bf16 %v3596, %v3596
      %v3612 = vpack.c.bf16 %v3597, %v3597
      %v3613 = vpack.c.bf16 %v3598, %v3598
      %v3614 = vpack.c.bf16 %v3599, %v3599
      %v3615 = vpack.c.bf16 %v3600, %v3600
      %v3616 = vpack.c.bf16 %v3601, %v3601
      %v3617 = vpack.c.bf16 %v3602, %v3602
      %v3618 = vpack.c.bf16 %v3603, %v3603
      %v3619 = vpack.c.bf16 %v3604, %v3604
      %v3620 = vpack.c.bf16 %v3605, %v3605
      %v3621 = vpack.c.bf16 %v3606, %v3606
      %v3622 = vpack.c.bf16 %v3607, %v3607
      %v3623 = vld [vmem:[%s7] sm:$0xf]
      %v3624 = vld [vmem:[%s7 + $0x4] sm:$0xf]
      %v3625 = vld [vmem:[%s7 + $0x8] sm:$0xf]
      %v3626 = vld [vmem:[%s7 + $0xc] sm:$0xf]
      %v3627 = vld [vmem:[%s7 + $0x10] sm:$0xf]
      %v3628 = vld [vmem:[%s7 + $0x14] sm:$0xf]
      %v3629 = vld [vmem:[%s7 + $0x18] sm:$0xf]
      %v3630 = vld [vmem:[%s7 + $0x1c] sm:$0xf]
      %v3631 = vld [vmem:[%s7 + $0x20] sm:$0xf]
      %v3632 = vld [vmem:[%s7 + $0x24] sm:$0xf]
      %v3633 = vld [vmem:[%s7 + $0x28] sm:$0xf]
      %v3634 = vld [vmem:[%s7 + $0x2c] sm:$0xf]
      %v3635 = vld [vmem:[%s7 + $0x30] sm:$0xf]
      %v3636 = vld [vmem:[%s7 + $0x34] sm:$0xf]
      %v3637 = vld [vmem:[%s7 + $0x38] sm:$0xf]
      %v3638 = vld [vmem:[%s7 + $0x3c] sm:$0xf]
      %v3655 = vunpack.c.l.b16 %v3623
      %v3656 = vunpack.c.l.b16 %v3624
      %v3657 = vunpack.c.l.b16 %v3625
      %v3658 = vunpack.c.l.b16 %v3626
      %v3659 = vunpack.c.l.b16 %v3627
      %v3660 = vunpack.c.l.b16 %v3628
      %v3661 = vunpack.c.l.b16 %v3629
      %v3662 = vunpack.c.l.b16 %v3630
      %v3663 = vunpack.c.l.b16 %v3631
      %v3664 = vunpack.c.l.b16 %v3632
      %v3665 = vunpack.c.l.b16 %v3633
      %v3666 = vunpack.c.l.b16 %v3634
      %v3667 = vunpack.c.l.b16 %v3635
      %v3668 = vunpack.c.l.b16 %v3636
      %v3669 = vunpack.c.l.b16 %v3637
      %v3670 = vunpack.c.l.b16 %v3638
      %v3671 = vpack.c.b16 %v3656, %v3655
      %v3672 = vpack.c.b16 %v3658, %v3657
      %v3673 = vpack.c.b16 %v3660, %v3659
      %v3674 = vpack.c.b16 %v3662, %v3661
      %v3675 = vpack.c.b16 %v3664, %v3663
      %v3676 = vpack.c.b16 %v3666, %v3665
      %v3677 = vpack.c.b16 %v3668, %v3667
      %v3678 = vpack.c.b16 %v3670, %v3669
      %v3691 = vunpack.c.l.b16 %v3611
      %v3692 = vunpack.c.l.b16 %v3612
      %v3693 = vunpack.c.l.b16 %v3613
      %v3694 = vunpack.c.l.b16 %v3614
      %v3695 = vunpack.c.l.b16 %v3615
      %v3696 = vunpack.c.l.b16 %v3616
      %v3697 = vunpack.c.l.b16 %v3617
      %v3698 = vunpack.c.l.b16 %v3618
      %v3699 = vunpack.c.l.b16 %v3619
      %v3700 = vunpack.c.l.b16 %v3620
      %v3701 = vunpack.c.l.b16 %v3621
      %v3702 = vunpack.c.l.b16 %v3622
      %v3703 = vpack.c.b16 %v3692, %v3691
      %v3704 = vpack.c.b16 %v3694, %v3693
      %v3705 = vpack.c.b16 %v3696, %v3695
      %v3706 = vpack.c.b16 %v3698, %v3697
      %v3707 = vpack.c.b16 %v3700, %v3699
      %v3708 = vpack.c.b16 %v3702, %v3701
      %v3716 = vsel %vm2999, %v3671, 0
      %v3719 = vsel %vm2999, %v3672, 0
      %v3722 = vsel %vm2999, %v3673, 0
      %v3725 = vsel %vm2999, %v3674, 0
      %v3728 = vsel %vm2999, %v3675, 0
      %v3731 = vsel %vm2999, %v3676, 0
      %v3734 = vsel %vm2999, %v3677, 0
      %v3737 = vsel %vm2999, %v3678, 0
      %3739 = vmatpush.bf16.msra.mxu0 0
      %3740 = vmatpush.bf16.msra.mxu0 0
      %3741 = vmatpush.bf16.msra.mxu0 %v3708
      %3742 = vmatpush.bf16.msra.mxu0 %v3707
      %3743 = vmatpush.bf16.msra.mxu0 %v3706
      %3744 = vmatpush.bf16.msra.mxu0 %v3705
      %3745 = vmatpush.bf16.msra.mxu0 %v3704
      %3746 = vmatpush.bf16.msra.mxu0 %v3703
      %3747 = vmatmul.bf16.gmra.mxu0 %v3716
      %v3748 = vpop.f32.mrf.mxu0
      %v3749 = vadd.f32 0.0, %v3748
      %v3750 = vpop.f32.mrf.mxu0
      %v3751 = vadd.f32 0.0, %v3750
      %3752 = vmatmul.bf16.gmra.mxu0 %v3719
      %v3753 = vpop.f32.mrf.mxu0
      %v3754 = vadd.f32 0.0, %v3753
      %v3755 = vpop.f32.mrf.mxu0
      %v3756 = vadd.f32 0.0, %v3755
      %3757 = vmatmul.bf16.gmra.mxu0 %v3722
      %v3758 = vpop.f32.mrf.mxu0
      %v3759 = vadd.f32 0.0, %v3758
      %v3760 = vpop.f32.mrf.mxu0
      %v3761 = vadd.f32 0.0, %v3760
      %3762 = vmatmul.bf16.gmra.mxu0 %v3725
      %v3763 = vpop.f32.mrf.mxu0
      %v3764 = vadd.f32 0.0, %v3763
      %v3765 = vpop.f32.mrf.mxu0
      %v3766 = vadd.f32 0.0, %v3765
      %3767 = vmatmul.bf16.gmra.mxu0 %v3728
      %v3768 = vpop.f32.mrf.mxu0
      %v3769 = vadd.f32 0.0, %v3768
      %v3770 = vpop.f32.mrf.mxu0
      %v3771 = vadd.f32 0.0, %v3770
      %3772 = vmatmul.bf16.gmra.mxu0 %v3731
      %v3773 = vpop.f32.mrf.mxu0
      %v3774 = vadd.f32 0.0, %v3773
      %v3775 = vpop.f32.mrf.mxu0
      %v3776 = vadd.f32 0.0, %v3775
      %3777 = vmatmul.bf16.gmra.mxu0 %v3734
      %v3778 = vpop.f32.mrf.mxu0
      %v3779 = vadd.f32 0.0, %v3778
      %v3780 = vpop.f32.mrf.mxu0
      %v3781 = vadd.f32 0.0, %v3780
      %3782 = vmatmul.bf16.gmra.mxu0 %v3737
      %v3783 = vpop.f32.mrf.mxu0
      %v3784 = vadd.f32 0.0, %v3783
      %v3785 = vpop.f32.mrf.mxu0
      %v3786 = vadd.f32 0.0, %v3785
      %3787 = vdwg.mxu0
      %v3788 = vpack.c.bf16 %v3749, %v3749
      %v3789 = vpack.c.bf16 %v3751, %v3751
      %v3790 = vpack.c.bf16 %v3754, %v3754
      %v3791 = vpack.c.bf16 %v3756, %v3756
      %v3792 = vpack.c.bf16 %v3759, %v3759
      %v3793 = vpack.c.bf16 %v3761, %v3761
      %v3794 = vpack.c.bf16 %v3764, %v3764
      %v3795 = vpack.c.bf16 %v3766, %v3766
      %v3796 = vpack.c.bf16 %v3769, %v3769
      %v3797 = vpack.c.bf16 %v3771, %v3771
      %v3798 = vpack.c.bf16 %v3774, %v3774
      %v3799 = vpack.c.bf16 %v3776, %v3776
      %v3800 = vpack.c.bf16 %v3779, %v3779
      %v3801 = vpack.c.bf16 %v3781, %v3781
      %v3802 = vpack.c.bf16 %v3784, %v3784
      %v3803 = vpack.c.bf16 %v3786, %v3786
      %3804 = vst.msk [vmem:[#allocation3] sm:$0xf] %vm3608, %v3788
      %3805 = vst.msk [vmem:[#allocation3 + $0x4] sm:$0xf] %vm3608, %v3789
      %3806 = vst.msk [vmem:[#allocation3 + $0x8] sm:$0xf] %vm3608, %v3790
      %3807 = vst.msk [vmem:[#allocation3 + $0xc] sm:$0xf] %vm3608, %v3791
      %3808 = vst.msk [vmem:[#allocation3 + $0x10] sm:$0xf] %vm3608, %v3792
      %3809 = vst.msk [vmem:[#allocation3 + $0x14] sm:$0xf] %vm3608, %v3793
      %3810 = vst.msk [vmem:[#allocation3 + $0x18] sm:$0xf] %vm3608, %v3794
      %3811 = vst.msk [vmem:[#allocation3 + $0x1c] sm:$0xf] %vm3608, %v3795
      %3812 = vst.msk [vmem:[#allocation3 + $0x20] sm:$0xf] %vm3608, %v3796
      %3813 = vst.msk [vmem:[#allocation3 + $0x24] sm:$0xf] %vm3608, %v3797
      %3814 = vst.msk [vmem:[#allocation3 + $0x28] sm:$0xf] %vm3608, %v3798
      %3815 = vst.msk [vmem:[#allocation3 + $0x2c] sm:$0xf] %vm3608, %v3799
      %3816 = vst.msk [vmem:[#allocation3 + $0x30] sm:$0xf] %vm3608, %v3800
      %3817 = vst.msk [vmem:[#allocation3 + $0x34] sm:$0xf] %vm3608, %v3801
      %3818 = vst.msk [vmem:[#allocation3 + $0x38] sm:$0xf] %vm3608, %v3802
      %3819 = vst.msk [vmem:[#allocation3 + $0x3c] sm:$0xf] %vm3608, %v3803
      %v3820 = vld [vmem:[#allocation3] sm:$0xf]
      %v3821 = vld [vmem:[#allocation3 + $0x4] sm:$0xf]
      %v3822 = vld [vmem:[#allocation3 + $0x8] sm:$0xf]
      %v3823 = vld [vmem:[#allocation3 + $0xc] sm:$0xf]
      %v3824 = vld [vmem:[#allocation3 + $0x10] sm:$0x1]
      %v3825 = vld [vmem:[#allocation3] sm:$0xc]
      %v3826 = vld [vmem:[#allocation3 + $0x10] sm:$0x7]
      %v3827 = vld [vmem:[#allocation3] sm:$0x8]
      %v3828 = vld [vmem:[#allocation3 + $0x10] sm:$0xf]
      %v3829 = vld [vmem:[#allocation3 + $0x14] sm:$0xf]
      %v3830 = vld [vmem:[#allocation3 + $0x18] sm:$0xf]
      %v3831 = vld [vmem:[#allocation3 + $0x1c] sm:$0xf]
      %v3832 = vld [vmem:[#allocation3 + $0x20] sm:$0x1]
      %v3833 = vld [vmem:[#allocation3 + $0x10] sm:$0xc]
      %v3834 = vld [vmem:[#allocation3 + $0x20] sm:$0x7]
      %v3835 = vld [vmem:[#allocation3 + $0x10] sm:$0x8]
      %v3836 = vld [vmem:[#allocation3 + $0x20] sm:$0xf]
      %v3837 = vld [vmem:[#allocation3 + $0x24] sm:$0xf]
      %v3838 = vld [vmem:[#allocation3 + $0x28] sm:$0xf]
      %v3839 = vld [vmem:[#allocation3 + $0x2c] sm:$0xf]
      %v3840 = vld [vmem:[#allocation3 + $0x30] sm:$0x1]
      %v3841 = vld [vmem:[#allocation3 + $0x20] sm:$0xc]
      %v3842 = vld [vmem:[#allocation3 + $0x30] sm:$0x7]
      %v3843 = vld [vmem:[#allocation3 + $0x20] sm:$0x8]
      %v3844 = vld [vmem:[#allocation3 + $0x30] sm:$0xf]
      %v3845 = vld [vmem:[#allocation3 + $0x34] sm:$0xf]
      %v3846 = vld [vmem:[#allocation3 + $0x38] sm:$0xf]
      %v3847 = vld [vmem:[#allocation3 + $0x3c] sm:$0xf]
      %v3848 = vld [vmem:[#allocation3 + $0x40] sm:$0x1]
      %v3849 = vld [vmem:[#allocation3 + $0x30] sm:$0xc]
      %v3850 = vld [vmem:[#allocation3 + $0x40] sm:$0x7]
      %v3851 = vld [vmem:[#allocation3 + $0x30] sm:$0x8]
      %v3856 = vunpack.c.l.b16 %v3820
      %v3857 = vunpack.c.l.b16 %v3821
      %v3858 = vunpack.c.l.b16 %v3822
      %v3859 = vunpack.c.l.b16 %v3823
      %v3860 = vpack.c.b16 %v3857, %v3856
      %v3861 = vpack.c.b16 %v3859, %v3858
      %v3863 = vunpack.c.l.b16 %v3824
      %v3864 = vpack.c.b16 %v3863, %v3863
      %v3866 = vshrl.u32 %v3860, 16
      %v3868 = vshll.u32 %v3860, 16
      %v3870 = vrot.slane %v3868, 1
      %v3871 = vor.u32 %v3866, %v3870
      %v3873 = vshll.u32 %v3861, 16
      %v3875 = vrot.slane %v3873, 1
      %v3876 = vsel %vm2149, %v3871, %v3875
      %v3877 = vshrl.u32 %v3861, 16
      %v3879 = vor.u32 %v3877, %v3875
      %v3881 = vshll.u32 %v3864, 16
      %v3883 = vrot.slane %v3881, 1
      %v3884 = vsel %vm2149, %v3879, %v3883
      %3885 = vrot.lane.b32.xlu0 %v3876, 32
      %v3886 = vpop.permute.xlu0 %3885
      %3887 = vrot.lane.b32.xlu0 %v3884, 32
      %v3888 = vpop.permute.xlu0 %3887
      %v3891 = vunpack.c.l.b16 %v3825
      %v3892 = vunpack.c.l.b16 %v3826
      %v3893 = vpack.c.b16 %v3857, %v3891
      %v3894 = vpack.c.b16 %v3892, %v3892
      %vm3895 = vsmask.f32 5376
      %v3897 = vshrl.u32 %v3893, 16
      %v3899 = vrot.slane %v3897, 2
      %v3900 = vshll.u32 %v3893, 16
      %v3902 = vrot.slane %v3900, 3
      %v3903 = vor.u32 %v3899, %v3902
      %v3904 = vrot.slane %v3877, 2
      %v3905 = vrot.slane %v3873, 3
      %v3906 = vor.u32 %v3904, %v3905
      %v3907 = vsel %vm3895, %v3903, %v3906
      %v3909 = vshrl.u32 %v3894, 16
      %v3911 = vrot.slane %v3909, 2
      %v3912 = vshll.u32 %v3894, 16
      %v3914 = vrot.slane %v3912, 3
      %v3915 = vor.u32 %v3911, %v3914
      %v3916 = vsel %vm3895, %v3906, %v3915
      %3917 = vrot.lane.b32.xlu0 %v3907, 64
      %v3918 = vpop.permute.xlu0 %3917
      %3919 = vrot.lane.b32.xlu0 %v3916, 64
      %v3920 = vpop.permute.xlu0 %3919
      %v3922 = vunpack.c.l.b16 %v3827
      %v3923 = vpack.c.b16 %v3857, %v3922
      %vm3924 = vcmask 1044480
      %v3925 = vrot.slane %v3923, 3
      %v3926 = vrot.slane %v3861, 3
      %v3927 = vsel %vm3924, %v3925, %v3926
      %v3928 = vrot.slane %v3894, 3
      %v3929 = vsel %vm3924, %v3926, %v3928
      %3930 = vrot.lane.b32.xlu0 %v3927, 96
      %v3931 = vpop.permute.xlu0 %3930
      %3932 = vrot.lane.b32.xlu0 %v3929, 96
      %v3933 = vpop.permute.xlu0 %3932
      %v3938 = vunpack.c.l.b16 %v3828
      %v3939 = vunpack.c.l.b16 %v3829
      %v3940 = vunpack.c.l.b16 %v3830
      %v3941 = vunpack.c.l.b16 %v3831
      %v3942 = vpack.c.b16 %v3939, %v3938
      %v3943 = vpack.c.b16 %v3941, %v3940
      %v3945 = vunpack.c.l.b16 %v3832
      %v3946 = vpack.c.b16 %v3945, %v3945
      %v3948 = vshrl.u32 %v3942, 16
      %v3950 = vshll.u32 %v3942, 16
      %v3952 = vrot.slane %v3950, 1
      %v3953 = vor.u32 %v3948, %v3952
      %v3955 = vshll.u32 %v3943, 16
      %v3957 = vrot.slane %v3955, 1
      %v3958 = vsel %vm2149, %v3953, %v3957
      %v3959 = vshrl.u32 %v3943, 16
      %v3961 = vor.u32 %v3959, %v3957
      %v3963 = vshll.u32 %v3946, 16
      %v3965 = vrot.slane %v3963, 1
      %v3966 = vsel %vm2149, %v3961, %v3965
      %3967 = vrot.lane.b32.xlu0 %v3958, 32
      %v3968 = vpop.permute.xlu0 %3967
      %3969 = vrot.lane.b32.xlu0 %v3966, 32
      %v3970 = vpop.permute.xlu0 %3969
      %v3973 = vunpack.c.l.b16 %v3833
      %v3974 = vunpack.c.l.b16 %v3834
      %v3975 = vpack.c.b16 %v3939, %v3973
      %v3976 = vpack.c.b16 %v3974, %v3974
      %v3978 = vshrl.u32 %v3975, 16
      %v3980 = vrot.slane %v3978, 2
      %v3981 = vshll.u32 %v3975, 16
      %v3983 = vrot.slane %v3981, 3
      %v3984 = vor.u32 %v3980, %v3983
      %v3985 = vrot.slane %v3959, 2
      %v3986 = vrot.slane %v3955, 3
      %v3987 = vor.u32 %v3985, %v3986
      %v3988 = vsel %vm3895, %v3984, %v3987
      %v3990 = vshrl.u32 %v3976, 16
      %v3992 = vrot.slane %v3990, 2
      %v3993 = vshll.u32 %v3976, 16
      %v3995 = vrot.slane %v3993, 3
      %v3996 = vor.u32 %v3992, %v3995
      %v3997 = vsel %vm3895, %v3987, %v3996
      %3998 = vrot.lane.b32.xlu0 %v3988, 64
      %v3999 = vpop.permute.xlu0 %3998
      %4000 = vrot.lane.b32.xlu0 %v3997, 64
      %v4001 = vpop.permute.xlu0 %4000
      %v4003 = vunpack.c.l.b16 %v3835
      %v4004 = vpack.c.b16 %v3939, %v4003
      %v4005 = vrot.slane %v4004, 3
      %v4006 = vrot.slane %v3943, 3
      %v4007 = vsel %vm3924, %v4005, %v4006
      %v4008 = vrot.slane %v3976, 3
      %v4009 = vsel %vm3924, %v4006, %v4008
      %4010 = vrot.lane.b32.xlu0 %v4007, 96
      %v4011 = vpop.permute.xlu0 %4010
      %4012 = vrot.lane.b32.xlu0 %v4009, 96
      %v4013 = vpop.permute.xlu0 %4012
      %v4018 = vunpack.c.l.b16 %v3836
      %v4019 = vunpack.c.l.b16 %v3837
      %v4020 = vunpack.c.l.b16 %v3838
      %v4021 = vunpack.c.l.b16 %v3839
      %v4022 = vpack.c.b16 %v4019, %v4018
      %v4023 = vpack.c.b16 %v4021, %v4020
      %v4025 = vunpack.c.l.b16 %v3840
      %v4026 = vpack.c.b16 %v4025, %v4025
      %v4028 = vshrl.u32 %v4022, 16
      %v4030 = vshll.u32 %v4022, 16
      %v4032 = vrot.slane %v4030, 1
      %v4033 = vor.u32 %v4028, %v4032
      %v4035 = vshll.u32 %v4023, 16
      %v4037 = vrot.slane %v4035, 1
      %v4038 = vsel %vm2149, %v4033, %v4037
      %v4039 = vshrl.u32 %v4023, 16
      %v4041 = vor.u32 %v4039, %v4037
      %v4043 = vshll.u32 %v4026, 16
      %v4045 = vrot.slane %v4043, 1
      %v4046 = vsel %vm2149, %v4041, %v4045
      %4047 = vrot.lane.b32.xlu0 %v4038, 32
      %v4048 = vpop.permute.xlu0 %4047
      %4049 = vrot.lane.b32.xlu0 %v4046, 32
      %v4050 = vpop.permute.xlu0 %4049
      %v4053 = vunpack.c.l.b16 %v3841
      %v4054 = vunpack.c.l.b16 %v3842
      %v4055 = vpack.c.b16 %v4019, %v4053
      %v4056 = vpack.c.b16 %v4054, %v4054
      %v4058 = vshrl.u32 %v4055, 16
      %v4060 = vrot.slane %v4058, 2
      %v4061 = vshll.u32 %v4055, 16
      %v4063 = vrot.slane %v4061, 3
      %v4064 = vor.u32 %v4060, %v4063
      %v4065 = vrot.slane %v4039, 2
      %v4066 = vrot.slane %v4035, 3
      %v4067 = vor.u32 %v4065, %v4066
      %v4068 = vsel %vm3895, %v4064, %v4067
      %v4070 = vshrl.u32 %v4056, 16
      %v4072 = vrot.slane %v4070, 2
      %v4073 = vshll.u32 %v4056, 16
      %v4075 = vrot.slane %v4073, 3
      %v4076 = vor.u32 %v4072, %v4075
      %v4077 = vsel %vm3895, %v4067, %v4076
      %4078 = vrot.lane.b32.xlu0 %v4068, 64
      %v4079 = vpop.permute.xlu0 %4078
      %4080 = vrot.lane.b32.xlu0 %v4077, 64
      %v4081 = vpop.permute.xlu0 %4080
      %v4083 = vunpack.c.l.b16 %v3843
      %v4084 = vpack.c.b16 %v4019, %v4083
      %v4085 = vrot.slane %v4084, 3
      %v4086 = vrot.slane %v4023, 3
      %v4087 = vsel %vm3924, %v4085, %v4086
      %v4088 = vrot.slane %v4056, 3
      %v4089 = vsel %vm3924, %v4086, %v4088
      %4090 = vrot.lane.b32.xlu0 %v4087, 96
      %v4091 = vpop.permute.xlu0 %4090
      %4092 = vrot.lane.b32.xlu0 %v4089, 96
      %v4093 = vpop.permute.xlu0 %4092
      %v4098 = vunpack.c.l.b16 %v3844
      %v4099 = vunpack.c.l.b16 %v3845
      %v4100 = vunpack.c.l.b16 %v3846
      %v4101 = vunpack.c.l.b16 %v3847
      %v4102 = vpack.c.b16 %v4099, %v4098
      %v4103 = vpack.c.b16 %v4101, %v4100
      %v4105 = vunpack.c.l.b16 %v3848
      %v4106 = vpack.c.b16 %v4105, %v4105
      %v4108 = vshrl.u32 %v4102, 16
      %v4110 = vshll.u32 %v4102, 16
      %v4112 = vrot.slane %v4110, 1
      %v4113 = vor.u32 %v4108, %v4112
      %v4115 = vshll.u32 %v4103, 16
      %v4117 = vrot.slane %v4115, 1
      %v4118 = vsel %vm2149, %v4113, %v4117
      %v4119 = vshrl.u32 %v4103, 16
      %v4121 = vor.u32 %v4119, %v4117
      %v4123 = vshll.u32 %v4106, 16
      %v4125 = vrot.slane %v4123, 1
      %v4126 = vsel %vm2149, %v4121, %v4125
      %4127 = vrot.lane.b32.xlu0 %v4118, 32
      %v4128 = vpop.permute.xlu0 %4127
      %4129 = vrot.lane.b32.xlu0 %v4126, 32
      %v4130 = vpop.permute.xlu0 %4129
      %v4133 = vunpack.c.l.b16 %v3849
      %v4134 = vunpack.c.l.b16 %v3850
      %v4135 = vpack.c.b16 %v4099, %v4133
      %v4136 = vpack.c.b16 %v4134, %v4134
      %v4138 = vshrl.u32 %v4135, 16
      %v4140 = vrot.slane %v4138, 2
      %v4141 = vshll.u32 %v4135, 16
      %v4143 = vrot.slane %v4141, 3
      %v4144 = vor.u32 %v4140, %v4143
      %v4145 = vrot.slane %v4119, 2
      %v4146 = vrot.slane %v4115, 3
      %v4147 = vor.u32 %v4145, %v4146
      %v4148 = vsel %vm3895, %v4144, %v4147
      %v4150 = vshrl.u32 %v4136, 16
      %v4152 = vrot.slane %v4150, 2
      %v4153 = vshll.u32 %v4136, 16
      %v4155 = vrot.slane %v4153, 3
      %v4156 = vor.u32 %v4152, %v4155
      %v4157 = vsel %vm3895, %v4147, %v4156
      %4158 = vrot.lane.b32.xlu0 %v4148, 64
      %v4159 = vpop.permute.xlu0 %4158
      %4160 = vrot.lane.b32.xlu0 %v4157, 64
      %v4161 = vpop.permute.xlu0 %4160
      %v4163 = vunpack.c.l.b16 %v3851
      %v4164 = vpack.c.b16 %v4099, %v4163
      %v4165 = vrot.slane %v4164, 3
      %v4166 = vrot.slane %v4103, 3
      %v4167 = vsel %vm3924, %v4165, %v4166
      %v4168 = vrot.slane %v4136, 3
      %v4169 = vsel %vm3924, %v4166, %v4168
      %4170 = vrot.lane.b32.xlu0 %v4167, 96
      %v4171 = vpop.permute.xlu0 %4170
      %4172 = vrot.lane.b32.xlu0 %v4169, 96
      %v4173 = vpop.permute.xlu0 %4172
      %v4175 = vsel %vm730, %v3860, %v3886
      %v4177 = vsel %vm730, %v3861, %v3888
      %v4179 = vsel %vm2973, %v4175, %v3918
      %v4181 = vsel %vm2973, %v4177, %v3920
      %v4183 = vsel %vm2999, %v4179, %v3931
      %v4186 = vsel %vm2999, %v4181, %v3933
      %v4189 = vsel %vm730, %v3942, %v3968
      %v4191 = vsel %vm730, %v3943, %v3970
      %v4193 = vsel %vm2973, %v4189, %v3999
      %v4195 = vsel %vm2973, %v4191, %v4001
      %v4197 = vsel %vm2999, %v4193, %v4011
      %v4200 = vsel %vm2999, %v4195, %v4013
      %v4203 = vsel %vm730, %v4022, %v4048
      %v4205 = vsel %vm730, %v4023, %v4050
      %v4207 = vsel %vm2973, %v4203, %v4079
      %v4209 = vsel %vm2973, %v4205, %v4081
      %v4211 = vsel %vm2999, %v4207, %v4091
      %v4214 = vsel %vm2999, %v4209, %v4093
      %v4217 = vsel %vm730, %v4102, %v4128
      %v4219 = vsel %vm730, %v4103, %v4130
      %v4221 = vsel %vm2973, %v4217, %v4159
      %v4223 = vsel %vm2973, %v4219, %v4161
      %v4225 = vsel %vm2999, %v4221, %v4171
      %v4228 = vsel %vm2999, %v4223, %v4173
      %v4230 = vld [vmem:[%s8] sm:$0xf]
      %v4231 = vld [vmem:[%s8 + $0x4] sm:$0xf]
      %v4232 = vld [vmem:[%s8 + $0x8] sm:$0xf]
      %v4233 = vld [vmem:[%s8 + $0xc] sm:$0xf]
      %v4234 = vld [vmem:[%s8 + $0x10] sm:$0xf]
      %v4235 = vld [vmem:[%s8 + $0x14] sm:$0xf]
      %v4236 = vld [vmem:[%s8 + $0x18] sm:$0xf]
      %v4237 = vld [vmem:[%s8 + $0x1c] sm:$0xf]
      %v4238 = vld [vmem:[%s8 + $0x20] sm:$0xf]
      %v4239 = vld [vmem:[%s8 + $0x24] sm:$0xf]
      %v4240 = vld [vmem:[%s8 + $0x28] sm:$0xf]
      %v4241 = vld [vmem:[%s8 + $0x2c] sm:$0xf]
      %v4242 = vld [vmem:[%s8 + $0x30] sm:$0xf]
      %v4243 = vld [vmem:[%s8 + $0x34] sm:$0xf]
      %v4244 = vld [vmem:[%s8 + $0x38] sm:$0xf]
      %v4245 = vld [vmem:[%s8 + $0x3c] sm:$0xf]
      %v4246 = vld [vmem:[%s8 + $0x40] sm:$0xf]
      %v4247 = vld [vmem:[%s8 + $0x44] sm:$0xf]
      %v4248 = vld [vmem:[%s8 + $0x48] sm:$0xf]
      %v4249 = vld [vmem:[%s8 + $0x4c] sm:$0xf]
      %v4250 = vld [vmem:[%s8 + $0x50] sm:$0xf]
      %v4251 = vld [vmem:[%s8 + $0x54] sm:$0xf]
      %v4252 = vld [vmem:[%s8 + $0x58] sm:$0xf]
      %v4253 = vld [vmem:[%s8 + $0x5c] sm:$0xf]
      %v4254 = vld [vmem:[%s8 + $0x60] sm:$0xf]
      %v4255 = vld [vmem:[%s8 + $0x64] sm:$0xf]
      %v4256 = vld [vmem:[%s8 + $0x68] sm:$0xf]
      %v4257 = vld [vmem:[%s8 + $0x6c] sm:$0xf]
      %v4258 = vld [vmem:[%s8 + $0x70] sm:$0xf]
      %v4259 = vld [vmem:[%s8 + $0x74] sm:$0xf]
      %v4260 = vld [vmem:[%s8 + $0x78] sm:$0xf]
      %v4261 = vld [vmem:[%s8 + $0x7c] sm:$0xf]
      %v4262 = vld [vmem:[%s8 + $0x80] sm:$0xf]
      %v4263 = vld [vmem:[%s8 + $0x84] sm:$0xf]
      %v4264 = vld [vmem:[%s8 + $0x88] sm:$0xf]
      %v4265 = vld [vmem:[%s8 + $0x8c] sm:$0xf]
      %v4266 = vld [vmem:[%s8 + $0x90] sm:$0xf]
      %v4267 = vld [vmem:[%s8 + $0x94] sm:$0xf]
      %v4268 = vld [vmem:[%s8 + $0x98] sm:$0xf]
      %v4269 = vld [vmem:[%s8 + $0x9c] sm:$0xf]
      %v4270 = vld [vmem:[%s8 + $0xa0] sm:$0xf]
      %v4271 = vld [vmem:[%s8 + $0xa4] sm:$0xf]
      %v4272 = vld [vmem:[%s8 + $0xa8] sm:$0xf]
      %v4273 = vld [vmem:[%s8 + $0xac] sm:$0xf]
      %v4274 = vld [vmem:[%s8 + $0xb0] sm:$0xf]
      %v4275 = vld [vmem:[%s8 + $0xb4] sm:$0xf]
      %v4276 = vld [vmem:[%s8 + $0xb8] sm:$0xf]
      %v4277 = vld [vmem:[%s8 + $0xbc] sm:$0xf]
      %v4278 = vld [vmem:[%s8 + $0xc0] sm:$0xf]
      %v4279 = vld [vmem:[%s8 + $0xc4] sm:$0xf]
      %v4280 = vld [vmem:[%s8 + $0xc8] sm:$0xf]
      %v4281 = vld [vmem:[%s8 + $0xcc] sm:$0xf]
      %v4282 = vld [vmem:[%s8 + $0xd0] sm:$0xf]
      %v4283 = vld [vmem:[%s8 + $0xd4] sm:$0xf]
      %v4284 = vld [vmem:[%s8 + $0xd8] sm:$0xf]
      %v4285 = vld [vmem:[%s8 + $0xdc] sm:$0xf]
      %v4286 = vld [vmem:[%s8 + $0xe0] sm:$0xf]
      %v4287 = vld [vmem:[%s8 + $0xe4] sm:$0xf]
      %v4288 = vld [vmem:[%s8 + $0xe8] sm:$0xf]
      %v4289 = vld [vmem:[%s8 + $0xec] sm:$0xf]
      %v4290 = vld [vmem:[%s8 + $0xf0] sm:$0xf]
      %v4291 = vld [vmem:[%s8 + $0xf4] sm:$0xf]
      %v4292 = vld [vmem:[%s8 + $0xf8] sm:$0xf]
      %v4293 = vld [vmem:[%s8 + $0xfc] sm:$0xf]
      %v4358 = vunpack.c.l.b16 %v4230
      %v4359 = vunpack.c.l.b16 %v4231
      %v4360 = vunpack.c.l.b16 %v4232
      %v4361 = vunpack.c.l.b16 %v4233
      %v4362 = vunpack.c.l.b16 %v4234
      %v4363 = vunpack.c.l.b16 %v4235
      %v4364 = vunpack.c.l.b16 %v4236
      %v4365 = vunpack.c.l.b16 %v4237
      %v4366 = vunpack.c.l.b16 %v4238
      %v4367 = vunpack.c.l.b16 %v4239
      %v4368 = vunpack.c.l.b16 %v4240
      %v4369 = vunpack.c.l.b16 %v4241
      %v4370 = vunpack.c.l.b16 %v4242
      %v4371 = vunpack.c.l.b16 %v4243
      %v4372 = vunpack.c.l.b16 %v4244
      %v4373 = vunpack.c.l.b16 %v4245
      %v4374 = vunpack.c.l.b16 %v4246
      %v4375 = vunpack.c.l.b16 %v4247
      %v4376 = vunpack.c.l.b16 %v4248
      %v4377 = vunpack.c.l.b16 %v4249
      %v4378 = vunpack.c.l.b16 %v4250
      %v4379 = vunpack.c.l.b16 %v4251
      %v4380 = vunpack.c.l.b16 %v4252
      %v4381 = vunpack.c.l.b16 %v4253
      %v4382 = vunpack.c.l.b16 %v4254
      %v4383 = vunpack.c.l.b16 %v4255
      %v4384 = vunpack.c.l.b16 %v4256
      %v4385 = vunpack.c.l.b16 %v4257
      %v4386 = vunpack.c.l.b16 %v4258
      %v4387 = vunpack.c.l.b16 %v4259
      %v4388 = vunpack.c.l.b16 %v4260
      %v4389 = vunpack.c.l.b16 %v4261
      %v4390 = vunpack.c.l.b16 %v4262
      %v4391 = vunpack.c.l.b16 %v4263
      %v4392 = vunpack.c.l.b16 %v4264
      %v4393 = vunpack.c.l.b16 %v4265
      %v4394 = vunpack.c.l.b16 %v4266
      %v4395 = vunpack.c.l.b16 %v4267
      %v4396 = vunpack.c.l.b16 %v4268
      %v4397 = vunpack.c.l.b16 %v4269
      %v4398 = vunpack.c.l.b16 %v4270
      %v4399 = vunpack.c.l.b16 %v4271
      %v4400 = vunpack.c.l.b16 %v4272
      %v4401 = vunpack.c.l.b16 %v4273
      %v4402 = vunpack.c.l.b16 %v4274
      %v4403 = vunpack.c.l.b16 %v4275
      %v4404 = vunpack.c.l.b16 %v4276
      %v4405 = vunpack.c.l.b16 %v4277
      %v4406 = vunpack.c.l.b16 %v4278
      %v4407 = vunpack.c.l.b16 %v4279
      %v4408 = vunpack.c.l.b16 %v4280
      %v4409 = vunpack.c.l.b16 %v4281
      %v4410 = vunpack.c.l.b16 %v4282
      %v4411 = vunpack.c.l.b16 %v4283
      %v4412 = vunpack.c.l.b16 %v4284
      %v4413 = vunpack.c.l.b16 %v4285
      %v4414 = vunpack.c.l.b16 %v4286
      %v4415 = vunpack.c.l.b16 %v4287
      %v4416 = vunpack.c.l.b16 %v4288
      %v4417 = vunpack.c.l.b16 %v4289
      %v4418 = vunpack.c.l.b16 %v4290
      %v4419 = vunpack.c.l.b16 %v4291
      %v4420 = vunpack.c.l.b16 %v4292
      %v4421 = vunpack.c.l.b16 %v4293
      %v4422 = vpack.c.b16 %v4359, %v4358
      %v4423 = vpack.c.b16 %v4361, %v4360
      %v4424 = vpack.c.b16 %v4363, %v4362
      %v4425 = vpack.c.b16 %v4365, %v4364
      %v4426 = vpack.c.b16 %v4367, %v4366
      %v4427 = vpack.c.b16 %v4369, %v4368
      %v4428 = vpack.c.b16 %v4371, %v4370
      %v4429 = vpack.c.b16 %v4373, %v4372
      %v4430 = vpack.c.b16 %v4375, %v4374
      %v4431 = vpack.c.b16 %v4377, %v4376
      %v4432 = vpack.c.b16 %v4379, %v4378
      %v4433 = vpack.c.b16 %v4381, %v4380
      %v4434 = vpack.c.b16 %v4383, %v4382
      %v4435 = vpack.c.b16 %v4385, %v4384
      %v4436 = vpack.c.b16 %v4387, %v4386
      %v4437 = vpack.c.b16 %v4389, %v4388
      %v4438 = vpack.c.b16 %v4391, %v4390
      %v4439 = vpack.c.b16 %v4393, %v4392
      %v4440 = vpack.c.b16 %v4395, %v4394
      %v4441 = vpack.c.b16 %v4397, %v4396
      %v4442 = vpack.c.b16 %v4399, %v4398
      %v4443 = vpack.c.b16 %v4401, %v4400
      %v4444 = vpack.c.b16 %v4403, %v4402
      %v4445 = vpack.c.b16 %v4405, %v4404
      %v4446 = vpack.c.b16 %v4407, %v4406
      %v4447 = vpack.c.b16 %v4409, %v4408
      %v4448 = vpack.c.b16 %v4411, %v4410
      %v4449 = vpack.c.b16 %v4413, %v4412
      %v4450 = vpack.c.b16 %v4415, %v4414
      %v4451 = vpack.c.b16 %v4417, %v4416
      %v4452 = vpack.c.b16 %v4419, %v4418
      %v4453 = vpack.c.b16 %v4421, %v4420
      %4486 = vmatpush.bf16.msra.mxu0 %v4429
      %4487 = vmatpush.bf16.msra.mxu0 %v4428
      %4488 = vmatpush.bf16.msra.mxu0 %v4427
      %4489 = vmatpush.bf16.msra.mxu0 %v4426
      %4490 = vmatpush.bf16.msra.mxu0 %v4425
      %4491 = vmatpush.bf16.msra.mxu0 %v4424
      %4492 = vmatpush.bf16.msra.mxu0 %v4423
      %4493 = vmatpush.bf16.msra.mxu0 %v4422
      %4494 = vmatmul.bf16.gmra.mxu0 %v4183
      %v4495 = vpop.f32.mrf.mxu0
      %v4496 = vadd.f32 0.0, %v4495
      %v4497 = vpop.f32.mrf.mxu0
      %v4498 = vadd.f32 0.0, %v4497
      %4499 = vmatmul.bf16.gmra.mxu0 %v4186
      %v4500 = vpop.f32.mrf.mxu0
      %v4501 = vadd.f32 0.0, %v4500
      %v4502 = vpop.f32.mrf.mxu0
      %v4503 = vadd.f32 0.0, %v4502
      %4504 = vdwg.mxu0
      %4505 = vmatpush.bf16.msra.mxu0 %v4437
      %4506 = vmatpush.bf16.msra.mxu0 %v4436
      %4507 = vmatpush.bf16.msra.mxu0 %v4435
      %4508 = vmatpush.bf16.msra.mxu0 %v4434
      %4509 = vmatpush.bf16.msra.mxu0 %v4433
      %4510 = vmatpush.bf16.msra.mxu0 %v4432
      %4511 = vmatpush.bf16.msra.mxu0 %v4431
      %4512 = vmatpush.bf16.msra.mxu0 %v4430
      %4513 = vmatmul.bf16.gmra.mxu0 %v4197
      %v4514 = vpop.f32.mrf.mxu0
      %v4515 = vadd.f32 %v4496, %v4514
      %v4516 = vpop.f32.mrf.mxu0
      %v4517 = vadd.f32 %v4498, %v4516
      %4518 = vmatmul.bf16.gmra.mxu0 %v4200
      %v4519 = vpop.f32.mrf.mxu0
      %v4520 = vadd.f32 %v4501, %v4519
      %v4521 = vpop.f32.mrf.mxu0
      %v4522 = vadd.f32 %v4503, %v4521
      %4523 = vdwg.mxu0
      %4524 = vmatpush.bf16.msra.mxu0 %v4445
      %4525 = vmatpush.bf16.msra.mxu0 %v4444
      %4526 = vmatpush.bf16.msra.mxu0 %v4443
      %4527 = vmatpush.bf16.msra.mxu0 %v4442
      %4528 = vmatpush.bf16.msra.mxu0 %v4441
      %4529 = vmatpush.bf16.msra.mxu0 %v4440
      %4530 = vmatpush.bf16.msra.mxu0 %v4439
      %4531 = vmatpush.bf16.msra.mxu0 %v4438
      %4532 = vmatmul.bf16.gmra.mxu0 %v4211
      %v4533 = vpop.f32.mrf.mxu0
      %v4534 = vadd.f32 %v4515, %v4533
      %v4535 = vpop.f32.mrf.mxu0
      %v4536 = vadd.f32 %v4517, %v4535
      %4537 = vmatmul.bf16.gmra.mxu0 %v4214
      %v4538 = vpop.f32.mrf.mxu0
      %v4539 = vadd.f32 %v4520, %v4538
      %v4540 = vpop.f32.mrf.mxu0
      %v4541 = vadd.f32 %v4522, %v4540
      %4542 = vdwg.mxu0
      %4543 = vmatpush.bf16.msra.mxu0 %v4453
      %4544 = vmatpush.bf16.msra.mxu0 %v4452
      %4545 = vmatpush.bf16.msra.mxu0 %v4451
      %4546 = vmatpush.bf16.msra.mxu0 %v4450
      %4547 = vmatpush.bf16.msra.mxu0 %v4449
      %4548 = vmatpush.bf16.msra.mxu0 %v4448
      %4549 = vmatpush.bf16.msra.mxu0 %v4447
      %4550 = vmatpush.bf16.msra.mxu0 %v4446
      %4551 = vmatmul.bf16.gmra.mxu0 %v4225
      %v4552 = vpop.f32.mrf.mxu0
      %v4553 = vadd.f32 %v4534, %v4552
      %v4554 = vpop.f32.mrf.mxu0
      %v4555 = vadd.f32 %v4536, %v4554
      %4556 = vmatmul.bf16.gmra.mxu0 %v4228
      %v4557 = vpop.f32.mrf.mxu0
      %v4558 = vadd.f32 %v4539, %v4557
      %v4559 = vpop.f32.mrf.mxu0
      %v4560 = vadd.f32 %v4541, %v4559
      %4561 = vdwg.mxu0
      %v4562 = vld [vmem:[%s10] sm:$0xff]
      %v4563 = vld [vmem:[%s10 + $0x8] sm:$0xff]
      %v4564 = vld [vmem:[%s10 + $0x10] sm:$0xff]
      %v4565 = vld [vmem:[%s10 + $0x18] sm:$0xff]
      %vm4566 = vcmp.gt.f32.partialorder %v4562, 0.0
      %vm4567 = vcmp.gt.f32.partialorder %v4563, 0.0
      %vm4568 = vcmp.gt.f32.partialorder %v4564, 0.0
      %vm4569 = vcmp.gt.f32.partialorder %v4565, 0.0
      %v4570 = vsel %vm4566, 1, 0
      %v4571 = vsel %vm4567, 1, 0
      %v4572 = vsel %vm4568, 1, 0
      %v4573 = vsel %vm4569, 1, 0
      %4574 = vset.pattern.permute.xlu0 0
      %4575 = vperm.xlu0 %4574, %v4570
      %v4576 = vpop.permute.xlu0 %4575
      %4577 = vset.pattern.permute.xlu0 0
      %4578 = vperm.xlu0 %4577, %v4571
      %v4579 = vpop.permute.xlu0 %4578
      %4580 = vset.pattern.permute.xlu0 0
      %4581 = vperm.xlu0 %4580, %v4572
      %v4582 = vpop.permute.xlu0 %4581
      %4583 = vset.pattern.permute.xlu0 0
      %4584 = vperm.xlu0 %4583, %v4573
      %v4585 = vpop.permute.xlu0 %4584
      %vm4586 = vcmp.eq.s32.totalorder %v4576, 1
      %vm4587 = vcmp.eq.s32.totalorder %v4579, 1
      %vm4588 = vcmp.eq.s32.totalorder %v4582, 1
      %vm4589 = vcmp.eq.s32.totalorder %v4585, 1
      %v4590 = vsel %vm4586, %v4553, 0.0
      %v4591 = vsel %vm4587, %v4555, 0.0
      %v4592 = vsel %vm4588, %v4558, 0.0
      %v4593 = vsel %vm4589, %v4560, 0.0
      %v4594 = vsel %vm2973, %v4590, 0.0
      %v4595 = vsel %vm2973, %v4591, 0.0
      %v4596 = vadd.f32 %v4594, %v4595
      %v4597 = vsel %vm2973, %v4592, 0.0
      %v4598 = vadd.f32 %v4596, %v4597
      %v4599 = vsel %vm2973, %v4593, 0.0
      %v4600 = vadd.f32 %v4598, %v4599
      %v4601 = vrot.slane %v4600, 4
      %v4602 = vadd.f32 %v4600, %v4601
      %v4603 = vrot.slane %v4602, 2
      %v4604 = vadd.f32 %v4602, %v4603
      %v4605 = vrot.slane %v4604, 1
      %v4606 = vadd.f32 %v4604, %v4605
      %v4607 = vmul.f32 %v4606, 0.0625
      %v4608 = vsub.f32 %v4553, %v4607
      %v4609 = vsub.f32 %v4555, %v4607
      %v4610 = vsub.f32 %v4558, %v4607
      %v4611 = vsub.f32 %v4560, %v4607
      %v4612 = vsel %vm4586, %v4608, 0.0
      %v4613 = vsel %vm4587, %v4609, 0.0
      %v4614 = vsel %vm4588, %v4610, 0.0
      %v4615 = vsel %vm4589, %v4611, 0.0
      %v4616 = vmul.f32 %v4612, %v4612
      %v4617 = vmul.f32 %v4613, %v4613
      %v4618 = vmul.f32 %v4614, %v4614
      %v4619 = vmul.f32 %v4615, %v4615
      %v4620 = vsel %vm2973, %v4616, 0.0
      %v4621 = vsel %vm2973, %v4617, 0.0
      %v4622 = vadd.f32 %v4620, %v4621
      %v4623 = vsel %vm2973, %v4618, 0.0
      %v4624 = vadd.f32 %v4622, %v4623
      %v4625 = vsel %vm2973, %v4619, 0.0
      %v4626 = vadd.f32 %v4624, %v4625
      %v4627 = vrot.slane %v4626, 4
      %v4628 = vadd.f32 %v4626, %v4627
      %v4629 = vrot.slane %v4628, 2
      %v4630 = vadd.f32 %v4628, %v4629
      %v4631 = vrot.slane %v4630, 1
      %v4632 = vadd.f32 %v4630, %v4631
      %v4633 = vmul.f32 %v4632, 0.0625
      %v4634 = vadd.f32 %v4633, 1e-05
      %v4635 = vrsqrt.pop %v4634
      %v4636 = vmul.f32 %v4635, %v4634
      %v4637 = vmul.f32 %v4636, %v4635
      %v4638 = vmul.f32 0.5, %v4637
      %v4639 = vsub.f32 1.5, %v4638
      %v4640 = vmul.f32 %v4635, %v4639
      %vm4641 = vweird.f32 %v4634
      %vm4642 = vweird.f32 %v4635
      %vm4643 = vmor %vm4641, %vm4642
      %v4644 = vsel %vm4643, %v4635, %v4640
      %v4645 = vmul.f32 %v4608, %v4644
      %v4646 = vmul.f32 %v4609, %v4644
      %v4647 = vmul.f32 %v4610, %v4644
      %v4648 = vmul.f32 %v4611, %v4644
      %v4649 = vld [vmem:[%s9] sm:$0x1]
      %v4650 = vperm.slane %v4649, 0
      %v4651 = vmul.f32 %v4645, %v4650
      %v4652 = vmul.f32 %v4646, %v4650
      %v4653 = vmul.f32 %v4647, %v4650
      %v4654 = vmul.f32 %v4648, %v4650
      %v4655 = vld [vmem:[%s9 + $0x1] sm:$0x1]
      %v4656 = vperm.slane %v4655, 0
      %v4657 = vadd.f32 %v4651, %v4656
      %v4658 = vadd.f32 %v4652, %v4656
      %v4659 = vadd.f32 %v4653, %v4656
      %v4660 = vadd.f32 %v4654, %v4656
      %vm4661 = vcmp.ge.f32.partialorder %v4657, 0.0
      %vm4662 = vcmp.ge.f32.partialorder %v4658, 0.0
      %vm4663 = vcmp.ge.f32.partialorder %v4659, 0.0
      %vm4664 = vcmp.ge.f32.partialorder %v4660, 0.0
      %v4665 = vld [vmem:[%s9 + $0x2] sm:$0x1]
      %v4666 = vperm.slane %v4665, 0
      %v4667 = vmul.f32 %v4666, %v4657
      %v4668 = vmul.f32 %v4666, %v4658
      %v4669 = vmul.f32 %v4666, %v4659
      %v4670 = vmul.f32 %v4666, %v4660
      %v4671 = vsel %vm4661, %v4657, %v4667
      %v4672 = vsel %vm4662, %v4658, %v4668
      %v4673 = vsel %vm4663, %v4659, %v4669
      %v4674 = vsel %vm4664, %v4660, %v4670
      %vm4675 = vcmask 519168
      %4676 = vst.msk [vmem:[#allocation4 + $0x20] sm:$0xf] %vm4675, 0
      %4677 = vst.msk [vmem:[#allocation4 + $0x24] sm:$0xf] %vm4675, 0
      %v4678 = vpack.c.bf16 %v4671, %v4671
      %v4679 = vpack.c.bf16 %v4672, %v4672
      %v4680 = vpack.c.bf16 %v4673, %v4673
      %v4681 = vpack.c.bf16 %v4674, %v4674
      %v4682 = vld [vmem:[%s11] sm:$0xf]
      %v4683 = vld [vmem:[%s11 + $0x4] sm:$0xf]
      %v4684 = vld [vmem:[%s11 + $0x8] sm:$0xf]
      %v4685 = vld [vmem:[%s11 + $0xc] sm:$0xf]
      %v4686 = vld [vmem:[%s11 + $0x10] sm:$0xf]
      %v4687 = vld [vmem:[%s11 + $0x14] sm:$0xf]
      %v4688 = vld [vmem:[%s11 + $0x18] sm:$0xf]
      %v4689 = vld [vmem:[%s11 + $0x1c] sm:$0xf]
      %v4698 = vunpack.c.l.b16 %v4682
      %v4699 = vunpack.c.l.b16 %v4683
      %v4700 = vunpack.c.l.b16 %v4684
      %v4701 = vunpack.c.l.b16 %v4685
      %v4702 = vunpack.c.l.b16 %v4686
      %v4703 = vunpack.c.l.b16 %v4687
      %v4704 = vunpack.c.l.b16 %v4688
      %v4705 = vunpack.c.l.b16 %v4689
      %v4706 = vpack.c.b16 %v4699, %v4698
      %v4707 = vpack.c.b16 %v4701, %v4700
      %v4708 = vpack.c.b16 %v4703, %v4702
      %v4709 = vpack.c.b16 %v4705, %v4704
      %v4714 = vunpack.c.l.b16 %v4678
      %v4715 = vunpack.c.l.b16 %v4679
      %v4716 = vunpack.c.l.b16 %v4680
      %v4717 = vunpack.c.l.b16 %v4681
      %v4718 = vpack.c.b16 %v4715, %v4714
      %v4719 = vpack.c.b16 %v4717, %v4716
      %v4723 = vsel %vm730, %v4706, 0
      %v4726 = vsel %vm730, %v4707, 0
      %v4729 = vsel %vm730, %v4708, 0
      %v4732 = vsel %vm730, %v4709, 0
      %4734 = vmatpush.bf16.msra.mxu0 0
      %4735 = vmatpush.bf16.msra.mxu0 0
      %4736 = vmatpush.bf16.msra.mxu0 0
      %4737 = vmatpush.bf16.msra.mxu0 0
      %4738 = vmatpush.bf16.msra.mxu0 0
      %4739 = vmatpush.bf16.msra.mxu0 0
      %4740 = vmatpush.bf16.msra.mxu0 %v4719
      %4741 = vmatpush.bf16.msra.mxu0 %v4718
      %4742 = vmatmul.bf16.gmra.mxu0 %v4723
      %v4743 = vpop.f32.mrf.mxu0
      %v4744 = vadd.f32 0.0, %v4743
      %v4745 = vpop.f32.mrf.mxu0
      %v4746 = vadd.f32 0.0, %v4745
      %4747 = vmatmul.bf16.gmra.mxu0 %v4726
      %v4748 = vpop.f32.mrf.mxu0
      %v4749 = vadd.f32 0.0, %v4748
      %v4750 = vpop.f32.mrf.mxu0
      %v4751 = vadd.f32 0.0, %v4750
      %4752 = vmatmul.bf16.gmra.mxu0 %v4729
      %v4753 = vpop.f32.mrf.mxu0
      %v4754 = vadd.f32 0.0, %v4753
      %v4755 = vpop.f32.mrf.mxu0
      %v4756 = vadd.f32 0.0, %v4755
      %4757 = vmatmul.bf16.gmra.mxu0 %v4732
      %v4758 = vpop.f32.mrf.mxu0
      %v4759 = vadd.f32 0.0, %v4758
      %v4760 = vpop.f32.mrf.mxu0
      %v4761 = vadd.f32 0.0, %v4760
      %4762 = vdwg.mxu0
      %v4763 = vpack.c.bf16 %v4744, %v4744
      %v4764 = vpack.c.bf16 %v4746, %v4746
      %v4765 = vpack.c.bf16 %v4749, %v4749
      %v4766 = vpack.c.bf16 %v4751, %v4751
      %v4767 = vpack.c.bf16 %v4754, %v4754
      %v4768 = vpack.c.bf16 %v4756, %v4756
      %v4769 = vpack.c.bf16 %v4759, %v4759
      %v4770 = vpack.c.bf16 %v4761, %v4761
      %4771 = vst.msk [vmem:[#allocation4] sm:$0xf] %vm4675, %v4763
      %4772 = vst.msk [vmem:[#allocation4 + $0x4] sm:$0xf] %vm4675, %v4764
      %4773 = vst.msk [vmem:[#allocation4 + $0x8] sm:$0xf] %vm4675, %v4765
      %4774 = vst.msk [vmem:[#allocation4 + $0xc] sm:$0xf] %vm4675, %v4766
      %4775 = vst.msk [vmem:[#allocation4 + $0x10] sm:$0xf] %vm4675, %v4767
      %4776 = vst.msk [vmem:[#allocation4 + $0x14] sm:$0xf] %vm4675, %v4768
      %4777 = vst.msk [vmem:[#allocation4 + $0x18] sm:$0xf] %vm4675, %v4769
      %4778 = vst.msk [vmem:[#allocation4 + $0x1c] sm:$0xf] %vm4675, %v4770
      %v4779 = vld [vmem:[#allocation4] sm:$0xf]
      %v4780 = vld [vmem:[#allocation4 + $0x4] sm:$0xf]
      %v4781 = vld [vmem:[#allocation4 + $0x8] sm:$0x1]
      %v4782 = vld [vmem:[#allocation4] sm:$0xe]
      %v4783 = vld [vmem:[#allocation4 + $0x8] sm:$0x3]
      %v4784 = vld [vmem:[#allocation4] sm:$0xc]
      %v4785 = vld [vmem:[#allocation4 + $0x8] sm:$0xf]
      %v4786 = vld [vmem:[#allocation4 + $0xc] sm:$0xf]
      %v4787 = vld [vmem:[#allocation4 + $0x10] sm:$0x1]
      %v4788 = vld [vmem:[#allocation4 + $0x8] sm:$0xe]
      %v4789 = vld [vmem:[#allocation4 + $0x10] sm:$0x3]
      %v4790 = vld [vmem:[#allocation4 + $0x8] sm:$0xc]
      %v4791 = vld [vmem:[#allocation4 + $0x10] sm:$0xf]
      %v4792 = vld [vmem:[#allocation4 + $0x14] sm:$0xf]
      %v4793 = vld [vmem:[#allocation4 + $0x18] sm:$0x1]
      %v4794 = vld [vmem:[#allocation4 + $0x10] sm:$0xe]
      %v4795 = vld [vmem:[#allocation4 + $0x18] sm:$0x3]
      %v4796 = vld [vmem:[#allocation4 + $0x10] sm:$0xc]
      %v4797 = vld [vmem:[#allocation4 + $0x18] sm:$0xf]
      %v4798 = vld [vmem:[#allocation4 + $0x1c] sm:$0xf]
      %v4799 = vld [vmem:[#allocation4 + $0x20] sm:$0x1]
      %v4800 = vld [vmem:[#allocation4 + $0x18] sm:$0xe]
      %v4801 = vld [vmem:[#allocation4 + $0x20] sm:$0x3]
      %v4802 = vld [vmem:[#allocation4 + $0x18] sm:$0xc]
      %v4805 = vunpack.c.l.b16 %v4779
      %v4806 = vunpack.c.l.b16 %v4780
      %v4807 = vpack.c.b16 %v4806, %v4805
      %v4809 = vunpack.c.l.b16 %v4781
      %v4810 = vpack.c.b16 %v4809, %v4809
      %v4812 = vshrl.u32 %v4807, 16
      %v4814 = vshll.u32 %v4807, 16
      %v4816 = vrot.slane %v4814, 1
      %v4817 = vor.u32 %v4812, %v4816
      %v4819 = vshll.u32 %v4810, 16
      %v4821 = vrot.slane %v4819, 1
      %v4822 = vsel %vm2149, %v4817, %v4821
      %4823 = vrot.lane.b32.xlu0 %v4822, 64
      %v4824 = vpop.permute.xlu0 %4823
      %v4827 = vunpack.c.l.b16 %v4782
      %v4828 = vunpack.c.l.b16 %v4783
      %v4829 = vpack.c.b16 %v4806, %v4827
      %v4830 = vpack.c.b16 %v4828, %v4828
      %vm4831 = vsmask.f32 6400
      %v4833 = vshrl.u32 %v4829, 16
      %v4835 = vrot.slane %v4833, 1
      %v4836 = vshll.u32 %v4829, 16
      %v4838 = vrot.slane %v4836, 2
      %v4839 = vor.u32 %v4835, %v4838
      %v4841 = vshrl.u32 %v4830, 16
      %v4843 = vrot.slane %v4841, 1
      %v4844 = vshll.u32 %v4830, 16
      %v4846 = vrot.slane %v4844, 2
      %v4847 = vor.u32 %v4843, %v4846
      %v4848 = vsel %vm4831, %v4839, %v4847
      %v4850 = vunpack.c.l.b16 %v4784
      %v4851 = vpack.c.b16 %v4806, %v4850
      %vm4852 = vcmask 1045504
      %v4853 = vrot.slane %v4851, 2
      %v4854 = vrot.slane %v4830, 2
      %v4855 = vsel %vm4852, %v4853, %v4854
      %4856 = vrot.lane.b32.xlu0 %v4855, 64
      %v4857 = vpop.permute.xlu0 %4856
      %v4860 = vunpack.c.l.b16 %v4785
      %v4861 = vunpack.c.l.b16 %v4786
      %v4862 = vpack.c.b16 %v4861, %v4860
      %v4864 = vunpack.c.l.b16 %v4787
      %v4865 = vpack.c.b16 %v4864, %v4864
      %v4867 = vshrl.u32 %v4862, 16
      %v4869 = vshll.u32 %v4862, 16
      %v4871 = vrot.slane %v4869, 1
      %v4872 = vor.u32 %v4867, %v4871
      %v4874 = vshll.u32 %v4865, 16
      %v4876 = vrot.slane %v4874, 1
      %v4877 = vsel %vm2149, %v4872, %v4876
      %4878 = vrot.lane.b32.xlu0 %v4877, 64
      %v4879 = vpop.permute.xlu0 %4878
      %v4882 = vunpack.c.l.b16 %v4788
      %v4883 = vunpack.c.l.b16 %v4789
      %v4884 = vpack.c.b16 %v4861, %v4882
      %v4885 = vpack.c.b16 %v4883, %v4883
      %v4887 = vshrl.u32 %v4884, 16
      %v4889 = vrot.slane %v4887, 1
      %v4890 = vshll.u32 %v4884, 16
      %v4892 = vrot.slane %v4890, 2
      %v4893 = vor.u32 %v4889, %v4892
      %v4895 = vshrl.u32 %v4885, 16
      %v4897 = vrot.slane %v4895, 1
      %v4898 = vshll.u32 %v4885, 16
      %v4900 = vrot.slane %v4898, 2
      %v4901 = vor.u32 %v4897, %v4900
      %v4902 = vsel %vm4831, %v4893, %v4901
      %v4904 = vunpack.c.l.b16 %v4790
      %v4905 = vpack.c.b16 %v4861, %v4904
      %v4906 = vrot.slane %v4905, 2
      %v4907 = vrot.slane %v4885, 2
      %v4908 = vsel %vm4852, %v4906, %v4907
      %4909 = vrot.lane.b32.xlu0 %v4908, 64
      %v4910 = vpop.permute.xlu0 %4909
      %v4913 = vunpack.c.l.b16 %v4791
      %v4914 = vunpack.c.l.b16 %v4792
      %v4915 = vpack.c.b16 %v4914, %v4913
      %v4917 = vunpack.c.l.b16 %v4793
      %v4918 = vpack.c.b16 %v4917, %v4917
      %v4920 = vshrl.u32 %v4915, 16
      %v4922 = vshll.u32 %v4915, 16
      %v4924 = vrot.slane %v4922, 1
      %v4925 = vor.u32 %v4920, %v4924
      %v4927 = vshll.u32 %v4918, 16
      %v4929 = vrot.slane %v4927, 1
      %v4930 = vsel %vm2149, %v4925, %v4929
      %4931 = vrot.lane.b32.xlu0 %v4930, 64
      %v4932 = vpop.permute.xlu0 %4931
      %v4935 = vunpack.c.l.b16 %v4794
      %v4936 = vunpack.c.l.b16 %v4795
      %v4937 = vpack.c.b16 %v4914, %v4935
      %v4938 = vpack.c.b16 %v4936, %v4936
      %v4940 = vshrl.u32 %v4937, 16
      %v4942 = vrot.slane %v4940, 1
      %v4943 = vshll.u32 %v4937, 16
      %v4945 = vrot.slane %v4943, 2
      %v4946 = vor.u32 %v4942, %v4945
      %v4948 = vshrl.u32 %v4938, 16
      %v4950 = vrot.slane %v4948, 1
      %v4951 = vshll.u32 %v4938, 16
      %v4953 = vrot.slane %v4951, 2
      %v4954 = vor.u32 %v4950, %v4953
      %v4955 = vsel %vm4831, %v4946, %v4954
      %v4957 = vunpack.c.l.b16 %v4796
      %v4958 = vpack.c.b16 %v4914, %v4957
      %v4959 = vrot.slane %v4958, 2
      %v4960 = vrot.slane %v4938, 2
      %v4961 = vsel %vm4852, %v4959, %v4960
      %4962 = vrot.lane.b32.xlu0 %v4961, 64
      %v4963 = vpop.permute.xlu0 %4962
      %v4966 = vunpack.c.l.b16 %v4797
      %v4967 = vunpack.c.l.b16 %v4798
      %v4968 = vpack.c.b16 %v4967, %v4966
      %v4970 = vunpack.c.l.b16 %v4799
      %v4971 = vpack.c.b16 %v4970, %v4970
      %v4973 = vshrl.u32 %v4968, 16
      %v4975 = vshll.u32 %v4968, 16
      %v4977 = vrot.slane %v4975, 1
      %v4978 = vor.u32 %v4973, %v4977
      %v4980 = vshll.u32 %v4971, 16
      %v4982 = vrot.slane %v4980, 1
      %v4983 = vsel %vm2149, %v4978, %v4982
      %4984 = vrot.lane.b32.xlu0 %v4983, 64
      %v4985 = vpop.permute.xlu0 %4984
      %v4988 = vunpack.c.l.b16 %v4800
      %v4989 = vunpack.c.l.b16 %v4801
      %v4990 = vpack.c.b16 %v4967, %v4988
      %v4991 = vpack.c.b16 %v4989, %v4989
      %v4993 = vshrl.u32 %v4990, 16
      %v4995 = vrot.slane %v4993, 1
      %v4996 = vshll.u32 %v4990, 16
      %v4998 = vrot.slane %v4996, 2
      %v4999 = vor.u32 %v4995, %v4998
      %v5001 = vshrl.u32 %v4991, 16
      %v5003 = vrot.slane %v5001, 1
      %v5004 = vshll.u32 %v4991, 16
      %v5006 = vrot.slane %v5004, 2
      %v5007 = vor.u32 %v5003, %v5006
      %v5008 = vsel %vm4831, %v4999, %v5007
      %v5010 = vunpack.c.l.b16 %v4802
      %v5011 = vpack.c.b16 %v4967, %v5010
      %v5012 = vrot.slane %v5011, 2
      %v5013 = vrot.slane %v4991, 2
      %v5014 = vsel %vm4852, %v5012, %v5013
      %5015 = vrot.lane.b32.xlu0 %v5014, 64
      %v5016 = vpop.permute.xlu0 %5015
      %v5018 = vsel %vm2973, %v4807, %v4824
      %v5022 = vsel %vm2973, %v4848, %v4857
      %v5025 = vsel %vm2973, %v4862, %v4879
      %v5029 = vsel %vm2973, %v4902, %v4910
      %v5032 = vsel %vm2973, %v4915, %v4932
      %v5036 = vsel %vm2973, %v4955, %v4963
      %v5039 = vsel %vm2973, %v4968, %v4985
      %v5043 = vsel %vm2973, %v5008, %v5016
      %v5045 = vld [vmem:[%s12] sm:$0xf]
      %v5046 = vld [vmem:[%s12 + $0x4] sm:$0xf]
      %v5047 = vld [vmem:[%s12 + $0x8] sm:$0xf]
      %v5048 = vld [vmem:[%s12 + $0xc] sm:$0xf]
      %v5049 = vld [vmem:[%s12 + $0x10] sm:$0xf]
      %v5050 = vld [vmem:[%s12 + $0x14] sm:$0xf]
      %v5051 = vld [vmem:[%s12 + $0x18] sm:$0xf]
      %v5052 = vld [vmem:[%s12 + $0x1c] sm:$0xf]
      %v5053 = vld [vmem:[%s12 + $0x20] sm:$0xf]
      %v5054 = vld [vmem:[%s12 + $0x24] sm:$0xf]
      %v5055 = vld [vmem:[%s12 + $0x28] sm:$0xf]
      %v5056 = vld [vmem:[%s12 + $0x2c] sm:$0xf]
      %v5057 = vld [vmem:[%s12 + $0x30] sm:$0xf]
      %v5058 = vld [vmem:[%s12 + $0x34] sm:$0xf]
      %v5059 = vld [vmem:[%s12 + $0x38] sm:$0xf]
      %v5060 = vld [vmem:[%s12 + $0x3c] sm:$0xf]
      %v5061 = vld [vmem:[%s12 + $0x40] sm:$0xf]
      %v5062 = vld [vmem:[%s12 + $0x44] sm:$0xf]
      %v5063 = vld [vmem:[%s12 + $0x48] sm:$0xf]
      %v5064 = vld [vmem:[%s12 + $0x4c] sm:$0xf]
      %v5065 = vld [vmem:[%s12 + $0x50] sm:$0xf]
      %v5066 = vld [vmem:[%s12 + $0x54] sm:$0xf]
      %v5067 = vld [vmem:[%s12 + $0x58] sm:$0xf]
      %v5068 = vld [vmem:[%s12 + $0x5c] sm:$0xf]
      %v5069 = vld [vmem:[%s12 + $0x60] sm:$0xf]
      %v5070 = vld [vmem:[%s12 + $0x64] sm:$0xf]
      %v5071 = vld [vmem:[%s12 + $0x68] sm:$0xf]
      %v5072 = vld [vmem:[%s12 + $0x6c] sm:$0xf]
      %v5073 = vld [vmem:[%s12 + $0x70] sm:$0xf]
      %v5074 = vld [vmem:[%s12 + $0x74] sm:$0xf]
      %v5075 = vld [vmem:[%s12 + $0x78] sm:$0xf]
      %v5076 = vld [vmem:[%s12 + $0x7c] sm:$0xf]
      %v5077 = vld [vmem:[%s12 + $0x80] sm:$0xf]
      %v5078 = vld [vmem:[%s12 + $0x84] sm:$0xf]
      %v5079 = vld [vmem:[%s12 + $0x88] sm:$0xf]
      %v5080 = vld [vmem:[%s12 + $0x8c] sm:$0xf]
      %v5081 = vld [vmem:[%s12 + $0x90] sm:$0xf]
      %v5082 = vld [vmem:[%s12 + $0x94] sm:$0xf]
      %v5083 = vld [vmem:[%s12 + $0x98] sm:$0xf]
      %v5084 = vld [vmem:[%s12 + $0x9c] sm:$0xf]
      %v5085 = vld [vmem:[%s12 + $0xa0] sm:$0xf]
      %v5086 = vld [vmem:[%s12 + $0xa4] sm:$0xf]
      %v5087 = vld [vmem:[%s12 + $0xa8] sm:$0xf]
      %v5088 = vld [vmem:[%s12 + $0xac] sm:$0xf]
      %v5089 = vld [vmem:[%s12 + $0xb0] sm:$0xf]
      %v5090 = vld [vmem:[%s12 + $0xb4] sm:$0xf]
      %v5091 = vld [vmem:[%s12 + $0xb8] sm:$0xf]
      %v5092 = vld [vmem:[%s12 + $0xbc] sm:$0xf]
      %v5093 = vld [vmem:[%s12 + $0xc0] sm:$0xf]
      %v5094 = vld [vmem:[%s12 + $0xc4] sm:$0xf]
      %v5095 = vld [vmem:[%s12 + $0xc8] sm:$0xf]
      %v5096 = vld [vmem:[%s12 + $0xcc] sm:$0xf]
      %v5097 = vld [vmem:[%s12 + $0xd0] sm:$0xf]
      %v5098 = vld [vmem:[%s12 + $0xd4] sm:$0xf]
      %v5099 = vld [vmem:[%s12 + $0xd8] sm:$0xf]
      %v5100 = vld [vmem:[%s12 + $0xdc] sm:$0xf]
      %v5101 = vld [vmem:[%s12 + $0xe0] sm:$0xf]
      %v5102 = vld [vmem:[%s12 + $0xe4] sm:$0xf]
      %v5103 = vld [vmem:[%s12 + $0xe8] sm:$0xf]
      %v5104 = vld [vmem:[%s12 + $0xec] sm:$0xf]
      %v5105 = vld [vmem:[%s12 + $0xf0] sm:$0xf]
      %v5106 = vld [vmem:[%s12 + $0xf4] sm:$0xf]
      %v5107 = vld [vmem:[%s12 + $0xf8] sm:$0xf]
      %v5108 = vld [vmem:[%s12 + $0xfc] sm:$0xf]
      %v5109 = vld [vmem:[%s12 + $0x100] sm:$0xf]
      %v5110 = vld [vmem:[%s12 + $0x104] sm:$0xf]
      %v5111 = vld [vmem:[%s12 + $0x108] sm:$0xf]
      %v5112 = vld [vmem:[%s12 + $0x10c] sm:$0xf]
      %v5113 = vld [vmem:[%s12 + $0x110] sm:$0xf]
      %v5114 = vld [vmem:[%s12 + $0x114] sm:$0xf]
      %v5115 = vld [vmem:[%s12 + $0x118] sm:$0xf]
      %v5116 = vld [vmem:[%s12 + $0x11c] sm:$0xf]
      %v5117 = vld [vmem:[%s12 + $0x120] sm:$0xf]
      %v5118 = vld [vmem:[%s12 + $0x124] sm:$0xf]
      %v5119 = vld [vmem:[%s12 + $0x128] sm:$0xf]
      %v5120 = vld [vmem:[%s12 + $0x12c] sm:$0xf]
      %v5121 = vld [vmem:[%s12 + $0x130] sm:$0xf]
      %v5122 = vld [vmem:[%s12 + $0x134] sm:$0xf]
      %v5123 = vld [vmem:[%s12 + $0x138] sm:$0xf]
      %v5124 = vld [vmem:[%s12 + $0x13c] sm:$0xf]
      %v5125 = vld [vmem:[%s12 + $0x140] sm:$0xf]
      %v5126 = vld [vmem:[%s12 + $0x144] sm:$0xf]
      %v5127 = vld [vmem:[%s12 + $0x148] sm:$0xf]
      %v5128 = vld [vmem:[%s12 + $0x14c] sm:$0xf]
      %v5129 = vld [vmem:[%s12 + $0x150] sm:$0xf]
      %v5130 = vld [vmem:[%s12 + $0x154] sm:$0xf]
      %v5131 = vld [vmem:[%s12 + $0x158] sm:$0xf]
      %v5132 = vld [vmem:[%s12 + $0x15c] sm:$0xf]
      %v5133 = vld [vmem:[%s12 + $0x160] sm:$0xf]
      %v5134 = vld [vmem:[%s12 + $0x164] sm:$0xf]
      %v5135 = vld [vmem:[%s12 + $0x168] sm:$0xf]
      %v5136 = vld [vmem:[%s12 + $0x16c] sm:$0xf]
      %v5137 = vld [vmem:[%s12 + $0x170] sm:$0xf]
      %v5138 = vld [vmem:[%s12 + $0x174] sm:$0xf]
      %v5139 = vld [vmem:[%s12 + $0x178] sm:$0xf]
      %v5140 = vld [vmem:[%s12 + $0x17c] sm:$0xf]
      %v5141 = vld [vmem:[%s12 + $0x180] sm:$0xf]
      %v5142 = vld [vmem:[%s12 + $0x184] sm:$0xf]
      %v5143 = vld [vmem:[%s12 + $0x188] sm:$0xf]
      %v5144 = vld [vmem:[%s12 + $0x18c] sm:$0xf]
      %v5145 = vld [vmem:[%s12 + $0x190] sm:$0xf]
      %v5146 = vld [vmem:[%s12 + $0x194] sm:$0xf]
      %v5147 = vld [vmem:[%s12 + $0x198] sm:$0xf]
      %v5148 = vld [vmem:[%s12 + $0x19c] sm:$0xf]
      %v5149 = vld [vmem:[%s12 + $0x1a0] sm:$0xf]
      %v5150 = vld [vmem:[%s12 + $0x1a4] sm:$0xf]
      %v5151 = vld [vmem:[%s12 + $0x1a8] sm:$0xf]
      %v5152 = vld [vmem:[%s12 + $0x1ac] sm:$0xf]
      %v5153 = vld [vmem:[%s12 + $0x1b0] sm:$0xf]
      %v5154 = vld [vmem:[%s12 + $0x1b4] sm:$0xf]
      %v5155 = vld [vmem:[%s12 + $0x1b8] sm:$0xf]
      %v5156 = vld [vmem:[%s12 + $0x1bc] sm:$0xf]
      %v5157 = vld [vmem:[%s12 + $0x1c0] sm:$0xf]
      %v5158 = vld [vmem:[%s12 + $0x1c4] sm:$0xf]
      %v5159 = vld [vmem:[%s12 + $0x1c8] sm:$0xf]
      %v5160 = vld [vmem:[%s12 + $0x1cc] sm:$0xf]
      %v5161 = vld [vmem:[%s12 + $0x1d0] sm:$0xf]
      %v5162 = vld [vmem:[%s12 + $0x1d4] sm:$0xf]
      %v5163 = vld [vmem:[%s12 + $0x1d8] sm:$0xf]
      %v5164 = vld [vmem:[%s12 + $0x1dc] sm:$0xf]
      %v5165 = vld [vmem:[%s12 + $0x1e0] sm:$0xf]
      %v5166 = vld [vmem:[%s12 + $0x1e4] sm:$0xf]
      %v5167 = vld [vmem:[%s12 + $0x1e8] sm:$0xf]
      %v5168 = vld [vmem:[%s12 + $0x1ec] sm:$0xf]
      %v5169 = vld [vmem:[%s12 + $0x1f0] sm:$0xf]
      %v5170 = vld [vmem:[%s12 + $0x1f4] sm:$0xf]
      %v5171 = vld [vmem:[%s12 + $0x1f8] sm:$0xf]
      %v5172 = vld [vmem:[%s12 + $0x1fc] sm:$0xf]
      %v5301 = vunpack.c.l.b16 %v5045
      %v5302 = vunpack.c.l.b16 %v5046
      %v5303 = vunpack.c.l.b16 %v5047
      %v5304 = vunpack.c.l.b16 %v5048
      %v5305 = vunpack.c.l.b16 %v5049
      %v5306 = vunpack.c.l.b16 %v5050
      %v5307 = vunpack.c.l.b16 %v5051
      %v5308 = vunpack.c.l.b16 %v5052
      %v5309 = vunpack.c.l.b16 %v5053
      %v5310 = vunpack.c.l.b16 %v5054
      %v5311 = vunpack.c.l.b16 %v5055
      %v5312 = vunpack.c.l.b16 %v5056
      %v5313 = vunpack.c.l.b16 %v5057
      %v5314 = vunpack.c.l.b16 %v5058
      %v5315 = vunpack.c.l.b16 %v5059
      %v5316 = vunpack.c.l.b16 %v5060
      %v5317 = vunpack.c.l.b16 %v5061
      %v5318 = vunpack.c.l.b16 %v5062
      %v5319 = vunpack.c.l.b16 %v5063
      %v5320 = vunpack.c.l.b16 %v5064
      %v5321 = vunpack.c.l.b16 %v5065
      %v5322 = vunpack.c.l.b16 %v5066
      %v5323 = vunpack.c.l.b16 %v5067
      %v5324 = vunpack.c.l.b16 %v5068
      %v5325 = vunpack.c.l.b16 %v5069
      %v5326 = vunpack.c.l.b16 %v5070
      %v5327 = vunpack.c.l.b16 %v5071
      %v5328 = vunpack.c.l.b16 %v5072
      %v5329 = vunpack.c.l.b16 %v5073
      %v5330 = vunpack.c.l.b16 %v5074
      %v5331 = vunpack.c.l.b16 %v5075
      %v5332 = vunpack.c.l.b16 %v5076
      %v5333 = vunpack.c.l.b16 %v5077
      %v5334 = vunpack.c.l.b16 %v5078
      %v5335 = vunpack.c.l.b16 %v5079
      %v5336 = vunpack.c.l.b16 %v5080
      %v5337 = vunpack.c.l.b16 %v5081
      %v5338 = vunpack.c.l.b16 %v5082
      %v5339 = vunpack.c.l.b16 %v5083
      %v5340 = vunpack.c.l.b16 %v5084
      %v5341 = vunpack.c.l.b16 %v5085
      %v5342 = vunpack.c.l.b16 %v5086
      %v5343 = vunpack.c.l.b16 %v5087
      %v5344 = vunpack.c.l.b16 %v5088
      %v5345 = vunpack.c.l.b16 %v5089
      %v5346 = vunpack.c.l.b16 %v5090
      %v5347 = vunpack.c.l.b16 %v5091
      %v5348 = vunpack.c.l.b16 %v5092
      %v5349 = vunpack.c.l.b16 %v5093
      %v5350 = vunpack.c.l.b16 %v5094
      %v5351 = vunpack.c.l.b16 %v5095
      %v5352 = vunpack.c.l.b16 %v5096
      %v5353 = vunpack.c.l.b16 %v5097
      %v5354 = vunpack.c.l.b16 %v5098
      %v5355 = vunpack.c.l.b16 %v5099
      %v5356 = vunpack.c.l.b16 %v5100
      %v5357 = vunpack.c.l.b16 %v5101
      %v5358 = vunpack.c.l.b16 %v5102
      %v5359 = vunpack.c.l.b16 %v5103
      %v5360 = vunpack.c.l.b16 %v5104
      %v5361 = vunpack.c.l.b16 %v5105
      %v5362 = vunpack.c.l.b16 %v5106
      %v5363 = vunpack.c.l.b16 %v5107
      %v5364 = vunpack.c.l.b16 %v5108
      %v5365 = vunpack.c.l.b16 %v5109
      %v5366 = vunpack.c.l.b16 %v5110
      %v5367 = vunpack.c.l.b16 %v5111
      %v5368 = vunpack.c.l.b16 %v5112
      %v5369 = vunpack.c.l.b16 %v5113
      %v5370 = vunpack.c.l.b16 %v5114
      %v5371 = vunpack.c.l.b16 %v5115
      %v5372 = vunpack.c.l.b16 %v5116
      %v5373 = vunpack.c.l.b16 %v5117
      %v5374 = vunpack.c.l.b16 %v5118
      %v5375 = vunpack.c.l.b16 %v5119
      %v5376 = vunpack.c.l.b16 %v5120
      %v5377 = vunpack.c.l.b16 %v5121
      %v5378 = vunpack.c.l.b16 %v5122
      %v5379 = vunpack.c.l.b16 %v5123
      %v5380 = vunpack.c.l.b16 %v5124
      %v5381 = vunpack.c.l.b16 %v5125
      %v5382 = vunpack.c.l.b16 %v5126
      %v5383 = vunpack.c.l.b16 %v5127
      %v5384 = vunpack.c.l.b16 %v5128
      %v5385 = vunpack.c.l.b16 %v5129
      %v5386 = vunpack.c.l.b16 %v5130
      %v5387 = vunpack.c.l.b16 %v5131
      %v5388 = vunpack.c.l.b16 %v5132
      %v5389 = vunpack.c.l.b16 %v5133
      %v5390 = vunpack.c.l.b16 %v5134
      %v5391 = vunpack.c.l.b16 %v5135
      %v5392 = vunpack.c.l.b16 %v5136
      %v5393 = vunpack.c.l.b16 %v5137
      %v5394 = vunpack.c.l.b16 %v5138
      %v5395 = vunpack.c.l.b16 %v5139
      %v5396 = vunpack.c.l.b16 %v5140
      %v5397 = vunpack.c.l.b16 %v5141
      %v5398 = vunpack.c.l.b16 %v5142
      %v5399 = vunpack.c.l.b16 %v5143
      %v5400 = vunpack.c.l.b16 %v5144
      %v5401 = vunpack.c.l.b16 %v5145
      %v5402 = vunpack.c.l.b16 %v5146
      %v5403 = vunpack.c.l.b16 %v5147
      %v5404 = vunpack.c.l.b16 %v5148
      %v5405 = vunpack.c.l.b16 %v5149
      %v5406 = vunpack.c.l.b16 %v5150
      %v5407 = vunpack.c.l.b16 %v5151
      %v5408 = vunpack.c.l.b16 %v5152
      %v5409 = vunpack.c.l.b16 %v5153
      %v5410 = vunpack.c.l.b16 %v5154
      %v5411 = vunpack.c.l.b16 %v5155
      %v5412 = vunpack.c.l.b16 %v5156
      %v5413 = vunpack.c.l.b16 %v5157
      %v5414 = vunpack.c.l.b16 %v5158
      %v5415 = vunpack.c.l.b16 %v5159
      %v5416 = vunpack.c.l.b16 %v5160
      %v5417 = vunpack.c.l.b16 %v5161
      %v5418 = vunpack.c.l.b16 %v5162
      %v5419 = vunpack.c.l.b16 %v5163
      %v5420 = vunpack.c.l.b16 %v5164
      %v5421 = vunpack.c.l.b16 %v5165
      %v5422 = vunpack.c.l.b16 %v5166
      %v5423 = vunpack.c.l.b16 %v5167
      %v5424 = vunpack.c.l.b16 %v5168
      %v5425 = vunpack.c.l.b16 %v5169
      %v5426 = vunpack.c.l.b16 %v5170
      %v5427 = vunpack.c.l.b16 %v5171
      %v5428 = vunpack.c.l.b16 %v5172
      %v5429 = vpack.c.b16 %v5302, %v5301
      %v5430 = vpack.c.b16 %v5304, %v5303
      %v5431 = vpack.c.b16 %v5306, %v5305
      %v5432 = vpack.c.b16 %v5308, %v5307
      %v5433 = vpack.c.b16 %v5310, %v5309
      %v5434 = vpack.c.b16 %v5312, %v5311
      %v5435 = vpack.c.b16 %v5314, %v5313
      %v5436 = vpack.c.b16 %v5316, %v5315
      %v5437 = vpack.c.b16 %v5318, %v5317
      %v5438 = vpack.c.b16 %v5320, %v5319
      %v5439 = vpack.c.b16 %v5322, %v5321
      %v5440 = vpack.c.b16 %v5324, %v5323
      %v5441 = vpack.c.b16 %v5326, %v5325
      %v5442 = vpack.c.b16 %v5328, %v5327
      %v5443 = vpack.c.b16 %v5330, %v5329
      %v5444 = vpack.c.b16 %v5332, %v5331
      %v5445 = vpack.c.b16 %v5334, %v5333
      %v5446 = vpack.c.b16 %v5336, %v5335
      %v5447 = vpack.c.b16 %v5338, %v5337
      %v5448 = vpack.c.b16 %v5340, %v5339
      %v5449 = vpack.c.b16 %v5342, %v5341
      %v5450 = vpack.c.b16 %v5344, %v5343
      %v5451 = vpack.c.b16 %v5346, %v5345
      %v5452 = vpack.c.b16 %v5348, %v5347
      %v5453 = vpack.c.b16 %v5350, %v5349
      %v5454 = vpack.c.b16 %v5352, %v5351
      %v5455 = vpack.c.b16 %v5354, %v5353
      %v5456 = vpack.c.b16 %v5356, %v5355
      %v5457 = vpack.c.b16 %v5358, %v5357
      %v5458 = vpack.c.b16 %v5360, %v5359
      %v5459 = vpack.c.b16 %v5362, %v5361
      %v5460 = vpack.c.b16 %v5364, %v5363
      %v5461 = vpack.c.b16 %v5366, %v5365
      %v5462 = vpack.c.b16 %v5368, %v5367
      %v5463 = vpack.c.b16 %v5370, %v5369
      %v5464 = vpack.c.b16 %v5372, %v5371
      %v5465 = vpack.c.b16 %v5374, %v5373
      %v5466 = vpack.c.b16 %v5376, %v5375
      %v5467 = vpack.c.b16 %v5378, %v5377
      %v5468 = vpack.c.b16 %v5380, %v5379
      %v5469 = vpack.c.b16 %v5382, %v5381
      %v5470 = vpack.c.b16 %v5384, %v5383
      %v5471 = vpack.c.b16 %v5386, %v5385
      %v5472 = vpack.c.b16 %v5388, %v5387
      %v5473 = vpack.c.b16 %v5390, %v5389
      %v5474 = vpack.c.b16 %v5392, %v5391
      %v5475 = vpack.c.b16 %v5394, %v5393
      %v5476 = vpack.c.b16 %v5396, %v5395
      %v5477 = vpack.c.b16 %v5398, %v5397
      %v5478 = vpack.c.b16 %v5400, %v5399
      %v5479 = vpack.c.b16 %v5402, %v5401
      %v5480 = vpack.c.b16 %v5404, %v5403
      %v5481 = vpack.c.b16 %v5406, %v5405
      %v5482 = vpack.c.b16 %v5408, %v5407
      %v5483 = vpack.c.b16 %v5410, %v5409
      %v5484 = vpack.c.b16 %v5412, %v5411
      %v5485 = vpack.c.b16 %v5414, %v5413
      %v5486 = vpack.c.b16 %v5416, %v5415
      %v5487 = vpack.c.b16 %v5418, %v5417
      %v5488 = vpack.c.b16 %v5420, %v5419
      %v5489 = vpack.c.b16 %v5422, %v5421
      %v5490 = vpack.c.b16 %v5424, %v5423
      %v5491 = vpack.c.b16 %v5426, %v5425
      %v5492 = vpack.c.b16 %v5428, %v5427
      %5557 = vmatpush.bf16.msra.mxu0 %v5436
      %5558 = vmatpush.bf16.msra.mxu0 %v5435
      %5559 = vmatpush.bf16.msra.mxu0 %v5434
      %5560 = vmatpush.bf16.msra.mxu0 %v5433
      %5561 = vmatpush.bf16.msra.mxu0 %v5432
      %5562 = vmatpush.bf16.msra.mxu0 %v5431
      %5563 = vmatpush.bf16.msra.mxu0 %v5430
      %5564 = vmatpush.bf16.msra.mxu0 %v5429
      %5565 = vmatmul.bf16.gmra.mxu0 %v5018
      %v5566 = vpop.f32.mrf.mxu0
      %v5567 = vadd.f32 0.0, %v5566
      %v5568 = vpop.f32.mrf.mxu0
      %v5569 = vadd.f32 0.0, %v5568
      %5570 = vdwg.mxu0
      %5571 = vmatpush.bf16.msra.mxu0 %v5444
      %5572 = vmatpush.bf16.msra.mxu0 %v5443
      %5573 = vmatpush.bf16.msra.mxu0 %v5442
      %5574 = vmatpush.bf16.msra.mxu0 %v5441
      %5575 = vmatpush.bf16.msra.mxu0 %v5440
      %5576 = vmatpush.bf16.msra.mxu0 %v5439
      %5577 = vmatpush.bf16.msra.mxu0 %v5438
      %5578 = vmatpush.bf16.msra.mxu0 %v5437
      %5579 = vmatmul.bf16.gmra.mxu0 %v5022
      %v5580 = vpop.f32.mrf.mxu0
      %v5581 = vadd.f32 %v5567, %v5580
      %v5582 = vpop.f32.mrf.mxu0
      %v5583 = vadd.f32 %v5569, %v5582
      %5584 = vdwg.mxu0
      %5585 = vmatpush.bf16.msra.mxu0 %v5452
      %5586 = vmatpush.bf16.msra.mxu0 %v5451
      %5587 = vmatpush.bf16.msra.mxu0 %v5450
      %5588 = vmatpush.bf16.msra.mxu0 %v5449
      %5589 = vmatpush.bf16.msra.mxu0 %v5448
      %5590 = vmatpush.bf16.msra.mxu0 %v5447
      %5591 = vmatpush.bf16.msra.mxu0 %v5446
      %5592 = vmatpush.bf16.msra.mxu0 %v5445
      %5593 = vmatmul.bf16.gmra.mxu0 %v5025
      %v5594 = vpop.f32.mrf.mxu0
      %v5595 = vadd.f32 %v5581, %v5594
      %v5596 = vpop.f32.mrf.mxu0
      %v5597 = vadd.f32 %v5583, %v5596
      %5598 = vdwg.mxu0
      %5599 = vmatpush.bf16.msra.mxu0 %v5460
      %5600 = vmatpush.bf16.msra.mxu0 %v5459
      %5601 = vmatpush.bf16.msra.mxu0 %v5458
      %5602 = vmatpush.bf16.msra.mxu0 %v5457
      %5603 = vmatpush.bf16.msra.mxu0 %v5456
      %5604 = vmatpush.bf16.msra.mxu0 %v5455
      %5605 = vmatpush.bf16.msra.mxu0 %v5454
      %5606 = vmatpush.bf16.msra.mxu0 %v5453
      %5607 = vmatmul.bf16.gmra.mxu0 %v5029
      %v5608 = vpop.f32.mrf.mxu0
      %v5609 = vadd.f32 %v5595, %v5608
      %v5610 = vpop.f32.mrf.mxu0
      %v5611 = vadd.f32 %v5597, %v5610
      %5612 = vdwg.mxu0
      %5613 = vmatpush.bf16.msra.mxu0 %v5468
      %5614 = vmatpush.bf16.msra.mxu0 %v5467
      %5615 = vmatpush.bf16.msra.mxu0 %v5466
      %5616 = vmatpush.bf16.msra.mxu0 %v5465
      %5617 = vmatpush.bf16.msra.mxu0 %v5464
      %5618 = vmatpush.bf16.msra.mxu0 %v5463
      %5619 = vmatpush.bf16.msra.mxu0 %v5462
      %5620 = vmatpush.bf16.msra.mxu0 %v5461
      %5621 = vmatmul.bf16.gmra.mxu0 %v5032
      %v5622 = vpop.f32.mrf.mxu0
      %v5623 = vadd.f32 %v5609, %v5622
      %v5624 = vpop.f32.mrf.mxu0
      %v5625 = vadd.f32 %v5611, %v5624
      %5626 = vdwg.mxu0
      %5627 = vmatpush.bf16.msra.mxu0 %v5476
      %5628 = vmatpush.bf16.msra.mxu0 %v5475
      %5629 = vmatpush.bf16.msra.mxu0 %v5474
      %5630 = vmatpush.bf16.msra.mxu0 %v5473
      %5631 = vmatpush.bf16.msra.mxu0 %v5472
      %5632 = vmatpush.bf16.msra.mxu0 %v5471
      %5633 = vmatpush.bf16.msra.mxu0 %v5470
      %5634 = vmatpush.bf16.msra.mxu0 %v5469
      %5635 = vmatmul.bf16.gmra.mxu0 %v5036
      %v5636 = vpop.f32.mrf.mxu0
      %v5637 = vadd.f32 %v5623, %v5636
      %v5638 = vpop.f32.mrf.mxu0
      %v5639 = vadd.f32 %v5625, %v5638
      %5640 = vdwg.mxu0
      %5641 = vmatpush.bf16.msra.mxu0 %v5484
      %5642 = vmatpush.bf16.msra.mxu0 %v5483
      %5643 = vmatpush.bf16.msra.mxu0 %v5482
      %5644 = vmatpush.bf16.msra.mxu0 %v5481
      %5645 = vmatpush.bf16.msra.mxu0 %v5480
      %5646 = vmatpush.bf16.msra.mxu0 %v5479
      %5647 = vmatpush.bf16.msra.mxu0 %v5478
      %5648 = vmatpush.bf16.msra.mxu0 %v5477
      %5649 = vmatmul.bf16.gmra.mxu0 %v5039
      %v5650 = vpop.f32.mrf.mxu0
      %v5651 = vadd.f32 %v5637, %v5650
      %v5652 = vpop.f32.mrf.mxu0
      %v5653 = vadd.f32 %v5639, %v5652
      %5654 = vdwg.mxu0
      %5655 = vmatpush.bf16.msra.mxu0 %v5492
      %5656 = vmatpush.bf16.msra.mxu0 %v5491
      %5657 = vmatpush.bf16.msra.mxu0 %v5490
      %5658 = vmatpush.bf16.msra.mxu0 %v5489
      %5659 = vmatpush.bf16.msra.mxu0 %v5488
      %5660 = vmatpush.bf16.msra.mxu0 %v5487
      %5661 = vmatpush.bf16.msra.mxu0 %v5486
      %5662 = vmatpush.bf16.msra.mxu0 %v5485
      %5663 = vmatmul.bf16.gmra.mxu0 %v5043
      %v5664 = vpop.f32.mrf.mxu0
      %v5665 = vadd.f32 %v5651, %v5664
      %v5666 = vpop.f32.mrf.mxu0
      %v5667 = vadd.f32 %v5653, %v5666
      %5668 = vdwg.mxu0
      %v5669 = vld [vmem:[%s14] sm:$0xff]
      %v5670 = vld [vmem:[%s14 + $0x8] sm:$0xff]
      %vm5671 = vcmp.gt.f32.partialorder %v5669, 0.0
      %vm5672 = vcmp.gt.f32.partialorder %v5670, 0.0
      %v5673 = vsel %vm5671, 1, 0
      %v5674 = vsel %vm5672, 1, 0
      %5675 = vset.pattern.permute.xlu0 0
      %5676 = vperm.xlu0 %5675, %v5673
      %v5677 = vpop.permute.xlu0 %5676
      %5678 = vset.pattern.permute.xlu0 0
      %5679 = vperm.xlu0 %5678, %v5674
      %v5680 = vpop.permute.xlu0 %5679
      %vm5681 = vcmp.eq.s32.totalorder %v5677, 1
      %vm5682 = vcmp.eq.s32.totalorder %v5680, 1
      %v5683 = vsel %vm5681, %v5665, 0.0
      %v5684 = vsel %vm5682, %v5667, 0.0
      %v5685 = vadd.f32 %v5683, %v5684
      %v5686 = vrot.slane %v5685, 4
      %v5687 = vadd.f32 %v5685, %v5686
      %v5688 = vrot.slane %v5687, 2
      %v5689 = vadd.f32 %v5687, %v5688
      %v5690 = vrot.slane %v5689, 1
      %v5691 = vadd.f32 %v5689, %v5690
      %v5692 = vmul.f32 %v5691, 0.25
      %v5693 = vsub.f32 %v5665, %v5692
      %v5694 = vsub.f32 %v5667, %v5692
      %v5695 = vsel %vm5681, %v5693, 0.0
      %v5696 = vsel %vm5682, %v5694, 0.0
      %v5697 = vmul.f32 %v5695, %v5695
      %v5698 = vmul.f32 %v5696, %v5696
      %v5699 = vadd.f32 %v5697, %v5698
      %v5700 = vrot.slane %v5699, 4
      %v5701 = vadd.f32 %v5699, %v5700
      %v5702 = vrot.slane %v5701, 2
      %v5703 = vadd.f32 %v5701, %v5702
      %v5704 = vrot.slane %v5703, 1
      %v5705 = vadd.f32 %v5703, %v5704
      %v5706 = vmul.f32 %v5705, 0.25
      %v5707 = vadd.f32 %v5706, 1e-05
      %v5708 = vrsqrt.pop %v5707
      %v5709 = vmul.f32 %v5708, %v5707
      %v5710 = vmul.f32 %v5709, %v5708
      %v5711 = vmul.f32 0.5, %v5710
      %v5712 = vsub.f32 1.5, %v5711
      %v5713 = vmul.f32 %v5708, %v5712
      %vm5714 = vweird.f32 %v5707
      %vm5715 = vweird.f32 %v5708
      %vm5716 = vmor %vm5714, %vm5715
      %v5717 = vsel %vm5716, %v5708, %v5713
      %v5718 = vmul.f32 %v5693, %v5717
      %v5719 = vmul.f32 %v5694, %v5717
      %v5720 = vld [vmem:[%s13] sm:$0x1]
      %v5721 = vperm.slane %v5720, 0
      %v5722 = vmul.f32 %v5718, %v5721
      %v5723 = vmul.f32 %v5719, %v5721
      %v5724 = vld [vmem:[%s13 + $0x1] sm:$0x1]
      %v5725 = vperm.slane %v5724, 0
      %v5726 = vadd.f32 %v5722, %v5725
      %v5727 = vadd.f32 %v5723, %v5725
      %vm5728 = vcmp.ge.f32.partialorder %v5726, 0.0
      %vm5729 = vcmp.ge.f32.partialorder %v5727, 0.0
      %v5730 = vld [vmem:[%s13 + $0x2] sm:$0x1]
      %v5731 = vperm.slane %v5730, 0
      %v5732 = vmul.f32 %v5731, %v5726
      %v5733 = vmul.f32 %v5731, %v5727
      %v5734 = vsel %vm5728, %v5726, %v5732
      %v5735 = vsel %vm5729, %v5727, %v5733
      %v5736 = vsel %vm5681, %v5734, -1e+30
      %v5737 = vsel %vm5682, %v5735, -1e+30
      %v5738 = vmax.f32 %v5736, %v5737
      %v5739 = vrot.slane %v5738, 4
      %v5740 = vmax.f32 %v5738, %v5739
      %v5741 = vrot.slane %v5740, 2
      %v5742 = vmax.f32 %v5740, %v5741
      %v5743 = vrot.slane %v5742, 1
      %v5744 = vmax.f32 %v5742, %v5743
      %v5745 = vpack.c.bf16 %v5744, %v5744
      %v5746 = vld [vmem:[%s15] sm:$0xf]
      %v5747 = vld [vmem:[%s15 + $0x4] sm:$0xf]
      %v5748 = vld [vmem:[%s15 + $0x8] sm:$0xf]
      %v5749 = vld [vmem:[%s15 + $0xc] sm:$0xf]
      %v5750 = vld [vmem:[%s15 + $0x10] sm:$0xf]
      %v5751 = vld [vmem:[%s15 + $0x14] sm:$0xf]
      %v5752 = vld [vmem:[%s15 + $0x18] sm:$0xf]
      %v5753 = vld [vmem:[%s15 + $0x1c] sm:$0xf]
      %v5754 = vld [vmem:[%s15 + $0x20] sm:$0xf]
      %v5755 = vld [vmem:[%s15 + $0x24] sm:$0xf]
      %v5756 = vld [vmem:[%s15 + $0x28] sm:$0xf]
      %v5757 = vld [vmem:[%s15 + $0x2c] sm:$0xf]
      %v5758 = vld [vmem:[%s15 + $0x30] sm:$0xf]
      %v5759 = vld [vmem:[%s15 + $0x34] sm:$0xf]
      %v5760 = vld [vmem:[%s15 + $0x38] sm:$0xf]
      %v5761 = vld [vmem:[%s15 + $0x3c] sm:$0xf]
      %v5762 = vld [vmem:[%s16] sm:$0x1]
      %v5779 = vunpack.c.l.b16 %v5746
      %v5780 = vunpack.c.l.b16 %v5747
      %v5781 = vunpack.c.l.b16 %v5748
      %v5782 = vunpack.c.l.b16 %v5749
      %v5783 = vunpack.c.l.b16 %v5750
      %v5784 = vunpack.c.l.b16 %v5751
      %v5785 = vunpack.c.l.b16 %v5752
      %v5786 = vunpack.c.l.b16 %v5753
      %v5787 = vunpack.c.l.b16 %v5754
      %v5788 = vunpack.c.l.b16 %v5755
      %v5789 = vunpack.c.l.b16 %v5756
      %v5790 = vunpack.c.l.b16 %v5757
      %v5791 = vunpack.c.l.b16 %v5758
      %v5792 = vunpack.c.l.b16 %v5759
      %v5793 = vunpack.c.l.b16 %v5760
      %v5794 = vunpack.c.l.b16 %v5761
      %v5795 = vpack.c.b16 %v5780, %v5779
      %v5796 = vpack.c.b16 %v5782, %v5781
      %v5797 = vpack.c.b16 %v5784, %v5783
      %v5798 = vpack.c.b16 %v5786, %v5785
      %v5799 = vpack.c.b16 %v5788, %v5787
      %v5800 = vpack.c.b16 %v5790, %v5789
      %v5801 = vpack.c.b16 %v5792, %v5791
      %v5802 = vpack.c.b16 %v5794, %v5793
      %5811 = vmatpush.bf16.msra.mxu0 %v5802
      %5812 = vmatpush.bf16.msra.mxu0 %v5801
      %5813 = vmatpush.bf16.msra.mxu0 %v5800
      %5814 = vmatpush.bf16.msra.mxu0 %v5799
      %5815 = vmatpush.bf16.msra.mxu0 %v5798
      %5816 = vmatpush.bf16.msra.mxu0 %v5797
      %5817 = vmatpush.bf16.msra.mxu0 %v5796
      %5818 = vmatpush.bf16.msra.mxu0 %v5795
      %5819 = vmatmul.bf16.gmra.mxu0 %v5745
      %v5820 = vpop.f32.mrf.mxu0
      %v5821 = vadd.f32 %v5762, %v5820
      %v5822 = vpop.f32.mrf.mxu0
      %5823 = vdwg.mxu0
      %vm5824 = vcmp.ge.f32.partialorder %v5821, 0.0
      %v5825 = vld [vmem:[%s16 + $0x1] sm:$0x1]
      %v5826 = vmul.f32 %v5825, %v5821
      %v5827 = vsel %vm5824, %v5821, %v5826
      %v5828 = vld [vmem:[%s17] sm:$0x1]
      %v5829 = vmul.f32 %v5827, %v5828
      %vm5830 = vcmask 516096
      %v5831 = vsel %vm5830, %v5829, 0.0
      %5832 = vadd.xlane.f32.xlu0 %v5831
      %v5833 = vpop.xlane.xlu0 %5832
      %v5834 = vld [vmem:[%s18] sm:$0x1]
      %v5835 = vadd.f32 %v5833, %v5834
      %5837 = vrot.lane.b32.xlu0 %v5835, 1
      %v5838 = vpop.permute.xlu0 %5837
      %v5840 = vmul.f32 %v5834, %v5838
      %v5841 = vsub.f32 0.0, %v5840
      %v5842 = vmul.f32 %v5841, 1.442695
      %v5843 = vpow.pop %v5842
      %v5844 = vadd.f32 %v5843, 1.0
      %v5845 = vrcp.pop %v5844
      %v5846 = vmul.f32 %v5844, %v5845
      %v5847 = vsub.f32 1.0, %v5846
      %v5848 = vmul.f32 %v5845, %v5847
      %v5849 = vadd.f32 %v5845, %v5848
      %vm5850 = vweird.f32 %v5844
      %vm5851 = vweird.f32 %v5845
      %vm5852 = vmor %vm5850, %vm5851
      %v5853 = vsel %vm5852, %v5845, %v5849
      %v5854 = vand.u32 2147483647, %v5844
      %vm5855 = vcmp.eq.f32.partialorder %v5854, 8.507059e+37
      %v5856 = vand.u32 %v5844, 2147483648
      %v5857 = vor.u32 1.1754944e-38, %v5856
      %v5858 = vsel %vm5855, %v5857, %v5853
      %v5859 = vmul.f32 1.0, %v5858
      %v5861 = vperm.slane %v5859, 0
      %5862 = vrot.lane.b32.xlu0 %v5861, 127
      %v5863 = vpop.permute.xlu0 %5862
      %vm5865 = vcmask 0
      %5866 = vst.msk [vmem:[%s600] sm:$0x1] %vm5865, %v5863
      %p5867 = scmp.lt.s32.totalorder %s30, 1
      %s5868 = scalar_select %p5867, %s30, 1
      %s5869 = scalar_lea.vmem %s19, %s5868
      // Predicated region
      $region97: #{discriminator_forward.1} parent=95 // pred_check
        %p5870 = pneg %p452
      $region98: #{discriminator_forward.1} parent=95 // pred_check_branch
        %5872 = sbr.rel (%p5870) target = $region100
      $region99: #{discriminator_forward.1} parent=95 // pred_region
        _
      $region100: #{discriminator_forward.1} parent=95 // pred_fallthru
        _
    $region96: #{discriminator_forward.1} parent=5 // pred_fallthru
      _
    %p5873 = scmp.le.s32.totalorder 2, %s25
    // Predicated region
    $region101: #{discriminator_forward.1} parent=5 // pred_check
      %p5874 = pneg %p5873
    $region102: #{discriminator_forward.1} parent=5 // pred_check_branch
      %5876 = sbr.rel (%p5874) target = $region104
    $region103: #{discriminator_forward.1} parent=5 // pred_region
      %s5877 = ssub.s32 %s25, 2
      // Predicated region
      $region105: #{discriminator_forward.1} parent=103 // pred_check
        %p5878 = pneg %p458
      $region106: #{discriminator_forward.1} parent=103 // pred_check_branch
        %5880 = sbr.rel (%p5878) target = $region108
      $region107: #{discriminator_forward.1} parent=103 // pred_region
        %p5881 = scmp.lt.s32.totalorder %s31, 1
        %s5882 = scalar_select %p5881, %s31, 1
        %s5883 = scalar_lea.vmem %s19, %s5882
      $region108: #{discriminator_forward.1} parent=103 // pred_fallthru
        _
    $region104: #{discriminator_forward.1} parent=5 // pred_fallthru
      _
  $region6: #{discriminator_forward.1} parent=0 // loop_footer
    %s29 = sadd.s32 1, %s25
  $region7: #{discriminator_forward.1} parent=0 // loop_footer_branch
    %24 = sbr.rel target = $region3
  $region8: #{discriminator_forward.1} parent=0 // loop_exit
    _

</llo_original>
